<compile_context>
chip_gen: v6e
topology: v6e:2x2x1
jax: 0.10.0
libtpu: 0.0.40
codegen_flags: <defaults>
</compile_context>

<pallas_src>
import functools

import jax
import jax.numpy as jnp
from jax import lax
from jax.experimental import pallas as pl
from jax.experimental.pallas import tpu as pltpu

VMEM_SPEC = pl.BlockSpec(memory_space=pltpu.MemorySpace.VMEM)
BIG_NEG = -1e30  # bias for padded logit lanes: never wins max/argmax, exp() -> 0


def _round_up(x, m):
    return ((x + m - 1) // m) * m


def _perm_ifog(w):
    """Permute the 4H gate axis (last dim) from PyTorch (i,f,g,o) to (i,f,o,g)."""
    i, f, g, o = jnp.split(w, 4, axis=-1)
    return jnp.concatenate([i, f, o, g], axis=-1)


def _lstm_cell_ifog(gates, c, hidden):
    """LSTM cell with gate columns laid out (i,f,o,g): 1 sigmoid + 2 tanh."""
    sig = jax.nn.sigmoid(gates[:, 0:3 * hidden])
    i = sig[:, 0 * hidden:1 * hidden]
    f = sig[:, 1 * hidden:2 * hidden]
    o = sig[:, 2 * hidden:3 * hidden]
    g = jnp.tanh(gates[:, 3 * hidden:4 * hidden])
    c_new = f * c + i * g
    h_new = o * jnp.tanh(c_new)
    return h_new, c_new


def _pack_params(items):
    """Pack every parameter matrix into one [R, lane] f32 array (one DMA).

    Each entry's rows are padded to a multiple of 8 (sublane tile) so every
    in-kernel slice is tile-aligned. Returns static (row, nrows, ncols) offsets.
    """
    lane = _round_up(max(a.shape[1] for a in items.values()), 128)
    offs, blocks, r = {}, [], 0
    for name, a in items.items():
        a = jnp.asarray(a, jnp.float32)
        nr, nc = a.shape
        nr_p = _round_up(nr, 8)
        blocks.append(jnp.pad(a, ((0, nr_p - nr), (0, lane - nc))))
        offs[name] = (r, nr, nc)
        r += nr_p
    return jnp.concatenate(blocks, axis=0), offs


# ------------------------------ fused kernel ---------------------------------

def vivqax_kernel(x_ref, embq_ref, w_ref, ans_ref, expl_ref, gin_ref,
                  *, offs, batch_pad, seq_len, hidden, v_pad, dec_steps, start_id):
    f32 = jnp.float32
    H = hidden
    B = batch_pad

    def W(name):
        row, nr, nc = offs[name]
        return w_ref[row:row + nr, 0:nc]      # static, tile-aligned slice

    # ---- image branch: frozen-backbone stand-in (GAP -> Linear -> ReLU) -----
    # TODO(synk): pretrained frozen ResNet-50 not reproduced; at real image
    # resolutions the backbone would be separate HW-tiled kernels, not fused here.
    px = jnp.mean(x_ref[...], axis=-1)                                    # [B, Cin]
    feats = jnp.maximum(
        jnp.dot(px, W("bb_w"), preferred_element_type=f32) + W("bb_b"), 0.0)
    img_proj = jnp.maximum(
        jnp.dot(feats, W("ip_w"), preferred_element_type=f32) + W("ip_b"), 0.0)

    # ---- question BiLSTM: fwd & bwd fused into one 256-wide recurrence ------
    gin_ref[...] = (jnp.dot(embq_ref[...], W("q_wih"), preferred_element_type=f32)
                    + W("q_b"))                                           # [T*B, 8H]
    whh = W("q_whh")                                                      # [H, 8H]
    hq = jnp.zeros((2 * B, H), f32)                                       # [hf; hb]
    cq = jnp.zeros((2 * B, H), f32)
    for t in range(seq_len):              # static unroll: cross-step scheduling
        r = jnp.dot(hq, whh, preferred_element_type=f32)                  # [2B, 8H]
        tb = seq_len - 1 - t
        gf = gin_ref[t * B:(t + 1) * B, 0:4 * H] + r[0:B, 0:4 * H]
        gb = gin_ref[tb * B:(tb + 1) * B, 4 * H:8 * H] + r[B:2 * B, 4 * H:8 * H]
        hq, cq = _lstm_cell_ifog(jnp.concatenate([gf, gb], axis=0), cq, H)
    hf = hq[0:B]
    hb = hq[B:2 * B]

    # ---- fusion: cat([img, hf, hb]) @ W  ==  split-weight sum ---------------
    fu_w = W("fu_w")
    fused = jnp.maximum(
        jnp.dot(img_proj, fu_w[0:H], preferred_element_type=f32)
        + jnp.dot(hf, fu_w[H:2 * H], preferred_element_type=f32)
        + jnp.dot(hb, fu_w[2 * H:3 * H], preferred_element_type=f32)
        + W("fu_b"), 0.0)

    # ---- answer classifier + in-kernel softmax ------------------------------
    h1 = jnp.maximum(
        jnp.dot(fused, W("c1_w"), preferred_element_type=f32) + W("c1_b"), 0.0)
    ans_logits = jnp.dot(h1, W("c2_w"), preferred_element_type=f32) + W("c2_b")
    ans_ref[...] = ans_logits                                             # dense (8,128)
    ans_exp = jnp.exp(ans_logits - jnp.max(ans_logits, axis=1, keepdims=True))
    ans_probs = ans_exp * pl.reciprocal(
        jnp.sum(ans_exp, axis=1, keepdims=True), approx=True)

    # ---- explanation decoder (greedy argmax feedback) ------------------------
    const_gates = (jnp.dot(ans_probs, W("w_dans"), preferred_element_type=f32)
                   + jnp.dot(fused, W("w_dctx"), preferred_element_type=f32)
                   + W("d_b"))                                            # hoisted
    dec_w = W("dec_w")                                                    # [V_pad+H, 4H]
    out_w = W("out_w")
    out_b = W("out_b")
    col = lax.broadcasted_iota(jnp.int32, (B, v_pad), 1)
    onehot = (col == start_id).astype(f32)
    hd = jnp.zeros((B, H), f32)
    cd = jnp.zeros((B, H), f32)
    for t in range(dec_steps):            # static unroll; purely serial chain
        gates = jnp.dot(jnp.concatenate([onehot, hd], axis=1), dec_w,
                        preferred_element_type=f32) + const_gates
        hd, cd = _lstm_cell_ifog(gates, cd, H)
        logits = jnp.dot(hd, out_w, preferred_element_type=f32) + out_b
        expl_ref[t] = logits                                              # dense (8,128)
        # first-occurrence argmax -> one-hot feedback (stays in vregs)
        maxv = jnp.max(logits, axis=1, keepdims=True)
        idx = jnp.min(jnp.where(logits == maxv, col, v_pad), axis=1, keepdims=True)
        onehot = (col == idx).astype(f32)
    # TODO(synk): at real vocab / explanation lengths, stream each step's logits
    # to HBM (grid axis over t or manual make_async_copy) instead of keeping the
    # whole [T_dec, B, V] buffer VMEM-resident, and add a batch grid axis with
    # dimension_semantics=("parallel",) to use v7x's second TensorCore.


# ------------------------------ wrapper ---------------------------------------

@functools.partial(jax.jit, static_argnames=("max_explanation_length", "start_id"))
def vivqax_forward(params, image, question, *, max_explanation_length, start_id):
    batch, cin, hh, ww = image.shape
    hw = hh * ww
    batch_pad = _round_up(max(batch, 8), 8)
    vocab, embed = params["embedding"].shape
    hidden = params["q_whh_f"].shape[0]
    num_answers = params["cls2_w"].shape[1]
    a_pad = _round_up(max(num_answers, 128), 128)
    v_pad = _round_up(max(vocab, 128), 128)
    dec_steps = max_explanation_length - 1
    seq_len = question.shape[1]

    # ---------------- glue: layouts + padding (all lane-dense) ----------------
    x3 = image.astype(jnp.float32).reshape(batch, cin, hw)            # pixels in lanes
    x3 = jnp.pad(x3, ((0, batch_pad - batch), (0, 0), (0, 0)))

    q_pad = jnp.pad(question, ((0, batch_pad - batch), (0, 0)))       # pad rows = <PAD>
    embq = params["embedding"][q_pad].astype(jnp.float32)             # [B_pad, T, E]
    embq = jnp.transpose(embq, (1, 0, 2)).reshape(seq_len * batch_pad, embed)

    # BiLSTM weights: permute gate columns (i,f,g,o)->(i,f,o,g), concat fwd|bwd
    # along lanes so both directions share one matmul per step.
    q_wih = jnp.concatenate(
        [_perm_ifog(params["q_wih_f"]), _perm_ifog(params["q_wih_b"])], axis=1)
    q_whh = jnp.concatenate(
        [_perm_ifog(params["q_whh_f"]), _perm_ifog(params["q_whh_b"])], axis=1)
    q_b = jnp.concatenate(
        [_perm_ifog(params["q_b_f"]), _perm_ifog(params["q_b_b"])], axis=1)

    # Decoder: fold the embedding table into the gate input projection and fuse
    # with the recurrent weights -> one [V_pad+H, 4H] matrix per decode step.
    d_wih = _perm_ifog(params["d_wih"])                                # [E+A+H, 4H]
    w_demb = d_wih[0:embed]
    w_dans = jnp.pad(d_wih[embed:embed + num_answers],
                     ((0, a_pad - num_answers), (0, 0)))
    w_dctx = d_wih[embed + num_answers:]
    emb_pad = jnp.pad(params["embedding"].astype(jnp.float32),
                      ((0, v_pad - vocab), (0, 0)))
    dec_w = jnp.concatenate(
        [jnp.dot(emb_pad, w_demb), _perm_ifog(params["d_whh"])], axis=0)
    d_b = _perm_ifog(params["d_b"])

    # Lane-pad the two logit heads (zero weight cols + BIG_NEG bias).
    c2_w = jnp.pad(params["cls2_w"], ((0, 0), (0, a_pad - num_answers)))
    c2_b = jnp.pad(params["cls2_b"], ((0, 0), (0, a_pad - num_answers)),
                   constant_values=BIG_NEG)
    out_w = jnp.pad(params["out_w"], ((0, 0), (0, v_pad - vocab)))
    out_b = jnp.pad(params["out_b"], ((0, 0), (0, v_pad - vocab)),
                    constant_values=BIG_NEG)

    # TODO(synk): at real vocab / feature sizes cast the packed weights to
    # bfloat16 (keep f32 accumulation and gate math) for v6e/v7x MXU rate and
    # halved weight DMA; at these toy, latency-bound shapes it only adds casts.
    pack_items = {
        "bb_w": params["backbone_w"], "bb_b": params["backbone_b"],
        "ip_w": params["img_proj_w"], "ip_b": params["img_proj_b"],
        "q_wih": q_wih, "q_whh": q_whh, "q_b": q_b,
        "fu_w": params["fusion_w"], "fu_b": params["fusion_b"],
        "c1_w": params["cls1_w"], "c1_b": params["cls1_b"],
        "c2_w": c2_w, "c2_b": c2_b,
        "dec_w": dec_w, "w_dans": w_dans, "w_dctx": w_dctx, "d_b": d_b,
        "out_w": out_w, "out_b": out_b,
    }
    wpack, offs = _pack_params(pack_items)

    kernel = functools.partial(
        vivqax_kernel, offs=offs, batch_pad=batch_pad, seq_len=seq_len,
        hidden=hidden, v_pad=v_pad, dec_steps=dec_steps, start_id=start_id)

    ans_pad, expl_pad = pl.pallas_call(
        kernel,
        out_shape=(jax.ShapeDtypeStruct((batch_pad, a_pad), jnp.float32),
                   jax.ShapeDtypeStruct((dec_steps, batch_pad, v_pad), jnp.float32)),
        in_specs=[VMEM_SPEC] * 3,
        out_specs=(VMEM_SPEC, VMEM_SPEC),
        scratch_shapes=[
            pltpu.VMEM((seq_len * batch_pad, 8 * hidden), jnp.float32),  # BiLSTM gin
        ],
    )(x3, embq, wpack)

    answer_logits = ans_pad[:batch, :num_answers]
    explanation_outputs = jnp.transpose(expl_pad, (1, 0, 2))[:batch, :, :vocab]
    return answer_logits, explanation_outputs


# ------------------------------ parameter init --------------------------------

def _uniform(key, shape, scale):
    return jax.random.uniform(key, shape, jnp.float32, -scale, scale)


def init_params(key, *, vocab, embed, hidden, num_answers, in_ch, feat):
    ks = iter(jax.random.split(key, 32))
    p = {}
    s_bb = 1.0 / (in_ch ** 0.5)
    p["backbone_w"] = _uniform(next(ks), (in_ch, feat), s_bb)
    p["backbone_b"] = _uniform(next(ks), (1, feat), s_bb)
    s_ip = 1.0 / (feat ** 0.5)
    p["img_proj_w"] = _uniform(next(ks), (feat, hidden), s_ip)
    p["img_proj_b"] = _uniform(next(ks), (1, hidden), s_ip)
    p["embedding"] = jax.random.normal(next(ks), (vocab, embed), jnp.float32)
    s_l = 1.0 / (hidden ** 0.5)
    for d in ("f", "b"):
        p[f"q_wih_{d}"] = _uniform(next(ks), (embed, 4 * hidden), s_l)
        p[f"q_whh_{d}"] = _uniform(next(ks), (hidden, 4 * hidden), s_l)
        p[f"q_b_{d}"] = _uniform(next(ks), (1, 4 * hidden), s_l)   # b_ih + b_hh folded
    fusion_in = hidden * 3
    s_fu = 1.0 / (fusion_in ** 0.5)
    p["fusion_w"] = _uniform(next(ks), (fusion_in, hidden), s_fu)
    p["fusion_b"] = _uniform(next(ks), (1, hidden), s_fu)
    s_c1 = 1.0 / (hidden ** 0.5)
    p["cls1_w"] = _uniform(next(ks), (hidden, hidden // 2), s_c1)
    p["cls1_b"] = _uniform(next(ks), (1, hidden // 2), s_c1)
    s_c2 = 1.0 / ((hidden // 2) ** 0.5)
    p["cls2_w"] = _uniform(next(ks), (hidden // 2, num_answers), s_c2)
    p["cls2_b"] = _uniform(next(ks), (1, num_answers), s_c2)
    dec_in = embed + num_answers + hidden
    p["d_wih"] = _uniform(next(ks), (dec_in, 4 * hidden), s_l)
    p["d_whh"] = _uniform(next(ks), (hidden, 4 * hidden), s_l)
    p["d_b"] = _uniform(next(ks), (1, 4 * hidden), s_l)
    p["out_w"] = _uniform(next(ks), (hidden, vocab), s_l)
    p["out_b"] = _uniform(next(ks), (1, vocab), s_l)
    return p


# ----------------------------------- main --------------------------------------

if __name__ == "__main__":
    vocab_size = 50
    embed_size = 32
    hidden_size = 32
    num_answers = 8
    max_explanation_length = 6
    feat_dim = 64          # ResNet stand-in feature width
    word2idx = {"<PAD>": 0, "<START>": 1, "<END>": 2}

    key = jax.random.PRNGKey(0)
    k_param, k_img, k_q = jax.random.split(key, 3)

    params = init_params(k_param, vocab=vocab_size, embed=embed_size,
                         hidden=hidden_size, num_answers=num_answers,
                         in_ch=3, feat=feat_dim)

    image = jax.random.normal(k_img, (2, 3, 16, 16), jnp.float32)      # NCHW
    question = jax.random.randint(k_q, (2, 8), 3, vocab_size, jnp.int32)

    answer_logits, explanation_outputs = vivqax_forward(
        params, image, question,
        max_explanation_length=max_explanation_length,
        start_id=word2idx["<START>"])

    jax.block_until_ready((answer_logits, explanation_outputs))
    assert answer_logits.shape == (2, num_answers)
    assert explanation_outputs.shape == (2, max_explanation_length - 1, vocab_size)
    assert bool(jnp.all(jnp.isfinite(answer_logits)))
    assert bool(jnp.all(jnp.isfinite(explanation_outputs)))
    print("KERNEL_OK")
</pallas_src>

<mosaic_0001>
module attributes {stable_mosaic.version = 11 : i64} {
  func.func @vivqax_kernel(%arg0: memref<8x3x256xf32, #tpu.memory_space<vmem>>, %arg1: memref<64x32xf32, #tpu.memory_space<vmem>>, %arg2: memref<696x256xf32, #tpu.memory_space<vmem>>, %arg3: memref<8x128xf32, #tpu.memory_space<vmem>>, %arg4: memref<5x8x128xf32, #tpu.memory_space<vmem>>, %arg5: memref<64x256xf32, #tpu.memory_space<vmem>>) attributes {dimension_semantics = [], scalar_prefetch = 0 : i64, scratch_operands = 1 : i64, tpu.core_type = #tpu.core_type<tc>} {
    %c0 = arith.constant 0 : index
    %c0_0 = arith.constant 0 : index
    %c0_1 = arith.constant 0 : index
    %0 = vector.load %arg0[%c0, %c0_0, %c0_1] : memref<8x3x256xf32, #tpu.memory_space<vmem>>, vector<8x3x256xf32>
    %cst = arith.constant dense<0.000000e+00> : vector<8x3xf32>
    %1 = vector.multi_reduction <add>, %0, %cst [2] : vector<8x3x256xf32> to vector<8x3xf32>
    %cst_2 = arith.constant 2.560000e+02 : f32
    %2 = vector.broadcast %cst_2 : f32 to vector<8x3xf32>
    %3 = arith.divf %1, %2 : vector<8x3xf32>
    %c0_3 = arith.constant 0 : index
    %c0_4 = arith.constant 0 : index
    %4 = vector.load %arg2[%c0_3, %c0_4] : memref<696x256xf32, #tpu.memory_space<vmem>>, vector<3x64xf32>
    %cst_5 = arith.constant dense<0.000000e+00> : vector<8x64xf32>
    %5 = tpu.matmul %3, %4, %cst_5 {dimension_numbers = #tpu.dot_dimension_numbers<[1], [0], [0], [1], [0, 0, 1, 1], [], []>} : vector<8x3xf32>, vector<3x64xf32>, vector<8x64xf32> -> vector<8x64xf32>
    %c8 = arith.constant 8 : index
    %c0_6 = arith.constant 0 : index
    %6 = vector.load %arg2[%c8, %c0_6] : memref<696x256xf32, #tpu.memory_space<vmem>>, vector<1x64xf32>
    %7 = vector.broadcast %6 : vector<1x64xf32> to vector<8x64xf32>
    %8 = arith.addf %5, %7 : vector<8x64xf32>
    %cst_7 = arith.constant 0.000000e+00 : f32
    %9 = vector.broadcast %cst_7 : f32 to vector<8x64xf32>
    %10 = arith.maximumf %8, %9 : vector<8x64xf32>
    %c16 = arith.constant 16 : index
    %c0_8 = arith.constant 0 : index
    %11 = vector.load %arg2[%c16, %c0_8] : memref<696x256xf32, #tpu.memory_space<vmem>>, vector<64x32xf32>
    %cst_9 = arith.constant dense<0.000000e+00> : vector<8x32xf32>
    %12 = tpu.matmul %10, %11, %cst_9 {dimension_numbers = #tpu.dot_dimension_numbers<[1], [0], [0], [1], [0, 0, 1, 1], [], []>} : vector<8x64xf32>, vector<64x32xf32>, vector<8x32xf32> -> vector<8x32xf32>
    %c80 = arith.constant 80 : index
    %c0_10 = arith.constant 0 : index
    %13 = vector.load %arg2[%c80, %c0_10] : memref<696x256xf32, #tpu.memory_space<vmem>>, vector<1x32xf32>
    %14 = vector.broadcast %13 : vector<1x32xf32> to vector<8x32xf32>
    %15 = arith.addf %12, %14 : vector<8x32xf32>
    %cst_11 = arith.constant 0.000000e+00 : f32
    %16 = vector.broadcast %cst_11 : f32 to vector<8x32xf32>
    %17 = arith.maximumf %15, %16 : vector<8x32xf32>
    %c0_12 = arith.constant 0 : index
    %c0_13 = arith.constant 0 : index
    %18 = vector.load %arg1[%c0_12, %c0_13] : memref<64x32xf32, #tpu.memory_space<vmem>>, vector<64x32xf32>
    %c88 = arith.constant 88 : index
    %c0_14 = arith.constant 0 : index
    %19 = vector.load %arg2[%c88, %c0_14] : memref<696x256xf32, #tpu.memory_space<vmem>>, vector<32x256xf32>
    %cst_15 = arith.constant dense<0.000000e+00> : vector<64x256xf32>
    %20 = tpu.matmul %18, %19, %cst_15 {dimension_numbers = #tpu.dot_dimension_numbers<[1], [0], [0], [1], [0, 0, 1, 1], [], []>} : vector<64x32xf32>, vector<32x256xf32>, vector<64x256xf32> -> vector<64x256xf32>
    %c152 = arith.constant 152 : index
    %c0_16 = arith.constant 0 : index
    %21 = vector.load %arg2[%c152, %c0_16] : memref<696x256xf32, #tpu.memory_space<vmem>>, vector<1x256xf32>
    %22 = vector.broadcast %21 : vector<1x256xf32> to vector<64x256xf32>
    %23 = arith.addf %20, %22 : vector<64x256xf32>
    %c0_17 = arith.constant 0 : index
    %c0_18 = arith.constant 0 : index
    %24 = vector.load %arg5[%c0_17, %c0_18] : memref<64x256xf32, #tpu.memory_space<vmem>>, vector<64x256xf32>
    tpu.vector_store %arg5[%c0_17, %c0_18], %23 {strides = array<i32>} : memref<64x256xf32, #tpu.memory_space<vmem>>, vector<64x256xf32>,
    %c120 = arith.constant 120 : index
    %c0_19 = arith.constant 0 : index
    %25 = vector.load %arg2[%c120, %c0_19] : memref<696x256xf32, #tpu.memory_space<vmem>>, vector<32x256xf32>
    %cst_20 = arith.constant 0.000000e+00 : f32
    %26 = vector.broadcast %cst_20 : f32 to vector<16x32xf32>
    %cst_21 = arith.constant 0.000000e+00 : f32
    %27 = vector.broadcast %cst_21 : f32 to vector<16x32xf32>
    %cst_22 = arith.constant dense<0.000000e+00> : vector<16x256xf32>
    %28 = tpu.matmul %26, %25, %cst_22 {dimension_numbers = #tpu.dot_dimension_numbers<[1], [0], [0], [1], [0, 0, 1, 1], [], []>} : vector<16x32xf32>, vector<32x256xf32>, vector<16x256xf32> -> vector<16x256xf32>
    %c0_23 = arith.constant 0 : index
    %c0_24 = arith.constant 0 : index
    %29 = vector.load %arg5[%c0_23, %c0_24] : memref<64x256xf32, #tpu.memory_space<vmem>>, vector<8x128xf32>
    %30 = vector.extract_strided_slice %28 {offsets = [0, 0], sizes = [8, 128], strides = [1, 1]} : vector<16x256xf32> to vector<8x128xf32>
    %31 = arith.addf %29, %30 : vector<8x128xf32>
    %c56 = arith.constant 56 : index
    %c128 = arith.constant 128 : index
    %32 = vector.load %arg5[%c56, %c128] : memref<64x256xf32, #tpu.memory_space<vmem>>, vector<8x128xf32>
    %33 = vector.extract_strided_slice %28 {offsets = [8, 128], sizes = [8, 128], strides = [1, 1]} : vector<16x256xf32> to vector<8x128xf32>
    %34 = arith.addf %32, %33 : vector<8x128xf32>
    %35 = tpu.concatenate %31, %34 in 0 : vector<8x128xf32>, vector<8x128xf32> -> vector<16x128xf32>
    %36 = vector.extract_strided_slice %35 {offsets = [0, 0], sizes = [16, 96], strides = [1, 1]} : vector<16x128xf32> to vector<16x96xf32>
    %37 = arith.negf %36 : vector<16x96xf32>
    %38 = math.exp %37 : vector<16x96xf32>
    %cst_25 = arith.constant 1.000000e+00 : f32
    %39 = vector.broadcast %cst_25 : f32 to vector<16x96xf32>
    %40 = arith.addf %39, %38 : vector<16x96xf32>
    %41 = arith.divf %39, %40 : vector<16x96xf32>
    %42 = vector.extract_strided_slice %41 {offsets = [0, 0], sizes = [16, 32], strides = [1, 1]} : vector<16x96xf32> to vector<16x32xf32>
    %43 = vector.extract_strided_slice %41 {offsets = [0, 32], sizes = [16, 32], strides = [1, 1]} : vector<16x96xf32> to vector<16x32xf32>
    %44 = vector.extract_strided_slice %41 {offsets = [0, 64], sizes = [16, 32], strides = [1, 1]} : vector<16x96xf32> to vector<16x32xf32>
    %45 = vector.extract_strided_slice %35 {offsets = [0, 96], sizes = [16, 32], strides = [1, 1]} : vector<16x128xf32> to vector<16x32xf32>
    %46 = math.tanh %45 : vector<16x32xf32>
    %47 = arith.mulf %43, %27 : vector<16x32xf32>
    %48 = arith.mulf %42, %46 : vector<16x32xf32>
    %49 = arith.addf %47, %48 : vector<16x32xf32>
    %50 = math.tanh %49 : vector<16x32xf32>
    %51 = arith.mulf %44, %50 : vector<16x32xf32>
    %cst_26 = arith.constant dense<0.000000e+00> : vector<16x256xf32>
    %52 = tpu.matmul %51, %25, %cst_26 {dimension_numbers = #tpu.dot_dimension_numbers<[1], [0], [0], [1], [0, 0, 1, 1], [], []>} : vector<16x32xf32>, vector<32x256xf32>, vector<16x256xf32> -> vector<16x256xf32>
    %c8_27 = arith.constant 8 : index
    %c0_28 = arith.constant 0 : index
    %53 = vector.load %arg5[%c8_27, %c0_28] : memref<64x256xf32, #tpu.memory_space<vmem>>, vector<8x128xf32>
    %54 = vector.extract_strided_slice %52 {offsets = [0, 0], sizes = [8, 128], strides = [1, 1]} : vector<16x256xf32> to vector<8x128xf32>
    %55 = arith.addf %53, %54 : vector<8x128xf32>
    %c48 = arith.constant 48 : index
    %c128_29 = arith.constant 128 : index
    %56 = vector.load %arg5[%c48, %c128_29] : memref<64x256xf32, #tpu.memory_space<vmem>>, vector<8x128xf32>
    %57 = vector.extract_strided_slice %52 {offsets = [8, 128], sizes = [8, 128], strides = [1, 1]} : vector<16x256xf32> to vector<8x128xf32>
    %58 = arith.addf %56, %57 : vector<8x128xf32>
    %59 = tpu.concatenate %55, %58 in 0 : vector<8x128xf32>, vector<8x128xf32> -> vector<16x128xf32>
    %60 = vector.extract_strided_slice %59 {offsets = [0, 0], sizes = [16, 96], strides = [1, 1]} : vector<16x128xf32> to vector<16x96xf32>
    %61 = arith.negf %60 : vector<16x96xf32>
    %62 = math.exp %61 : vector<16x96xf32>
    %cst_30 = arith.constant 1.000000e+00 : f32
    %63 = vector.broadcast %cst_30 : f32 to vector<16x96xf32>
    %64 = arith.addf %63, %62 : vector<16x96xf32>
    %65 = arith.divf %63, %64 : vector<16x96xf32>
    %66 = vector.extract_strided_slice %65 {offsets = [0, 0], sizes = [16, 32], strides = [1, 1]} : vector<16x96xf32> to vector<16x32xf32>
    %67 = vector.extract_strided_slice %65 {offsets = [0, 32], sizes = [16, 32], strides = [1, 1]} : vector<16x96xf32> to vector<16x32xf32>
    %68 = vector.extract_strided_slice %65 {offsets = [0, 64], sizes = [16, 32], strides = [1, 1]} : vector<16x96xf32> to vector<16x32xf32>
    %69 = vector.extract_strided_slice %59 {offsets = [0, 96], sizes = [16, 32], strides = [1, 1]} : vector<16x128xf32> to vector<16x32xf32>
    %70 = math.tanh %69 : vector<16x32xf32>
    %71 = arith.mulf %67, %49 : vector<16x32xf32>
    %72 = arith.mulf %66, %70 : vector<16x32xf32>
    %73 = arith.addf %71, %72 : vector<16x32xf32>
    %74 = math.tanh %73 : vector<16x32xf32>
    %75 = arith.mulf %68, %74 : vector<16x32xf32>
    %cst_31 = arith.constant dense<0.000000e+00> : vector<16x256xf32>
    %76 = tpu.matmul %75, %25, %cst_31 {dimension_numbers = #tpu.dot_dimension_numbers<[1], [0], [0], [1], [0, 0, 1, 1], [], []>} : vector<16x32xf32>, vector<32x256xf32>, vector<16x256xf32> -> vector<16x256xf32>
    %c16_32 = arith.constant 16 : index
    %c0_33 = arith.constant 0 : index
    %77 = vector.load %arg5[%c16_32, %c0_33] : memref<64x256xf32, #tpu.memory_space<vmem>>, vector<8x128xf32>
    %78 = vector.extract_strided_slice %76 {offsets = [0, 0], sizes = [8, 128], strides = [1, 1]} : vector<16x256xf32> to vector<8x128xf32>
    %79 = arith.addf %77, %78 : vector<8x128xf32>
    %c40 = arith.constant 40 : index
    %c128_34 = arith.constant 128 : index
    %80 = vector.load %arg5[%c40, %c128_34] : memref<64x256xf32, #tpu.memory_space<vmem>>, vector<8x128xf32>
    %81 = vector.extract_strided_slice %76 {offsets = [8, 128], sizes = [8, 128], strides = [1, 1]} : vector<16x256xf32> to vector<8x128xf32>
    %82 = arith.addf %80, %81 : vector<8x128xf32>
    %83 = tpu.concatenate %79, %82 in 0 : vector<8x128xf32>, vector<8x128xf32> -> vector<16x128xf32>
    %84 = vector.extract_strided_slice %83 {offsets = [0, 0], sizes = [16, 96], strides = [1, 1]} : vector<16x128xf32> to vector<16x96xf32>
    %85 = arith.negf %84 : vector<16x96xf32>
    %86 = math.exp %85 : vector<16x96xf32>
    %cst_35 = arith.constant 1.000000e+00 : f32
    %87 = vector.broadcast %cst_35 : f32 to vector<16x96xf32>
    %88 = arith.addf %87, %86 : vector<16x96xf32>
    %89 = arith.divf %87, %88 : vector<16x96xf32>
    %90 = vector.extract_strided_slice %89 {offsets = [0, 0], sizes = [16, 32], strides = [1, 1]} : vector<16x96xf32> to vector<16x32xf32>
    %91 = vector.extract_strided_slice %89 {offsets = [0, 32], sizes = [16, 32], strides = [1, 1]} : vector<16x96xf32> to vector<16x32xf32>
    %92 = vector.extract_strided_slice %89 {offsets = [0, 64], sizes = [16, 32], strides = [1, 1]} : vector<16x96xf32> to vector<16x32xf32>
    %93 = vector.extract_strided_slice %83 {offsets = [0, 96], sizes = [16, 32], strides = [1, 1]} : vector<16x128xf32> to vector<16x32xf32>
    %94 = math.tanh %93 : vector<16x32xf32>
    %95 = arith.mulf %91, %73 : vector<16x32xf32>
    %96 = arith.mulf %90, %94 : vector<16x32xf32>
    %97 = arith.addf %95, %96 : vector<16x32xf32>
    %98 = math.tanh %97 : vector<16x32xf32>
    %99 = arith.mulf %92, %98 : vector<16x32xf32>
    %cst_36 = arith.constant dense<0.000000e+00> : vector<16x256xf32>
    %100 = tpu.matmul %99, %25, %cst_36 {dimension_numbers = #tpu.dot_dimension_numbers<[1], [0], [0], [1], [0, 0, 1, 1], [], []>} : vector<16x32xf32>, vector<32x256xf32>, vector<16x256xf32> -> vector<16x256xf32>
    %c24 = arith.constant 24 : index
    %c0_37 = arith.constant 0 : index
    %101 = vector.load %arg5[%c24, %c0_37] : memref<64x256xf32, #tpu.memory_space<vmem>>, vector<8x128xf32>
    %102 = vector.extract_strided_slice %100 {offsets = [0, 0], sizes = [8, 128], strides = [1, 1]} : vector<16x256xf32> to vector<8x128xf32>
    %103 = arith.addf %101, %102 : vector<8x128xf32>
    %c32 = arith.constant 32 : index
    %c128_38 = arith.constant 128 : index
    %104 = vector.load %arg5[%c32, %c128_38] : memref<64x256xf32, #tpu.memory_space<vmem>>, vector<8x128xf32>
    %105 = vector.extract_strided_slice %100 {offsets = [8, 128], sizes = [8, 128], strides = [1, 1]} : vector<16x256xf32> to vector<8x128xf32>
    %106 = arith.addf %104, %105 : vector<8x128xf32>
    %107 = tpu.concatenate %103, %106 in 0 : vector<8x128xf32>, vector<8x128xf32> -> vector<16x128xf32>
    %108 = vector.extract_strided_slice %107 {offsets = [0, 0], sizes = [16, 96], strides = [1, 1]} : vector<16x128xf32> to vector<16x96xf32>
    %109 = arith.negf %108 : vector<16x96xf32>
    %110 = math.exp %109 : vector<16x96xf32>
    %cst_39 = arith.constant 1.000000e+00 : f32
    %111 = vector.broadcast %cst_39 : f32 to vector<16x96xf32>
    %112 = arith.addf %111, %110 : vector<16x96xf32>
    %113 = arith.divf %111, %112 : vector<16x96xf32>
    %114 = vector.extract_strided_slice %113 {offsets = [0, 0], sizes = [16, 32], strides = [1, 1]} : vector<16x96xf32> to vector<16x32xf32>
    %115 = vector.extract_strided_slice %113 {offsets = [0, 32], sizes = [16, 32], strides = [1, 1]} : vector<16x96xf32> to vector<16x32xf32>
    %116 = vector.extract_strided_slice %113 {offsets = [0, 64], sizes = [16, 32], strides = [1, 1]} : vector<16x96xf32> to vector<16x32xf32>
    %117 = vector.extract_strided_slice %107 {offsets = [0, 96], sizes = [16, 32], strides = [1, 1]} : vector<16x128xf32> to vector<16x32xf32>
    %118 = math.tanh %117 : vector<16x32xf32>
    %119 = arith.mulf %115, %97 : vector<16x32xf32>
    %120 = arith.mulf %114, %118 : vector<16x32xf32>
    %121 = arith.addf %119, %120 : vector<16x32xf32>
    %122 = math.tanh %121 : vector<16x32xf32>
    %123 = arith.mulf %116, %122 : vector<16x32xf32>
    %cst_40 = arith.constant dense<0.000000e+00> : vector<16x256xf32>
    %124 = tpu.matmul %123, %25, %cst_40 {dimension_numbers = #tpu.dot_dimension_numbers<[1], [0], [0], [1], [0, 0, 1, 1], [], []>} : vector<16x32xf32>, vector<32x256xf32>, vector<16x256xf32> -> vector<16x256xf32>
    %c32_41 = arith.constant 32 : index
    %c0_42 = arith.constant 0 : index
    %125 = vector.load %arg5[%c32_41, %c0_42] : memref<64x256xf32, #tpu.memory_space<vmem>>, vector<8x128xf32>
    %126 = vector.extract_strided_slice %124 {offsets = [0, 0], sizes = [8, 128], strides = [1, 1]} : vector<16x256xf32> to vector<8x128xf32>
    %127 = arith.addf %125, %126 : vector<8x128xf32>
    %c24_43 = arith.constant 24 : index
    %c128_44 = arith.constant 128 : index
    %128 = vector.load %arg5[%c24_43, %c128_44] : memref<64x256xf32, #tpu.memory_space<vmem>>, vector<8x128xf32>
    %129 = vector.extract_strided_slice %124 {offsets = [8, 128], sizes = [8, 128], strides = [1, 1]} : vector<16x256xf32> to vector<8x128xf32>
    %130 = arith.addf %128, %129 : vector<8x128xf32>
    %131 = tpu.concatenate %127, %130 in 0 : vector<8x128xf32>, vector<8x128xf32> -> vector<16x128xf32>
    %132 = vector.extract_strided_slice %131 {offsets = [0, 0], sizes = [16, 96], strides = [1, 1]} : vector<16x128xf32> to vector<16x96xf32>
    %133 = arith.negf %132 : vector<16x96xf32>
    %134 = math.exp %133 : vector<16x96xf32>
    %cst_45 = arith.constant 1.000000e+00 : f32
    %135 = vector.broadcast %cst_45 : f32 to vector<16x96xf32>
    %136 = arith.addf %135, %134 : vector<16x96xf32>
    %137 = arith.divf %135, %136 : vector<16x96xf32>
    %138 = vector.extract_strided_slice %137 {offsets = [0, 0], sizes = [16, 32], strides = [1, 1]} : vector<16x96xf32> to vector<16x32xf32>
    %139 = vector.extract_strided_slice %137 {offsets = [0, 32], sizes = [16, 32], strides = [1, 1]} : vector<16x96xf32> to vector<16x32xf32>
    %140 = vector.extract_strided_slice %137 {offsets = [0, 64], sizes = [16, 32], strides = [1, 1]} : vector<16x96xf32> to vector<16x32xf32>
    %141 = vector.extract_strided_slice %131 {offsets = [0, 96], sizes = [16, 32], strides = [1, 1]} : vector<16x128xf32> to vector<16x32xf32>
    %142 = math.tanh %141 : vector<16x32xf32>
    %143 = arith.mulf %139, %121 : vector<16x32xf32>
    %144 = arith.mulf %138, %142 : vector<16x32xf32>
    %145 = arith.addf %143, %144 : vector<16x32xf32>
    %146 = math.tanh %145 : vector<16x32xf32>
    %147 = arith.mulf %140, %146 : vector<16x32xf32>
    %cst_46 = arith.constant dense<0.000000e+00> : vector<16x256xf32>
    %148 = tpu.matmul %147, %25, %cst_46 {dimension_numbers = #tpu.dot_dimension_numbers<[1], [0], [0], [1], [0, 0, 1, 1], [], []>} : vector<16x32xf32>, vector<32x256xf32>, vector<16x256xf32> -> vector<16x256xf32>
    %c40_47 = arith.constant 40 : index
    %c0_48 = arith.constant 0 : index
    %149 = vector.load %arg5[%c40_47, %c0_48] : memref<64x256xf32, #tpu.memory_space<vmem>>, vector<8x128xf32>
    %150 = vector.extract_strided_slice %148 {offsets = [0, 0], sizes = [8, 128], strides = [1, 1]} : vector<16x256xf32> to vector<8x128xf32>
    %151 = arith.addf %149, %150 : vector<8x128xf32>
    %c16_49 = arith.constant 16 : index
    %c128_50 = arith.constant 128 : index
    %152 = vector.load %arg5[%c16_49, %c128_50] : memref<64x256xf32, #tpu.memory_space<vmem>>, vector<8x128xf32>
    %153 = vector.extract_strided_slice %148 {offsets = [8, 128], sizes = [8, 128], strides = [1, 1]} : vector<16x256xf32> to vector<8x128xf32>
    %154 = arith.addf %152, %153 : vector<8x128xf32>
    %155 = tpu.concatenate %151, %154 in 0 : vector<8x128xf32>, vector<8x128xf32> -> vector<16x128xf32>
    %156 = vector.extract_strided_slice %155 {offsets = [0, 0], sizes = [16, 96], strides = [1, 1]} : vector<16x128xf32> to vector<16x96xf32>
    %157 = arith.negf %156 : vector<16x96xf32>
    %158 = math.exp %157 : vector<16x96xf32>
    %cst_51 = arith.constant 1.000000e+00 : f32
    %159 = vector.broadcast %cst_51 : f32 to vector<16x96xf32>
    %160 = arith.addf %159, %158 : vector<16x96xf32>
    %161 = arith.divf %159, %160 : vector<16x96xf32>
    %162 = vector.extract_strided_slice %161 {offsets = [0, 0], sizes = [16, 32], strides = [1, 1]} : vector<16x96xf32> to vector<16x32xf32>
    %163 = vector.extract_strided_slice %161 {offsets = [0, 32], sizes = [16, 32], strides = [1, 1]} : vector<16x96xf32> to vector<16x32xf32>
    %164 = vector.extract_strided_slice %161 {offsets = [0, 64], sizes = [16, 32], strides = [1, 1]} : vector<16x96xf32> to vector<16x32xf32>
    %165 = vector.extract_strided_slice %155 {offsets = [0, 96], sizes = [16, 32], strides = [1, 1]} : vector<16x128xf32> to vector<16x32xf32>
    %166 = math.tanh %165 : vector<16x32xf32>
    %167 = arith.mulf %163, %145 : vector<16x32xf32>
    %168 = arith.mulf %162, %166 : vector<16x32xf32>
    %169 = arith.addf %167, %168 : vector<16x32xf32>
    %170 = math.tanh %169 : vector<16x32xf32>
    %171 = arith.mulf %164, %170 : vector<16x32xf32>
    %cst_52 = arith.constant dense<0.000000e+00> : vector<16x256xf32>
    %172 = tpu.matmul %171, %25, %cst_52 {dimension_numbers = #tpu.dot_dimension_numbers<[1], [0], [0], [1], [0, 0, 1, 1], [], []>} : vector<16x32xf32>, vector<32x256xf32>, vector<16x256xf32> -> vector<16x256xf32>
    %c48_53 = arith.constant 48 : index
    %c0_54 = arith.constant 0 : index
    %173 = vector.load %arg5[%c48_53, %c0_54] : memref<64x256xf32, #tpu.memory_space<vmem>>, vector<8x128xf32>
    %174 = vector.extract_strided_slice %172 {offsets = [0, 0], sizes = [8, 128], strides = [1, 1]} : vector<16x256xf32> to vector<8x128xf32>
    %175 = arith.addf %173, %174 : vector<8x128xf32>
    %c8_55 = arith.constant 8 : index
    %c128_56 = arith.constant 128 : index
    %176 = vector.load %arg5[%c8_55, %c128_56] : memref<64x256xf32, #tpu.memory_space<vmem>>, vector<8x128xf32>
    %177 = vector.extract_strided_slice %172 {offsets = [8, 128], sizes = [8, 128], strides = [1, 1]} : vector<16x256xf32> to vector<8x128xf32>
    %178 = arith.addf %176, %177 : vector<8x128xf32>
    %179 = tpu.concatenate %175, %178 in 0 : vector<8x128xf32>, vector<8x128xf32> -> vector<16x128xf32>
    %180 = vector.extract_strided_slice %179 {offsets = [0, 0], sizes = [16, 96], strides = [1, 1]} : vector<16x128xf32> to vector<16x96xf32>
    %181 = arith.negf %180 : vector<16x96xf32>
    %182 = math.exp %181 : vector<16x96xf32>
    %cst_57 = arith.constant 1.000000e+00 : f32
    %183 = vector.broadcast %cst_57 : f32 to vector<16x96xf32>
    %184 = arith.addf %183, %182 : vector<16x96xf32>
    %185 = arith.divf %183, %184 : vector<16x96xf32>
    %186 = vector.extract_strided_slice %185 {offsets = [0, 0], sizes = [16, 32], strides = [1, 1]} : vector<16x96xf32> to vector<16x32xf32>
    %187 = vector.extract_strided_slice %185 {offsets = [0, 32], sizes = [16, 32], strides = [1, 1]} : vector<16x96xf32> to vector<16x32xf32>
    %188 = vector.extract_strided_slice %185 {offsets = [0, 64], sizes = [16, 32], strides = [1, 1]} : vector<16x96xf32> to vector<16x32xf32>
    %189 = vector.extract_strided_slice %179 {offsets = [0, 96], sizes = [16, 32], strides = [1, 1]} : vector<16x128xf32> to vector<16x32xf32>
    %190 = math.tanh %189 : vector<16x32xf32>
    %191 = arith.mulf %187, %169 : vector<16x32xf32>
    %192 = arith.mulf %186, %190 : vector<16x32xf32>
    %193 = arith.addf %191, %192 : vector<16x32xf32>
    %194 = math.tanh %193 : vector<16x32xf32>
    %195 = arith.mulf %188, %194 : vector<16x32xf32>
    %cst_58 = arith.constant dense<0.000000e+00> : vector<16x256xf32>
    %196 = tpu.matmul %195, %25, %cst_58 {dimension_numbers = #tpu.dot_dimension_numbers<[1], [0], [0], [1], [0, 0, 1, 1], [], []>} : vector<16x32xf32>, vector<32x256xf32>, vector<16x256xf32> -> vector<16x256xf32>
    %c56_59 = arith.constant 56 : index
    %c0_60 = arith.constant 0 : index
    %197 = vector.load %arg5[%c56_59, %c0_60] : memref<64x256xf32, #tpu.memory_space<vmem>>, vector<8x128xf32>
    %198 = vector.extract_strided_slice %196 {offsets = [0, 0], sizes = [8, 128], strides = [1, 1]} : vector<16x256xf32> to vector<8x128xf32>
    %199 = arith.addf %197, %198 : vector<8x128xf32>
    %c0_61 = arith.constant 0 : index
    %c128_62 = arith.constant 128 : index
    %200 = vector.load %arg5[%c0_61, %c128_62] : memref<64x256xf32, #tpu.memory_space<vmem>>, vector<8x128xf32>
    %201 = vector.extract_strided_slice %196 {offsets = [8, 128], sizes = [8, 128], strides = [1, 1]} : vector<16x256xf32> to vector<8x128xf32>
    %202 = arith.addf %200, %201 : vector<8x128xf32>
    %203 = tpu.concatenate %199, %202 in 0 : vector<8x128xf32>, vector<8x128xf32> -> vector<16x128xf32>
    %204 = vector.extract_strided_slice %203 {offsets = [0, 0], sizes = [16, 96], strides = [1, 1]} : vector<16x128xf32> to vector<16x96xf32>
    %205 = arith.negf %204 : vector<16x96xf32>
    %206 = math.exp %205 : vector<16x96xf32>
    %cst_63 = arith.constant 1.000000e+00 : f32
    %207 = vector.broadcast %cst_63 : f32 to vector<16x96xf32>
    %208 = arith.addf %207, %206 : vector<16x96xf32>
    %209 = arith.divf %207, %208 : vector<16x96xf32>
    %210 = vector.extract_strided_slice %209 {offsets = [0, 0], sizes = [16, 32], strides = [1, 1]} : vector<16x96xf32> to vector<16x32xf32>
    %211 = vector.extract_strided_slice %209 {offsets = [0, 32], sizes = [16, 32], strides = [1, 1]} : vector<16x96xf32> to vector<16x32xf32>
    %212 = vector.extract_strided_slice %209 {offsets = [0, 64], sizes = [16, 32], strides = [1, 1]} : vector<16x96xf32> to vector<16x32xf32>
    %213 = vector.extract_strided_slice %203 {offsets = [0, 96], sizes = [16, 32], strides = [1, 1]} : vector<16x128xf32> to vector<16x32xf32>
    %214 = math.tanh %213 : vector<16x32xf32>
    %215 = arith.mulf %211, %193 : vector<16x32xf32>
    %216 = arith.mulf %210, %214 : vector<16x32xf32>
    %217 = arith.addf %215, %216 : vector<16x32xf32>
    %218 = math.tanh %217 : vector<16x32xf32>
    %219 = arith.mulf %212, %218 : vector<16x32xf32>
    %220 = vector.extract_strided_slice %219 {offsets = [0, 0], sizes = [8, 32], strides = [1, 1]} : vector<16x32xf32> to vector<8x32xf32>
    %221 = vector.extract_strided_slice %219 {offsets = [8, 0], sizes = [8, 32], strides = [1, 1]} : vector<16x32xf32> to vector<8x32xf32>
    %c160 = arith.constant 160 : index
    %c0_64 = arith.constant 0 : index
    %222 = vector.load %arg2[%c160, %c0_64] : memref<696x256xf32, #tpu.memory_space<vmem>>, vector<96x32xf32>
    %223 = vector.extract_strided_slice %222 {offsets = [0, 0], sizes = [32, 32], strides = [1, 1]} : vector<96x32xf32> to vector<32x32xf32>
    %cst_65 = arith.constant dense<0.000000e+00> : vector<8x32xf32>
    %224 = tpu.matmul %17, %223, %cst_65 {dimension_numbers = #tpu.dot_dimension_numbers<[1], [0], [0], [1], [0, 0, 1, 1], [], []>} : vector<8x32xf32>, vector<32x32xf32>, vector<8x32xf32> -> vector<8x32xf32>
    %225 = vector.extract_strided_slice %222 {offsets = [32, 0], sizes = [32, 32], strides = [1, 1]} : vector<96x32xf32> to vector<32x32xf32>
    %cst_66 = arith.constant dense<0.000000e+00> : vector<8x32xf32>
    %226 = tpu.matmul %220, %225, %cst_66 {dimension_numbers = #tpu.dot_dimension_numbers<[1], [0], [0], [1], [0, 0, 1, 1], [], []>} : vector<8x32xf32>, vector<32x32xf32>, vector<8x32xf32> -> vector<8x32xf32>
    %227 = arith.addf %224, %226 : vector<8x32xf32>
    %228 = vector.extract_strided_slice %222 {offsets = [64, 0], sizes = [32, 32], strides = [1, 1]} : vector<96x32xf32> to vector<32x32xf32>
    %cst_67 = arith.constant dense<0.000000e+00> : vector<8x32xf32>
    %229 = tpu.matmul %221, %228, %cst_67 {dimension_numbers = #tpu.dot_dimension_numbers<[1], [0], [0], [1], [0, 0, 1, 1], [], []>} : vector<8x32xf32>, vector<32x32xf32>, vector<8x32xf32> -> vector<8x32xf32>
    %230 = arith.addf %227, %229 : vector<8x32xf32>
    %c256 = arith.constant 256 : index
    %c0_68 = arith.constant 0 : index
    %231 = vector.load %arg2[%c256, %c0_68] : memref<696x256xf32, #tpu.memory_space<vmem>>, vector<1x32xf32>
    %232 = vector.broadcast %231 : vector<1x32xf32> to vector<8x32xf32>
    %233 = arith.addf %230, %232 : vector<8x32xf32>
    %cst_69 = arith.constant 0.000000e+00 : f32
    %234 = vector.broadcast %cst_69 : f32 to vector<8x32xf32>
    %235 = arith.maximumf %233, %234 : vector<8x32xf32>
    %c264 = arith.constant 264 : index
    %c0_70 = arith.constant 0 : index
    %236 = vector.load %arg2[%c264, %c0_70] : memref<696x256xf32, #tpu.memory_space<vmem>>, vector<32x16xf32>
    %cst_71 = arith.constant dense<0.000000e+00> : vector<8x16xf32>
    %237 = tpu.matmul %235, %236, %cst_71 {dimension_numbers = #tpu.dot_dimension_numbers<[1], [0], [0], [1], [0, 0, 1, 1], [], []>} : vector<8x32xf32>, vector<32x16xf32>, vector<8x16xf32> -> vector<8x16xf32>
    %c296 = arith.constant 296 : index
    %c0_72 = arith.constant 0 : index
    %238 = vector.load %arg2[%c296, %c0_72] : memref<696x256xf32, #tpu.memory_space<vmem>>, vector<1x16xf32>
    %239 = vector.broadcast %238 : vector<1x16xf32> to vector<8x16xf32>
    %240 = arith.addf %237, %239 : vector<8x16xf32>
    %cst_73 = arith.constant 0.000000e+00 : f32
    %241 = vector.broadcast %cst_73 : f32 to vector<8x16xf32>
    %242 = arith.maximumf %240, %241 : vector<8x16xf32>
    %c304 = arith.constant 304 : index
    %c0_74 = arith.constant 0 : index
    %243 = vector.load %arg2[%c304, %c0_74] : memref<696x256xf32, #tpu.memory_space<vmem>>, vector<16x128xf32>
    %cst_75 = arith.constant dense<0.000000e+00> : vector<8x128xf32>
    %244 = tpu.matmul %242, %243, %cst_75 {dimension_numbers = #tpu.dot_dimension_numbers<[1], [0], [0], [1], [0, 0, 1, 1], [], []>} : vector<8x16xf32>, vector<16x128xf32>, vector<8x128xf32> -> vector<8x128xf32>
    %c320 = arith.constant 320 : index
    %c0_76 = arith.constant 0 : index
    %245 = vector.load %arg2[%c320, %c0_76] : memref<696x256xf32, #tpu.memory_space<vmem>>, vector<1x128xf32>
    %246 = vector.broadcast %245 : vector<1x128xf32> to vector<8x128xf32>
    %247 = arith.addf %244, %246 : vector<8x128xf32>
    %c0_77 = arith.constant 0 : index
    %c0_78 = arith.constant 0 : index
    %248 = vector.load %arg3[%c0_77, %c0_78] : memref<8x128xf32, #tpu.memory_space<vmem>>, vector<8x128xf32>
    tpu.vector_store %arg3[%c0_77, %c0_78], %247 {strides = array<i32>} : memref<8x128xf32, #tpu.memory_space<vmem>>, vector<8x128xf32>,
    %cst_79 = arith.constant dense<0xFF800000> : vector<8xf32>
    %249 = vector.multi_reduction <maximumf>, %247, %cst_79 [1] : vector<8x128xf32> to vector<8xf32>
    %250 = vector.shape_cast %249 : vector<8xf32> to vector<8x1xf32>
    %251 = vector.broadcast %250 : vector<8x1xf32> to vector<8x128xf32>
    %252 = arith.subf %247, %251 : vector<8x128xf32>
    %253 = math.exp %252 : vector<8x128xf32>
    %cst_80 = arith.constant dense<0.000000e+00> : vector<8xf32>
    %254 = vector.multi_reduction <add>, %253, %cst_80 [1] : vector<8x128xf32> to vector<8xf32>
    %255 = vector.shape_cast %254 : vector<8xf32> to vector<8x1xf32>
    %256 = tpu.reciprocal %255 {approx = true} : vector<8x1xf32> -> vector<8x1xf32>
    %257 = vector.broadcast %256 : vector<8x1xf32> to vector<8x128xf32>
    %258 = arith.mulf %253, %257 : vector<8x128xf32>
    %c488 = arith.constant 488 : index
    %c0_81 = arith.constant 0 : index
    %259 = vector.load %arg2[%c488, %c0_81] : memref<696x256xf32, #tpu.memory_space<vmem>>, vector<128x128xf32>
    %cst_82 = arith.constant dense<0.000000e+00> : vector<8x128xf32>
    %260 = tpu.matmul %258, %259, %cst_82 {dimension_numbers = #tpu.dot_dimension_numbers<[1], [0], [0], [1], [0, 0, 1, 1], [], []>} : vector<8x128xf32>, vector<128x128xf32>, vector<8x128xf32> -> vector<8x128xf32>
    %c616 = arith.constant 616 : index
    %c0_83 = arith.constant 0 : index
    %261 = vector.load %arg2[%c616, %c0_83] : memref<696x256xf32, #tpu.memory_space<vmem>>, vector<32x128xf32>
    %cst_84 = arith.constant dense<0.000000e+00> : vector<8x128xf32>
    %262 = tpu.matmul %235, %261, %cst_84 {dimension_numbers = #tpu.dot_dimension_numbers<[1], [0], [0], [1], [0, 0, 1, 1], [], []>} : vector<8x32xf32>, vector<32x128xf32>, vector<8x128xf32> -> vector<8x128xf32>
    %263 = arith.addf %260, %262 : vector<8x128xf32>
    %c648 = arith.constant 648 : index
    %c0_85 = arith.constant 0 : index
    %264 = vector.load %arg2[%c648, %c0_85] : memref<696x256xf32, #tpu.memory_space<vmem>>, vector<1x128xf32>
    %265 = vector.broadcast %264 : vector<1x128xf32> to vector<8x128xf32>
    %266 = arith.addf %263, %265 : vector<8x128xf32>
    %c328 = arith.constant 328 : index
    %c0_86 = arith.constant 0 : index
    %267 = vector.load %arg2[%c328, %c0_86] : memref<696x256xf32, #tpu.memory_space<vmem>>, vector<160x128xf32>
    %c656 = arith.constant 656 : index
    %c0_87 = arith.constant 0 : index
    %268 = vector.load %arg2[%c656, %c0_87] : memref<696x256xf32, #tpu.memory_space<vmem>>, vector<32x128xf32>
    %c688 = arith.constant 688 : index
    %c0_88 = arith.constant 0 : index
    %269 = vector.load %arg2[%c688, %c0_88] : memref<696x256xf32, #tpu.memory_space<vmem>>, vector<1x128xf32>
    %270 = tpu.iota {dimensions = array<i32: 1>} : vector<8x128xi32>
    %c1_i32 = arith.constant 1 : i32
    %271 = vector.broadcast %c1_i32 : i32 to vector<8x128xi32>
    %272 = arith.cmpi eq, %270, %271 : vector<8x128xi32>
    %273 = arith.extui %272 : vector<8x128xi1> to vector<8x128xi32>
    %274 = arith.sitofp %273 : vector<8x128xi32> to vector<8x128xf32>
    %cst_89 = arith.constant 0.000000e+00 : f32
    %275 = vector.broadcast %cst_89 : f32 to vector<8x32xf32>
    %cst_90 = arith.constant 0.000000e+00 : f32
    %276 = vector.broadcast %cst_90 : f32 to vector<8x32xf32>
    %277 = tpu.concatenate %274, %275 in 1 : vector<8x128xf32>, vector<8x32xf32> -> vector<8x160xf32>
    %cst_91 = arith.constant dense<0.000000e+00> : vector<8x128xf32>
    %278 = tpu.matmul %277, %267, %cst_91 {dimension_numbers = #tpu.dot_dimension_numbers<[1], [0], [0], [1], [0, 0, 1, 1], [], []>} : vector<8x160xf32>, vector<160x128xf32>, vector<8x128xf32> -> vector<8x128xf32>
    %279 = arith.addf %278, %266 : vector<8x128xf32>
    %280 = vector.extract_strided_slice %279 {offsets = [0, 0], sizes = [8, 96], strides = [1, 1]} : vector<8x128xf32> to vector<8x96xf32>
    %281 = arith.negf %280 : vector<8x96xf32>
    %282 = math.exp %281 : vector<8x96xf32>
    %cst_92 = arith.constant 1.000000e+00 : f32
    %283 = vector.broadcast %cst_92 : f32 to vector<8x96xf32>
    %284 = arith.addf %283, %282 : vector<8x96xf32>
    %285 = arith.divf %283, %284 : vector<8x96xf32>
    %286 = vector.extract_strided_slice %285 {offsets = [0, 0], sizes = [8, 32], strides = [1, 1]} : vector<8x96xf32> to vector<8x32xf32>
    %287 = vector.extract_strided_slice %285 {offsets = [0, 32], sizes = [8, 32], strides = [1, 1]} : vector<8x96xf32> to vector<8x32xf32>
    %288 = vector.extract_strided_slice %285 {offsets = [0, 64], sizes = [8, 32], strides = [1, 1]} : vector<8x96xf32> to vector<8x32xf32>
    %289 = vector.extract_strided_slice %279 {offsets = [0, 96], sizes = [8, 32], strides = [1, 1]} : vector<8x128xf32> to vector<8x32xf32>
    %290 = math.tanh %289 : vector<8x32xf32>
    %291 = arith.mulf %287, %276 : vector<8x32xf32>
    %292 = arith.mulf %286, %290 : vector<8x32xf32>
    %293 = arith.addf %291, %292 : vector<8x32xf32>
    %294 = math.tanh %293 : vector<8x32xf32>
    %295 = arith.mulf %288, %294 : vector<8x32xf32>
    %cst_93 = arith.constant dense<0.000000e+00> : vector<8x128xf32>
    %296 = tpu.matmul %295, %268, %cst_93 {dimension_numbers = #tpu.dot_dimension_numbers<[1], [0], [0], [1], [0, 0, 1, 1], [], []>} : vector<8x32xf32>, vector<32x128xf32>, vector<8x128xf32> -> vector<8x128xf32>
    %297 = vector.broadcast %269 : vector<1x128xf32> to vector<8x128xf32>
    %298 = arith.addf %296, %297 : vector<8x128xf32>
    %c0_94 = arith.constant 0 : index
    %c0_95 = arith.constant 0 : index
    %c0_96 = arith.constant 0 : index
    %299 = vector.load %arg4[%c0_94, %c0_95, %c0_96] : memref<5x8x128xf32, #tpu.memory_space<vmem>>, vector<1x8x128xf32>
    %300 = vector.shape_cast %299 : vector<1x8x128xf32> to vector<8x128xf32>
    %301 = vector.shape_cast %298 : vector<8x128xf32> to vector<1x8x128xf32>
    tpu.vector_store %arg4[%c0_94, %c0_95, %c0_96], %301 {strides = array<i32>} : memref<5x8x128xf32, #tpu.memory_space<vmem>>, vector<1x8x128xf32>,
    %cst_97 = arith.constant dense<0xFF800000> : vector<8xf32>
    %302 = vector.multi_reduction <maximumf>, %298, %cst_97 [1] : vector<8x128xf32> to vector<8xf32>
    %303 = vector.shape_cast %302 : vector<8xf32> to vector<8x1xf32>
    %304 = vector.broadcast %303 : vector<8x1xf32> to vector<8x128xf32>
    %305 = arith.cmpf oeq, %298, %304 : vector<8x128xf32>
    %c128_i32 = arith.constant 128 : i32
    %306 = vector.broadcast %c128_i32 : i32 to vector<8x128xi32>
    %307 = arith.select %305, %270, %306 : vector<8x128xi1>, vector<8x128xi32>
    %cst_98 = arith.constant dense<2147483647> : vector<8xi32>
    %308 = vector.multi_reduction <minsi>, %307, %cst_98 [1] : vector<8x128xi32> to vector<8xi32>
    %309 = vector.shape_cast %308 : vector<8xi32> to vector<8x1xi32>
    %310 = vector.broadcast %309 : vector<8x1xi32> to vector<8x128xi32>
    %311 = arith.cmpi eq, %270, %310 : vector<8x128xi32>
    %312 = arith.extui %311 : vector<8x128xi1> to vector<8x128xi32>
    %313 = arith.sitofp %312 : vector<8x128xi32> to vector<8x128xf32>
    %314 = tpu.concatenate %313, %295 in 1 : vector<8x128xf32>, vector<8x32xf32> -> vector<8x160xf32>
    %cst_99 = arith.constant dense<0.000000e+00> : vector<8x128xf32>
    %315 = tpu.matmul %314, %267, %cst_99 {dimension_numbers = #tpu.dot_dimension_numbers<[1], [0], [0], [1], [0, 0, 1, 1], [], []>} : vector<8x160xf32>, vector<160x128xf32>, vector<8x128xf32> -> vector<8x128xf32>
    %316 = arith.addf %315, %266 : vector<8x128xf32>
    %317 = vector.extract_strided_slice %316 {offsets = [0, 0], sizes = [8, 96], strides = [1, 1]} : vector<8x128xf32> to vector<8x96xf32>
    %318 = arith.negf %317 : vector<8x96xf32>
    %319 = math.exp %318 : vector<8x96xf32>
    %cst_100 = arith.constant 1.000000e+00 : f32
    %320 = vector.broadcast %cst_100 : f32 to vector<8x96xf32>
    %321 = arith.addf %320, %319 : vector<8x96xf32>
    %322 = arith.divf %320, %321 : vector<8x96xf32>
    %323 = vector.extract_strided_slice %322 {offsets = [0, 0], sizes = [8, 32], strides = [1, 1]} : vector<8x96xf32> to vector<8x32xf32>
    %324 = vector.extract_strided_slice %322 {offsets = [0, 32], sizes = [8, 32], strides = [1, 1]} : vector<8x96xf32> to vector<8x32xf32>
    %325 = vector.extract_strided_slice %322 {offsets = [0, 64], sizes = [8, 32], strides = [1, 1]} : vector<8x96xf32> to vector<8x32xf32>
    %326 = vector.extract_strided_slice %316 {offsets = [0, 96], sizes = [8, 32], strides = [1, 1]} : vector<8x128xf32> to vector<8x32xf32>
    %327 = math.tanh %326 : vector<8x32xf32>
    %328 = arith.mulf %324, %293 : vector<8x32xf32>
    %329 = arith.mulf %323, %327 : vector<8x32xf32>
    %330 = arith.addf %328, %329 : vector<8x32xf32>
    %331 = math.tanh %330 : vector<8x32xf32>
    %332 = arith.mulf %325, %331 : vector<8x32xf32>
    %cst_101 = arith.constant dense<0.000000e+00> : vector<8x128xf32>
    %333 = tpu.matmul %332, %268, %cst_101 {dimension_numbers = #tpu.dot_dimension_numbers<[1], [0], [0], [1], [0, 0, 1, 1], [], []>} : vector<8x32xf32>, vector<32x128xf32>, vector<8x128xf32> -> vector<8x128xf32>
    %334 = vector.broadcast %269 : vector<1x128xf32> to vector<8x128xf32>
    %335 = arith.addf %333, %334 : vector<8x128xf32>
    %c1 = arith.constant 1 : index
    %c0_102 = arith.constant 0 : index
    %c0_103 = arith.constant 0 : index
    %336 = vector.load %arg4[%c1, %c0_102, %c0_103] : memref<5x8x128xf32, #tpu.memory_space<vmem>>, vector<1x8x128xf32>
    %337 = vector.shape_cast %336 : vector<1x8x128xf32> to vector<8x128xf32>
    %338 = vector.shape_cast %335 : vector<8x128xf32> to vector<1x8x128xf32>
    tpu.vector_store %arg4[%c1, %c0_102, %c0_103], %338 {strides = array<i32>} : memref<5x8x128xf32, #tpu.memory_space<vmem>>, vector<1x8x128xf32>,
    %cst_104 = arith.constant dense<0xFF800000> : vector<8xf32>
    %339 = vector.multi_reduction <maximumf>, %335, %cst_104 [1] : vector<8x128xf32> to vector<8xf32>
    %340 = vector.shape_cast %339 : vector<8xf32> to vector<8x1xf32>
    %341 = vector.broadcast %340 : vector<8x1xf32> to vector<8x128xf32>
    %342 = arith.cmpf oeq, %335, %341 : vector<8x128xf32>
    %c128_i32_105 = arith.constant 128 : i32
    %343 = vector.broadcast %c128_i32_105 : i32 to vector<8x128xi32>
    %344 = arith.select %342, %270, %343 : vector<8x128xi1>, vector<8x128xi32>
    %cst_106 = arith.constant dense<2147483647> : vector<8xi32>
    %345 = vector.multi_reduction <minsi>, %344, %cst_106 [1] : vector<8x128xi32> to vector<8xi32>
    %346 = vector.shape_cast %345 : vector<8xi32> to vector<8x1xi32>
    %347 = vector.broadcast %346 : vector<8x1xi32> to vector<8x128xi32>
    %348 = arith.cmpi eq, %270, %347 : vector<8x128xi32>
    %349 = arith.extui %348 : vector<8x128xi1> to vector<8x128xi32>
    %350 = arith.sitofp %349 : vector<8x128xi32> to vector<8x128xf32>
    %351 = tpu.concatenate %350, %332 in 1 : vector<8x128xf32>, vector<8x32xf32> -> vector<8x160xf32>
    %cst_107 = arith.constant dense<0.000000e+00> : vector<8x128xf32>
    %352 = tpu.matmul %351, %267, %cst_107 {dimension_numbers = #tpu.dot_dimension_numbers<[1], [0], [0], [1], [0, 0, 1, 1], [], []>} : vector<8x160xf32>, vector<160x128xf32>, vector<8x128xf32> -> vector<8x128xf32>
    %353 = arith.addf %352, %266 : vector<8x128xf32>
    %354 = vector.extract_strided_slice %353 {offsets = [0, 0], sizes = [8, 96], strides = [1, 1]} : vector<8x128xf32> to vector<8x96xf32>
    %355 = arith.negf %354 : vector<8x96xf32>
    %356 = math.exp %355 : vector<8x96xf32>
    %cst_108 = arith.constant 1.000000e+00 : f32
    %357 = vector.broadcast %cst_108 : f32 to vector<8x96xf32>
    %358 = arith.addf %357, %356 : vector<8x96xf32>
    %359 = arith.divf %357, %358 : vector<8x96xf32>
    %360 = vector.extract_strided_slice %359 {offsets = [0, 0], sizes = [8, 32], strides = [1, 1]} : vector<8x96xf32> to vector<8x32xf32>
    %361 = vector.extract_strided_slice %359 {offsets = [0, 32], sizes = [8, 32], strides = [1, 1]} : vector<8x96xf32> to vector<8x32xf32>
    %362 = vector.extract_strided_slice %359 {offsets = [0, 64], sizes = [8, 32], strides = [1, 1]} : vector<8x96xf32> to vector<8x32xf32>
    %363 = vector.extract_strided_slice %353 {offsets = [0, 96], sizes = [8, 32], strides = [1, 1]} : vector<8x128xf32> to vector<8x32xf32>
    %364 = math.tanh %363 : vector<8x32xf32>
    %365 = arith.mulf %361, %330 : vector<8x32xf32>
    %366 = arith.mulf %360, %364 : vector<8x32xf32>
    %367 = arith.addf %365, %366 : vector<8x32xf32>
    %368 = math.tanh %367 : vector<8x32xf32>
    %369 = arith.mulf %362, %368 : vector<8x32xf32>
    %cst_109 = arith.constant dense<0.000000e+00> : vector<8x128xf32>
    %370 = tpu.matmul %369, %268, %cst_109 {dimension_numbers = #tpu.dot_dimension_numbers<[1], [0], [0], [1], [0, 0, 1, 1], [], []>} : vector<8x32xf32>, vector<32x128xf32>, vector<8x128xf32> -> vector<8x128xf32>
    %371 = vector.broadcast %269 : vector<1x128xf32> to vector<8x128xf32>
    %372 = arith.addf %370, %371 : vector<8x128xf32>
    %c2 = arith.constant 2 : index
    %c0_110 = arith.constant 0 : index
    %c0_111 = arith.constant 0 : index
    %373 = vector.load %arg4[%c2, %c0_110, %c0_111] : memref<5x8x128xf32, #tpu.memory_space<vmem>>, vector<1x8x128xf32>
    %374 = vector.shape_cast %373 : vector<1x8x128xf32> to vector<8x128xf32>
    %375 = vector.shape_cast %372 : vector<8x128xf32> to vector<1x8x128xf32>
    tpu.vector_store %arg4[%c2, %c0_110, %c0_111], %375 {strides = array<i32>} : memref<5x8x128xf32, #tpu.memory_space<vmem>>, vector<1x8x128xf32>,
    %cst_112 = arith.constant dense<0xFF800000> : vector<8xf32>
    %376 = vector.multi_reduction <maximumf>, %372, %cst_112 [1] : vector<8x128xf32> to vector<8xf32>
    %377 = vector.shape_cast %376 : vector<8xf32> to vector<8x1xf32>
    %378 = vector.broadcast %377 : vector<8x1xf32> to vector<8x128xf32>
    %379 = arith.cmpf oeq, %372, %378 : vector<8x128xf32>
    %c128_i32_113 = arith.constant 128 : i32
    %380 = vector.broadcast %c128_i32_113 : i32 to vector<8x128xi32>
    %381 = arith.select %379, %270, %380 : vector<8x128xi1>, vector<8x128xi32>
    %cst_114 = arith.constant dense<2147483647> : vector<8xi32>
    %382 = vector.multi_reduction <minsi>, %381, %cst_114 [1] : vector<8x128xi32> to vector<8xi32>
    %383 = vector.shape_cast %382 : vector<8xi32> to vector<8x1xi32>
    %384 = vector.broadcast %383 : vector<8x1xi32> to vector<8x128xi32>
    %385 = arith.cmpi eq, %270, %384 : vector<8x128xi32>
    %386 = arith.extui %385 : vector<8x128xi1> to vector<8x128xi32>
    %387 = arith.sitofp %386 : vector<8x128xi32> to vector<8x128xf32>
    %388 = tpu.concatenate %387, %369 in 1 : vector<8x128xf32>, vector<8x32xf32> -> vector<8x160xf32>
    %cst_115 = arith.constant dense<0.000000e+00> : vector<8x128xf32>
    %389 = tpu.matmul %388, %267, %cst_115 {dimension_numbers = #tpu.dot_dimension_numbers<[1], [0], [0], [1], [0, 0, 1, 1], [], []>} : vector<8x160xf32>, vector<160x128xf32>, vector<8x128xf32> -> vector<8x128xf32>
    %390 = arith.addf %389, %266 : vector<8x128xf32>
    %391 = vector.extract_strided_slice %390 {offsets = [0, 0], sizes = [8, 96], strides = [1, 1]} : vector<8x128xf32> to vector<8x96xf32>
    %392 = arith.negf %391 : vector<8x96xf32>
    %393 = math.exp %392 : vector<8x96xf32>
    %cst_116 = arith.constant 1.000000e+00 : f32
    %394 = vector.broadcast %cst_116 : f32 to vector<8x96xf32>
    %395 = arith.addf %394, %393 : vector<8x96xf32>
    %396 = arith.divf %394, %395 : vector<8x96xf32>
    %397 = vector.extract_strided_slice %396 {offsets = [0, 0], sizes = [8, 32], strides = [1, 1]} : vector<8x96xf32> to vector<8x32xf32>
    %398 = vector.extract_strided_slice %396 {offsets = [0, 32], sizes = [8, 32], strides = [1, 1]} : vector<8x96xf32> to vector<8x32xf32>
    %399 = vector.extract_strided_slice %396 {offsets = [0, 64], sizes = [8, 32], strides = [1, 1]} : vector<8x96xf32> to vector<8x32xf32>
    %400 = vector.extract_strided_slice %390 {offsets = [0, 96], sizes = [8, 32], strides = [1, 1]} : vector<8x128xf32> to vector<8x32xf32>
    %401 = math.tanh %400 : vector<8x32xf32>
    %402 = arith.mulf %398, %367 : vector<8x32xf32>
    %403 = arith.mulf %397, %401 : vector<8x32xf32>
    %404 = arith.addf %402, %403 : vector<8x32xf32>
    %405 = math.tanh %404 : vector<8x32xf32>
    %406 = arith.mulf %399, %405 : vector<8x32xf32>
    %cst_117 = arith.constant dense<0.000000e+00> : vector<8x128xf32>
    %407 = tpu.matmul %406, %268, %cst_117 {dimension_numbers = #tpu.dot_dimension_numbers<[1], [0], [0], [1], [0, 0, 1, 1], [], []>} : vector<8x32xf32>, vector<32x128xf32>, vector<8x128xf32> -> vector<8x128xf32>
    %408 = vector.broadcast %269 : vector<1x128xf32> to vector<8x128xf32>
    %409 = arith.addf %407, %408 : vector<8x128xf32>
    %c3 = arith.constant 3 : index
    %c0_118 = arith.constant 0 : index
    %c0_119 = arith.constant 0 : index
    %410 = vector.load %arg4[%c3, %c0_118, %c0_119] : memref<5x8x128xf32, #tpu.memory_space<vmem>>, vector<1x8x128xf32>
    %411 = vector.shape_cast %410 : vector<1x8x128xf32> to vector<8x128xf32>
    %412 = vector.shape_cast %409 : vector<8x128xf32> to vector<1x8x128xf32>
    tpu.vector_store %arg4[%c3, %c0_118, %c0_119], %412 {strides = array<i32>} : memref<5x8x128xf32, #tpu.memory_space<vmem>>, vector<1x8x128xf32>,
    %cst_120 = arith.constant dense<0xFF800000> : vector<8xf32>
    %413 = vector.multi_reduction <maximumf>, %409, %cst_120 [1] : vector<8x128xf32> to vector<8xf32>
    %414 = vector.shape_cast %413 : vector<8xf32> to vector<8x1xf32>
    %415 = vector.broadcast %414 : vector<8x1xf32> to vector<8x128xf32>
    %416 = arith.cmpf oeq, %409, %415 : vector<8x128xf32>
    %c128_i32_121 = arith.constant 128 : i32
    %417 = vector.broadcast %c128_i32_121 : i32 to vector<8x128xi32>
    %418 = arith.select %416, %270, %417 : vector<8x128xi1>, vector<8x128xi32>
    %cst_122 = arith.constant dense<2147483647> : vector<8xi32>
    %419 = vector.multi_reduction <minsi>, %418, %cst_122 [1] : vector<8x128xi32> to vector<8xi32>
    %420 = vector.shape_cast %419 : vector<8xi32> to vector<8x1xi32>
    %421 = vector.broadcast %420 : vector<8x1xi32> to vector<8x128xi32>
    %422 = arith.cmpi eq, %270, %421 : vector<8x128xi32>
    %423 = arith.extui %422 : vector<8x128xi1> to vector<8x128xi32>
    %424 = arith.sitofp %423 : vector<8x128xi32> to vector<8x128xf32>
    %425 = tpu.concatenate %424, %406 in 1 : vector<8x128xf32>, vector<8x32xf32> -> vector<8x160xf32>
    %cst_123 = arith.constant dense<0.000000e+00> : vector<8x128xf32>
    %426 = tpu.matmul %425, %267, %cst_123 {dimension_numbers = #tpu.dot_dimension_numbers<[1], [0], [0], [1], [0, 0, 1, 1], [], []>} : vector<8x160xf32>, vector<160x128xf32>, vector<8x128xf32> -> vector<8x128xf32>
    %427 = arith.addf %426, %266 : vector<8x128xf32>
    %428 = vector.extract_strided_slice %427 {offsets = [0, 0], sizes = [8, 96], strides = [1, 1]} : vector<8x128xf32> to vector<8x96xf32>
    %429 = arith.negf %428 : vector<8x96xf32>
    %430 = math.exp %429 : vector<8x96xf32>
    %cst_124 = arith.constant 1.000000e+00 : f32
    %431 = vector.broadcast %cst_124 : f32 to vector<8x96xf32>
    %432 = arith.addf %431, %430 : vector<8x96xf32>
    %433 = arith.divf %431, %432 : vector<8x96xf32>
    %434 = vector.extract_strided_slice %433 {offsets = [0, 0], sizes = [8, 32], strides = [1, 1]} : vector<8x96xf32> to vector<8x32xf32>
    %435 = vector.extract_strided_slice %433 {offsets = [0, 32], sizes = [8, 32], strides = [1, 1]} : vector<8x96xf32> to vector<8x32xf32>
    %436 = vector.extract_strided_slice %433 {offsets = [0, 64], sizes = [8, 32], strides = [1, 1]} : vector<8x96xf32> to vector<8x32xf32>
    %437 = vector.extract_strided_slice %427 {offsets = [0, 96], sizes = [8, 32], strides = [1, 1]} : vector<8x128xf32> to vector<8x32xf32>
    %438 = math.tanh %437 : vector<8x32xf32>
    %439 = arith.mulf %435, %404 : vector<8x32xf32>
    %440 = arith.mulf %434, %438 : vector<8x32xf32>
    %441 = arith.addf %439, %440 : vector<8x32xf32>
    %442 = math.tanh %441 : vector<8x32xf32>
    %443 = arith.mulf %436, %442 : vector<8x32xf32>
    %cst_125 = arith.constant dense<0.000000e+00> : vector<8x128xf32>
    %444 = tpu.matmul %443, %268, %cst_125 {dimension_numbers = #tpu.dot_dimension_numbers<[1], [0], [0], [1], [0, 0, 1, 1], [], []>} : vector<8x32xf32>, vector<32x128xf32>, vector<8x128xf32> -> vector<8x128xf32>
    %445 = vector.broadcast %269 : vector<1x128xf32> to vector<8x128xf32>
    %446 = arith.addf %444, %445 : vector<8x128xf32>
    %c4 = arith.constant 4 : index
    %c0_126 = arith.constant 0 : index
    %c0_127 = arith.constant 0 : index
    %447 = vector.load %arg4[%c4, %c0_126, %c0_127] : memref<5x8x128xf32, #tpu.memory_space<vmem>>, vector<1x8x128xf32>
    %448 = vector.shape_cast %447 : vector<1x8x128xf32> to vector<8x128xf32>
    %449 = vector.shape_cast %446 : vector<8x128xf32> to vector<1x8x128xf32>
    tpu.vector_store %arg4[%c4, %c0_126, %c0_127], %449 {strides = array<i32>} : memref<5x8x128xf32, #tpu.memory_space<vmem>>, vector<1x8x128xf32>,
    return
  }
}

</mosaic_0001>

<llo_original>
// kernel: vivqax_forward.1
$region0: #{vivqax_forward.1}
  #allocation0 [shape = 'u32[]', space=smem, size = 0x4, offset = 0x4, fixed_abs, tag = 'smem constant byte address 0x4 - core index']
  #allocation1 [shape = 'u32[144,128]{1,0:T(1,128)}', space=vmem, size = 0x12000, scoped, tag = 'internal scratch']
  #allocation2 [shape = 'f32[64,256]{1,0:T(8,128)}', space=vmem, size = 0x10000, scoped, tag = 'scratch operand']
  %s0 = inlined_call_operand.vmem [shape: f32[8,3,256], index: 0, kind: input, shape index: {}]
  %s1 = inlined_call_operand.vmem [shape: f32[64,32], index: 1, kind: input, shape index: {}]
  %s2 = inlined_call_operand.vmem [shape: f32[696,256], index: 2, kind: input, shape index: {}]
  %s3 = inlined_call_operand.vmem [shape: f32[8,128], index: 3, kind: output, shape index: {0}]
  %s4 = inlined_call_operand.vmem [shape: f32[5,8,128], index: 4, kind: output, shape index: {1}]
  %5 = xla_tuple %s3, %s4
  %s6 = sld [smem:[#allocation0]]
  $region30: #{vivqax_forward.1} parent=0
    _
  %s8 = ssub.s32 1, %s6
  %s9 = scalar_select 0, %s8, %s6
  // Predicated region
  $region2: #{vivqax_forward.1} parent=0 // pred_check
    _
  $region3: #{vivqax_forward.1} parent=0 // pred_check_branch
    %11 = sbr.rel (0) target = $region5
  $region4: #{vivqax_forward.1} parent=0 // pred_region
    _
  $region5: #{vivqax_forward.1} parent=0 // pred_fallthru
    _
  // Predicated region
  $region6: #{vivqax_forward.1} parent=0 // pred_check
    _
  $region7: #{vivqax_forward.1} parent=0 // pred_check_branch
    %13 = sbr.rel (0) target = $region9
  $region8: #{vivqax_forward.1} parent=0 // pred_region
    _
  $region9: #{vivqax_forward.1} parent=0 // pred_fallthru
    _
  // Predicated region
  $region10: #{vivqax_forward.1} parent=0 // pred_check
    _
  $region11: #{vivqax_forward.1} parent=0 // pred_check_branch
    %15 = sbr.rel (0) target = $region13
  $region12: #{vivqax_forward.1} parent=0 // pred_region
    _
  $region13: #{vivqax_forward.1} parent=0 // pred_fallthru
    _
  %v16 = vld [vmem:[%s0] sm:$0x77]
  %v17 = vld [vmem:[%s0 + $0x8] sm:$0x77]
  %v18 = vld [vmem:[%s0 + $0x10] sm:$0x77]
  %v19 = vld [vmem:[%s0 + $0x18] sm:$0x77]
  %v20 = vld [vmem:[%s0 + $0x20] sm:$0x77]
  %v21 = vld [vmem:[%s0 + $0x28] sm:$0x77]
  %v22 = vld [vmem:[%s0 + $0x30] sm:$0x77]
  %v23 = vld [vmem:[%s0 + $0x38] sm:$0x77]
  %v32 = vcombine.high %v16, %v16
  %v33 = vcombine.high %v17, %v17
  %v34 = vcombine.high %v18, %v18
  %v35 = vcombine.high %v19, %v19
  %v36 = vcombine.high %v20, %v20
  %v37 = vcombine.high %v21, %v21
  %v38 = vcombine.high %v22, %v22
  %v39 = vcombine.high %v23, %v23
  %vm48 = vcmask 1042432
  %v49 = vsel %vm48, %v16, 0.0
  %v50 = vsel %vm48, %v32, 0.0
  %v51 = vadd.f32 %v49, %v50
  %52 = vadd.xlane.f32.xlu0 %v51
  %v53 = vpop.xlane.xlu0 %52
  %v54 = vsel %vm48, %v17, 0.0
  %v55 = vsel %vm48, %v33, 0.0
  %v56 = vadd.f32 %v54, %v55
  %57 = vadd.xlane.f32.xlu0 %v56
  %v58 = vpop.xlane.xlu0 %57
  %v59 = vsel %vm48, %v18, 0.0
  %v60 = vsel %vm48, %v34, 0.0
  %v61 = vadd.f32 %v59, %v60
  %62 = vadd.xlane.f32.xlu0 %v61
  %v63 = vpop.xlane.xlu0 %62
  %v64 = vsel %vm48, %v19, 0.0
  %v65 = vsel %vm48, %v35, 0.0
  %v66 = vadd.f32 %v64, %v65
  %67 = vadd.xlane.f32.xlu0 %v66
  %v68 = vpop.xlane.xlu0 %67
  %v69 = vsel %vm48, %v20, 0.0
  %v70 = vsel %vm48, %v36, 0.0
  %v71 = vadd.f32 %v69, %v70
  %72 = vadd.xlane.f32.xlu0 %v71
  %v73 = vpop.xlane.xlu0 %72
  %v74 = vsel %vm48, %v21, 0.0
  %v75 = vsel %vm48, %v37, 0.0
  %v76 = vadd.f32 %v74, %v75
  %77 = vadd.xlane.f32.xlu0 %v76
  %v78 = vpop.xlane.xlu0 %77
  %v79 = vsel %vm48, %v22, 0.0
  %v80 = vsel %vm48, %v38, 0.0
  %v81 = vadd.f32 %v79, %v80
  %82 = vadd.xlane.f32.xlu0 %v81
  %v83 = vpop.xlane.xlu0 %82
  %v84 = vsel %vm48, %v23, 0.0
  %v85 = vsel %vm48, %v39, 0.0
  %v86 = vadd.f32 %v84, %v85
  %87 = vadd.xlane.f32.xlu0 %v86
  %v88 = vpop.xlane.xlu0 %87
  %v89 = vrcp.pop 256.0
  %v90 = vmul.f32 %v53, %v89
  %v91 = vmul.f32 %v58, %v89
  %v92 = vmul.f32 %v63, %v89
  %v93 = vmul.f32 %v68, %v89
  %v94 = vmul.f32 %v73, %v89
  %v95 = vmul.f32 %v78, %v89
  %v96 = vmul.f32 %v83, %v89
  %v97 = vmul.f32 %v88, %v89
  %v98 = vld [vmem:[%s2] sm:$0x7]
  %v99 = vld [vmem:[%s2 + $0x10] ss:$0 sm:$0xff]
  %v108 = vlaneseq
  %v109 = vand.u32 %v108, 127
  %v110 = vlaneseq
  %v111 = vshrl.u32 %v110, 7
  %v112 = vsub.s32 %v109, %v111
  %v113 = vrot.slane %v90, %v112
  %v114 = vlaneseq
  %v115 = vshrl.u32 %v114, 7
  %v116 = vsub.s32 %v109, %v115
  %v117 = vrot.slane %v91, %v116
  %v118 = vlaneseq
  %v119 = vshrl.u32 %v118, 7
  %v120 = vsub.s32 %v109, %v119
  %v121 = vrot.slane %v92, %v120
  %v122 = vlaneseq
  %v123 = vshrl.u32 %v122, 7
  %v124 = vsub.s32 %v109, %v123
  %v125 = vrot.slane %v93, %v124
  %v126 = vlaneseq
  %v127 = vshrl.u32 %v126, 7
  %v128 = vsub.s32 %v109, %v127
  %v129 = vrot.slane %v94, %v128
  %v130 = vlaneseq
  %v131 = vshrl.u32 %v130, 7
  %v132 = vsub.s32 %v109, %v131
  %v133 = vrot.slane %v95, %v132
  %v134 = vlaneseq
  %v135 = vshrl.u32 %v134, 7
  %v136 = vsub.s32 %v109, %v135
  %v137 = vrot.slane %v96, %v136
  %v138 = vlaneseq
  %v139 = vshrl.u32 %v138, 7
  %v140 = vsub.s32 %v109, %v139
  %v141 = vrot.slane %v97, %v140
  %vm142 = vcmask 1041409
  %v143 = vsel %vm142, %v117, %v113
  %vm144 = vcmask 1042434
  %v145 = vsel %vm144, %v121, %v143
  %vm146 = vcmask 1043459
  %v147 = vsel %vm146, %v125, %v145
  %vm148 = vcmask 1044484
  %v149 = vsel %vm148, %v129, %v147
  %vm150 = vcmask 1045509
  %v151 = vsel %vm150, %v133, %v149
  %vm152 = vcmask 1046534
  %v153 = vsel %vm152, %v137, %v151
  %vm154 = vcmask 1047559
  %v155 = vsel %vm154, %v141, %v153
  %vm156 = vcmask 23552
  %v157 = vsel %vm156, %v155, 0
  %v160 = vsel %vm48, %v98, 0
  %162 = vmatprep.subr.mxu0 0.0
  %163 = vmatpush1.msra.mxu0 0.0
  %164 = vmatprep.subr.mxu0 0.0
  %165 = vmatpush1.msra.mxu0 0.0
  %166 = vmatprep.subr.mxu0 0.0
  %167 = vmatpush1.msra.mxu0 0.0
  %168 = vmatprep.subr.mxu0 0.0
  %169 = vmatpush1.msra.mxu0 0.0
  %170 = vmatprep.subr.mxu0 0.0
  %171 = vmatpush1.msra.mxu0 0.0
  %172 = vmatprep.subr.mxu0 0.0
  %173 = vmatpush1.msra.mxu0 0.0
  %174 = vmatprep.subr.mxu0 0.0
  %175 = vmatpush1.msra.mxu0 0.0
  %176 = vmatprep.subr.mxu0 0.0
  %177 = vmatpush1.msra.mxu0 0.0
  %178 = vmatprep.subr.mxu0 0.0
  %179 = vmatpush1.msra.mxu0 0.0
  %180 = vmatprep.subr.mxu0 0.0
  %181 = vmatpush1.msra.mxu0 0.0
  %182 = vmatprep.subr.mxu0 0.0
  %183 = vmatpush1.msra.mxu0 0.0
  %184 = vmatprep.subr.mxu0 0.0
  %185 = vmatpush1.msra.mxu0 0.0
  %186 = vmatprep.subr.mxu0 0.0
  %187 = vmatpush1.msra.mxu0 0.0
  %188 = vmatprep.subr.mxu0 0.0
  %189 = vmatpush1.msra.mxu0 0.0
  %190 = vmatprep.subr.mxu0 0.0
  %191 = vmatpush1.msra.mxu0 0.0
  %192 = vmatprep.subr.mxu0 0.0
  %193 = vmatpush1.msra.mxu0 %v160
  %194 = vmatprep.subr.mxu0 0.0
  %195 = vmatpush2.msra.mxu0 0.0
  %196 = vmatprep.subr.mxu0 0.0
  %197 = vmatpush2.msra.mxu0 0.0
  %198 = vmatprep.subr.mxu0 0.0
  %199 = vmatpush2.msra.mxu0 0.0
  %200 = vmatprep.subr.mxu0 0.0
  %201 = vmatpush2.msra.mxu0 0.0
  %202 = vmatprep.subr.mxu0 0.0
  %203 = vmatpush2.msra.mxu0 0.0
  %204 = vmatprep.subr.mxu0 0.0
  %205 = vmatpush2.msra.mxu0 0.0
  %206 = vmatprep.subr.mxu0 0.0
  %207 = vmatpush2.msra.mxu0 0.0
  %208 = vmatprep.subr.mxu0 0.0
  %209 = vmatpush2.msra.mxu0 0.0
  %210 = vmatprep.subr.mxu0 0.0
  %211 = vmatpush2.msra.mxu0 0.0
  %212 = vmatprep.subr.mxu0 0.0
  %213 = vmatpush2.msra.mxu0 0.0
  %214 = vmatprep.subr.mxu0 0.0
  %215 = vmatpush2.msra.mxu0 0.0
  %216 = vmatprep.subr.mxu0 0.0
  %217 = vmatpush2.msra.mxu0 0.0
  %218 = vmatprep.subr.mxu0 0.0
  %219 = vmatpush2.msra.mxu0 0.0
  %220 = vmatprep.subr.mxu0 0.0
  %221 = vmatpush2.msra.mxu0 0.0
  %222 = vmatprep.subr.mxu0 0.0
  %223 = vmatpush2.msra.mxu0 0.0
  %224 = vmatprep.subr.mxu0 0.0
  %225 = vmatpush2.msra.mxu0 0.0
  %226 = vmatprep.mubr.f32.mxu0 0.0
  %227 = vmatmul.mubr.f32.gmra.mxu0 %v157
  %v228 = vpop.f32.mrf.mxu0
  %v229 = vadd.f32 %v99, %v228
  %v230 = vpop.f32.mrf.mxu0
  %231 = vdwg.mxu0
  %v232 = vmax.f32 %v229, 0.0
  %v233 = vld [vmem:[%s2 + $0x20] sm:$0xff]
  %v234 = vld [vmem:[%s2 + $0x30] sm:$0xff]
  %v235 = vld [vmem:[%s2 + $0x40] sm:$0xff]
  %v236 = vld [vmem:[%s2 + $0x50] sm:$0xff]
  %v237 = vld [vmem:[%s2 + $0x60] sm:$0xff]
  %v238 = vld [vmem:[%s2 + $0x70] sm:$0xff]
  %v239 = vld [vmem:[%s2 + $0x80] sm:$0xff]
  %v240 = vld [vmem:[%s2 + $0x90] sm:$0xff]
  %v241 = vld [vmem:[%s2 + $0xa0] ss:$0 sm:$0xff]
  %vm242 = vcmask 523264
  %v244 = vsel %vm242, %v232, 0
  %246 = vmatprep.subr.mxu0 0.0
  %247 = vmatpush1.msra.mxu0 0.0
  %248 = vmatprep.subr.mxu0 0.0
  %249 = vmatpush1.msra.mxu0 0.0
  %250 = vmatprep.subr.mxu0 0.0
  %251 = vmatpush1.msra.mxu0 0.0
  %252 = vmatprep.subr.mxu0 0.0
  %253 = vmatpush1.msra.mxu0 0.0
  %254 = vmatprep.subr.mxu0 0.0
  %255 = vmatpush1.msra.mxu0 0.0
  %256 = vmatprep.subr.mxu0 0.0
  %257 = vmatpush1.msra.mxu0 0.0
  %258 = vmatprep.subr.mxu0 0.0
  %259 = vmatpush1.msra.mxu0 0.0
  %260 = vmatprep.subr.mxu0 0.0
  %261 = vmatpush1.msra.mxu0 0.0
  %262 = vmatprep.subr.mxu0 0.0
  %263 = vmatpush1.msra.mxu0 %v240
  %264 = vmatprep.subr.mxu0 0.0
  %265 = vmatpush1.msra.mxu0 %v239
  %266 = vmatprep.subr.mxu0 0.0
  %267 = vmatpush1.msra.mxu0 %v238
  %268 = vmatprep.subr.mxu0 0.0
  %269 = vmatpush1.msra.mxu0 %v237
  %270 = vmatprep.subr.mxu0 0.0
  %271 = vmatpush1.msra.mxu0 %v236
  %272 = vmatprep.subr.mxu0 0.0
  %273 = vmatpush1.msra.mxu0 %v235
  %274 = vmatprep.subr.mxu0 0.0
  %275 = vmatpush1.msra.mxu0 %v234
  %276 = vmatprep.subr.mxu0 0.0
  %277 = vmatpush1.msra.mxu0 %v233
  %278 = vmatprep.subr.mxu0 0.0
  %279 = vmatpush2.msra.mxu0 0.0
  %280 = vmatprep.subr.mxu0 0.0
  %281 = vmatpush2.msra.mxu0 0.0
  %282 = vmatprep.subr.mxu0 0.0
  %283 = vmatpush2.msra.mxu0 0.0
  %284 = vmatprep.subr.mxu0 0.0
  %285 = vmatpush2.msra.mxu0 0.0
  %286 = vmatprep.subr.mxu0 0.0
  %287 = vmatpush2.msra.mxu0 0.0
  %288 = vmatprep.subr.mxu0 0.0
  %289 = vmatpush2.msra.mxu0 0.0
  %290 = vmatprep.subr.mxu0 0.0
  %291 = vmatpush2.msra.mxu0 0.0
  %292 = vmatprep.subr.mxu0 0.0
  %293 = vmatpush2.msra.mxu0 0.0
  %294 = vmatprep.subr.mxu0 0.0
  %295 = vmatpush2.msra.mxu0 0.0
  %296 = vmatprep.subr.mxu0 0.0
  %297 = vmatpush2.msra.mxu0 0.0
  %298 = vmatprep.subr.mxu0 0.0
  %299 = vmatpush2.msra.mxu0 0.0
  %300 = vmatprep.subr.mxu0 0.0
  %301 = vmatpush2.msra.mxu0 0.0
  %302 = vmatprep.subr.mxu0 0.0
  %303 = vmatpush2.msra.mxu0 0.0
  %304 = vmatprep.subr.mxu0 0.0
  %305 = vmatpush2.msra.mxu0 0.0
  %306 = vmatprep.subr.mxu0 0.0
  %307 = vmatpush2.msra.mxu0 0.0
  %308 = vmatprep.subr.mxu0 0.0
  %309 = vmatpush2.msra.mxu0 0.0
  %310 = vmatprep.mubr.f32.mxu0 0.0
  %311 = vmatmul.mubr.f32.gmra.mxu0 %v244
  %v312 = vpop.f32.mrf.mxu0
  %v313 = vadd.f32 %v241, %v312
  %v314 = vpop.f32.mrf.mxu0
  %315 = vdwg.mxu0
  %v316 = vmax.f32 %v313, 0.0
  %v317 = vld [vmem:[%s1] sm:$0xff]
  %v318 = vld [vmem:[%s1 + $0x8] sm:$0xff]
  %v319 = vld [vmem:[%s1 + $0x10] sm:$0xff]
  %v320 = vld [vmem:[%s1 + $0x18] sm:$0xff]
  %v321 = vld [vmem:[%s1 + $0x20] sm:$0xff]
  %v322 = vld [vmem:[%s1 + $0x28] sm:$0xff]
  %v323 = vld [vmem:[%s1 + $0x30] sm:$0xff]
  %v324 = vld [vmem:[%s1 + $0x38] sm:$0xff]
  %v325 = vld [vmem:[%s2 + $0xb0] sm:$0xff]
  %v326 = vld [vmem:[%s2 + $0xb8] sm:$0xff]
  %v327 = vld [vmem:[%s2 + $0xc0] sm:$0xff]
  %v328 = vld [vmem:[%s2 + $0xc8] sm:$0xff]
  %v329 = vld [vmem:[%s2 + $0xd0] sm:$0xff]
  %v330 = vld [vmem:[%s2 + $0xd8] sm:$0xff]
  %v331 = vld [vmem:[%s2 + $0xe0] sm:$0xff]
  %v332 = vld [vmem:[%s2 + $0xe8] sm:$0xff]
  %s333 = scalar_lea.vmem %s2, 304
  %v334 = vld [vmem:[%s333] ss:$8 sm:$0x3]
  %v336 = vlaneseq
  %v337 = vshrl.u32 %v336, 7
  %v338 = vsub.s32 0, %v337
  %v339 = vrot.slane %v334, %v338
  %v340 = vlaneseq
  %v341 = vshrl.u32 %v340, 7
  %v342 = vsub.s32 1, %v341
  %v343 = vrot.slane %v334, %v342
  %vm346 = vcmask 261120
  %v348 = vsel %vm346, %v317, 0
  %v351 = vsel %vm346, %v318, 0
  %v354 = vsel %vm346, %v319, 0
  %v357 = vsel %vm346, %v320, 0
  %v360 = vsel %vm346, %v321, 0
  %v363 = vsel %vm346, %v322, 0
  %v366 = vsel %vm346, %v323, 0
  %v369 = vsel %vm346, %v324, 0
  %371 = vmatprep.subr.mxu0 0.0
  %372 = vmatpush1.msra.mxu0 0.0
  %373 = vmatprep.subr.mxu0 0.0
  %374 = vmatpush1.msra.mxu0 0.0
  %375 = vmatprep.subr.mxu0 0.0
  %376 = vmatpush1.msra.mxu0 0.0
  %377 = vmatprep.subr.mxu0 0.0
  %378 = vmatpush1.msra.mxu0 0.0
  %379 = vmatprep.subr.mxu0 0.0
  %380 = vmatpush1.msra.mxu0 0.0
  %381 = vmatprep.subr.mxu0 0.0
  %382 = vmatpush1.msra.mxu0 0.0
  %383 = vmatprep.subr.mxu0 0.0
  %384 = vmatpush1.msra.mxu0 0.0
  %385 = vmatprep.subr.mxu0 0.0
  %386 = vmatpush1.msra.mxu0 0.0
  %387 = vmatprep.subr.mxu0 0.0
  %388 = vmatpush1.msra.mxu0 0.0
  %389 = vmatprep.subr.mxu0 0.0
  %390 = vmatpush1.msra.mxu0 0.0
  %391 = vmatprep.subr.mxu0 0.0
  %392 = vmatpush1.msra.mxu0 0.0
  %393 = vmatprep.subr.mxu0 0.0
  %394 = vmatpush1.msra.mxu0 0.0
  %395 = vmatprep.subr.mxu0 %v332
  %396 = vmatpush1.msra.mxu0 %v331
  %397 = vmatprep.subr.mxu0 %v330
  %398 = vmatpush1.msra.mxu0 %v329
  %399 = vmatprep.subr.mxu0 %v328
  %400 = vmatpush1.msra.mxu0 %v327
  %401 = vmatprep.subr.mxu0 %v326
  %402 = vmatpush1.msra.mxu0 %v325
  %403 = vmatprep.subr.mxu0 0.0
  %404 = vmatpush2.msra.mxu0 0.0
  %405 = vmatprep.subr.mxu0 0.0
  %406 = vmatpush2.msra.mxu0 0.0
  %407 = vmatprep.subr.mxu0 0.0
  %408 = vmatpush2.msra.mxu0 0.0
  %409 = vmatprep.subr.mxu0 0.0
  %410 = vmatpush2.msra.mxu0 0.0
  %411 = vmatprep.subr.mxu0 0.0
  %412 = vmatpush2.msra.mxu0 0.0
  %413 = vmatprep.subr.mxu0 0.0
  %414 = vmatpush2.msra.mxu0 0.0
  %415 = vmatprep.subr.mxu0 0.0
  %416 = vmatpush2.msra.mxu0 0.0
  %417 = vmatprep.subr.mxu0 0.0
  %418 = vmatpush2.msra.mxu0 0.0
  %419 = vmatprep.subr.mxu0 0.0
  %420 = vmatpush2.msra.mxu0 0.0
  %421 = vmatprep.subr.mxu0 0.0
  %422 = vmatpush2.msra.mxu0 0.0
  %423 = vmatprep.subr.mxu0 0.0
  %424 = vmatpush2.msra.mxu0 0.0
  %425 = vmatprep.subr.mxu0 0.0
  %426 = vmatpush2.msra.mxu0 0.0
  %427 = vmatprep.subr.mxu0 0.0
  %428 = vmatpush2.msra.mxu0 0.0
  %429 = vmatprep.subr.mxu0 0.0
  %430 = vmatpush2.msra.mxu0 0.0
  %431 = vmatprep.subr.mxu0 0.0
  %432 = vmatpush2.msra.mxu0 0.0
  %433 = vmatprep.subr.mxu0 0.0
  %434 = vmatpush2.msra.mxu0 0.0
  %435 = vmatprep.mubr.f32.mxu0 0.0
  %436 = vmatmul.mubr.f32.gmra.mxu0 %v348
  %v437 = vpop.f32.mrf.mxu0
  %v438 = vadd.f32 %v339, %v437
  %v439 = vpop.f32.mrf.mxu0
  %v440 = vadd.f32 %v343, %v439
  %441 = vmatprep.mubr.f32.mxu0 0.0
  %442 = vmatmul.mubr.f32.gmra.mxu0 %v351
  %v443 = vpop.f32.mrf.mxu0
  %v444 = vadd.f32 %v339, %v443
  %v445 = vpop.f32.mrf.mxu0
  %v446 = vadd.f32 %v343, %v445
  %447 = vmatprep.mubr.f32.mxu0 0.0
  %448 = vmatmul.mubr.f32.gmra.mxu0 %v354
  %v449 = vpop.f32.mrf.mxu0
  %v450 = vadd.f32 %v339, %v449
  %v451 = vpop.f32.mrf.mxu0
  %v452 = vadd.f32 %v343, %v451
  %453 = vmatprep.mubr.f32.mxu0 0.0
  %454 = vmatmul.mubr.f32.gmra.mxu0 %v357
  %v455 = vpop.f32.mrf.mxu0
  %v456 = vadd.f32 %v339, %v455
  %v457 = vpop.f32.mrf.mxu0
  %v458 = vadd.f32 %v343, %v457
  %459 = vmatprep.mubr.f32.mxu0 0.0
  %460 = vmatmul.mubr.f32.gmra.mxu0 %v360
  %v461 = vpop.f32.mrf.mxu0
  %v462 = vadd.f32 %v339, %v461
  %v463 = vpop.f32.mrf.mxu0
  %v464 = vadd.f32 %v343, %v463
  %465 = vmatprep.mubr.f32.mxu0 0.0
  %466 = vmatmul.mubr.f32.gmra.mxu0 %v363
  %v467 = vpop.f32.mrf.mxu0
  %v468 = vadd.f32 %v339, %v467
  %v469 = vpop.f32.mrf.mxu0
  %v470 = vadd.f32 %v343, %v469
  %471 = vmatprep.mubr.f32.mxu0 0.0
  %472 = vmatmul.mubr.f32.gmra.mxu0 %v366
  %v473 = vpop.f32.mrf.mxu0
  %v474 = vadd.f32 %v339, %v473
  %v475 = vpop.f32.mrf.mxu0
  %v476 = vadd.f32 %v343, %v475
  %477 = vmatprep.mubr.f32.mxu0 0.0
  %478 = vmatmul.mubr.f32.gmra.mxu0 %v369
  %v479 = vpop.f32.mrf.mxu0
  %v480 = vadd.f32 %v339, %v479
  %v481 = vpop.f32.mrf.mxu0
  %v482 = vadd.f32 %v343, %v481
  %483 = vdwg.mxu0
  %484 = vst [vmem:[#allocation2] sm:$0xff] %v438
  %485 = vst [vmem:[#allocation2 + $0x8] sm:$0xff] %v440
  %486 = vst [vmem:[#allocation2 + $0x10] sm:$0xff] %v444
  %487 = vst [vmem:[#allocation2 + $0x18] sm:$0xff] %v446
  %488 = vst [vmem:[#allocation2 + $0x20] sm:$0xff] %v450
  %489 = vst [vmem:[#allocation2 + $0x28] sm:$0xff] %v452
  %490 = vst [vmem:[#allocation2 + $0x30] sm:$0xff] %v456
  %491 = vst [vmem:[#allocation2 + $0x38] sm:$0xff] %v458
  %492 = vst [vmem:[#allocation2 + $0x40] sm:$0xff] %v462
  %493 = vst [vmem:[#allocation2 + $0x48] sm:$0xff] %v464
  %494 = vst [vmem:[#allocation2 + $0x50] sm:$0xff] %v468
  %495 = vst [vmem:[#allocation2 + $0x58] sm:$0xff] %v470
  %496 = vst [vmem:[#allocation2 + $0x60] sm:$0xff] %v474
  %497 = vst [vmem:[#allocation2 + $0x68] sm:$0xff] %v476
  %498 = vst [vmem:[#allocation2 + $0x70] sm:$0xff] %v480
  %499 = vst [vmem:[#allocation2 + $0x78] sm:$0xff] %v482
  %v500 = vld [vmem:[%s2 + $0xf0] sm:$0xff]
  %v501 = vld [vmem:[%s2 + $0xf8] sm:$0xff]
  %v502 = vld [vmem:[%s2 + $0x100] sm:$0xff]
  %v503 = vld [vmem:[%s2 + $0x108] sm:$0xff]
  %v504 = vld [vmem:[%s2 + $0x110] sm:$0xff]
  %v505 = vld [vmem:[%s2 + $0x118] sm:$0xff]
  %v506 = vld [vmem:[%s2 + $0x120] sm:$0xff]
  %v507 = vld [vmem:[%s2 + $0x128] sm:$0xff]
  %v509 = vsel %vm346, 0.0, 0
  %511 = vmatprep.subr.mxu0 0.0
  %512 = vmatpush1.msra.mxu0 0.0
  %513 = vmatprep.subr.mxu0 0.0
  %514 = vmatpush1.msra.mxu0 0.0
  %515 = vmatprep.subr.mxu0 0.0
  %516 = vmatpush1.msra.mxu0 0.0
  %517 = vmatprep.subr.mxu0 0.0
  %518 = vmatpush1.msra.mxu0 0.0
  %519 = vmatprep.subr.mxu0 0.0
  %520 = vmatpush1.msra.mxu0 0.0
  %521 = vmatprep.subr.mxu0 0.0
  %522 = vmatpush1.msra.mxu0 0.0
  %523 = vmatprep.subr.mxu0 0.0
  %524 = vmatpush1.msra.mxu0 0.0
  %525 = vmatprep.subr.mxu0 0.0
  %526 = vmatpush1.msra.mxu0 0.0
  %527 = vmatprep.subr.mxu0 0.0
  %528 = vmatpush1.msra.mxu0 0.0
  %529 = vmatprep.subr.mxu0 0.0
  %530 = vmatpush1.msra.mxu0 0.0
  %531 = vmatprep.subr.mxu0 0.0
  %532 = vmatpush1.msra.mxu0 0.0
  %533 = vmatprep.subr.mxu0 0.0
  %534 = vmatpush1.msra.mxu0 0.0
  %535 = vmatprep.subr.mxu0 %v507
  %536 = vmatpush1.msra.mxu0 %v506
  %537 = vmatprep.subr.mxu0 %v505
  %538 = vmatpush1.msra.mxu0 %v504
  %539 = vmatprep.subr.mxu0 %v503
  %540 = vmatpush1.msra.mxu0 %v502
  %541 = vmatprep.subr.mxu0 %v501
  %542 = vmatpush1.msra.mxu0 %v500
  %543 = vmatprep.subr.mxu0 0.0
  %544 = vmatpush2.msra.mxu0 0.0
  %545 = vmatprep.subr.mxu0 0.0
  %546 = vmatpush2.msra.mxu0 0.0
  %547 = vmatprep.subr.mxu0 0.0
  %548 = vmatpush2.msra.mxu0 0.0
  %549 = vmatprep.subr.mxu0 0.0
  %550 = vmatpush2.msra.mxu0 0.0
  %551 = vmatprep.subr.mxu0 0.0
  %552 = vmatpush2.msra.mxu0 0.0
  %553 = vmatprep.subr.mxu0 0.0
  %554 = vmatpush2.msra.mxu0 0.0
  %555 = vmatprep.subr.mxu0 0.0
  %556 = vmatpush2.msra.mxu0 0.0
  %557 = vmatprep.subr.mxu0 0.0
  %558 = vmatpush2.msra.mxu0 0.0
  %559 = vmatprep.subr.mxu0 0.0
  %560 = vmatpush2.msra.mxu0 0.0
  %561 = vmatprep.subr.mxu0 0.0
  %562 = vmatpush2.msra.mxu0 0.0
  %563 = vmatprep.subr.mxu0 0.0
  %564 = vmatpush2.msra.mxu0 0.0
  %565 = vmatprep.subr.mxu0 0.0
  %566 = vmatpush2.msra.mxu0 0.0
  %567 = vmatprep.subr.mxu0 0.0
  %568 = vmatpush2.msra.mxu0 0.0
  %569 = vmatprep.subr.mxu0 0.0
  %570 = vmatpush2.msra.mxu0 0.0
  %571 = vmatprep.subr.mxu0 0.0
  %572 = vmatpush2.msra.mxu0 0.0
  %573 = vmatprep.subr.mxu0 0.0
  %574 = vmatpush2.msra.mxu0 0.0
  %575 = vmatprep.mubr.f32.mxu0 0.0
  %576 = vmatmul.mubr.f32.gmra.mxu0 %v509
  %v577 = vpop.f32.mrf.mxu0
  %v578 = vadd.f32 0.0, %v577
  %v579 = vpop.f32.mrf.mxu0
  %580 = vmatprep.mubr.f32.mxu0 0.0
  %581 = vmatmul.mubr.f32.gmra.mxu0 %v509
  %v582 = vpop.f32.mrf.mxu0
  %v583 = vpop.f32.mrf.mxu0
  %v584 = vadd.f32 0.0, %v583
  %585 = vdwg.mxu0
  %v586 = vld [vmem:[#allocation2] sm:$0xff]
  %v587 = vadd.f32 %v586, %v578
  %v588 = vld [vmem:[#allocation2 + $0x78] sm:$0xff]
  %v589 = vadd.f32 %v588, %v584
  %v590 = vxor.u32 %v587, 2147483648
  %v591 = vxor.u32 %v589, 2147483648
  %v592 = vmul.f32 %v590, 1.442695
  %v593 = vpow.pop %v592
  %v594 = vmul.f32 %v591, 1.442695
  %v595 = vpow.pop %v594
  %v596 = vadd.f32 %v593, 1.0
  %v597 = vadd.f32 %v595, 1.0
  %v598 = vrcp.pop %v596
  %v599 = vmul.f32 1.0, %v598
  %v600 = vrcp.pop %v597
  %v601 = vmul.f32 1.0, %v600
  %v602 = vtanh.pop %v587
  %v603 = vtanh.pop %v589
  %v604 = vmul.f32 %v599, 0.0
  %v605 = vmul.f32 %v601, 0.0
  %608 = vrot.lane.b32.xlu0 %v602, 32
  %v609 = vpop.permute.xlu0 %608
  %610 = vrot.lane.b32.xlu0 %v603, 32
  %v611 = vpop.permute.xlu0 %610
  %v614 = vmul.f32 %v599, %v609
  %v615 = vmul.f32 %v601, %v611
  %618 = vrot.lane.b32.xlu0 %v614, 32
  %v619 = vpop.permute.xlu0 %618
  %620 = vrot.lane.b32.xlu0 %v615, 32
  %v621 = vpop.permute.xlu0 %620
  %v624 = vadd.f32 %v604, %v619
  %v625 = vadd.f32 %v605, %v621
  %v626 = vtanh.pop %v624
  %v627 = vtanh.pop %v625
  %630 = vrot.lane.b32.xlu0 %v626, 32
  %v631 = vpop.permute.xlu0 %630
  %632 = vrot.lane.b32.xlu0 %v627, 32
  %v633 = vpop.permute.xlu0 %632
  %v636 = vmul.f32 %v599, %v631
  %v637 = vmul.f32 %v601, %v633
  %640 = vrot.lane.b32.xlu0 %v636, 64
  %v641 = vpop.permute.xlu0 %640
  %642 = vrot.lane.b32.xlu0 %v637, 64
  %v643 = vpop.permute.xlu0 %642
  %v644 = vsel %vm346, %v641, 0
  %v646 = vsel %vm346, %v643, 0
  %648 = vmatprep.subr.mxu0 0.0
  %649 = vmatpush1.msra.mxu0 0.0
  %650 = vmatprep.subr.mxu0 0.0
  %651 = vmatpush1.msra.mxu0 0.0
  %652 = vmatprep.subr.mxu0 0.0
  %653 = vmatpush1.msra.mxu0 0.0
  %654 = vmatprep.subr.mxu0 0.0
  %655 = vmatpush1.msra.mxu0 0.0
  %656 = vmatprep.subr.mxu0 0.0
  %657 = vmatpush1.msra.mxu0 0.0
  %658 = vmatprep.subr.mxu0 0.0
  %659 = vmatpush1.msra.mxu0 0.0
  %660 = vmatprep.subr.mxu0 0.0
  %661 = vmatpush1.msra.mxu0 0.0
  %662 = vmatprep.subr.mxu0 0.0
  %663 = vmatpush1.msra.mxu0 0.0
  %664 = vmatprep.subr.mxu0 0.0
  %665 = vmatpush1.msra.mxu0 0.0
  %666 = vmatprep.subr.mxu0 0.0
  %667 = vmatpush1.msra.mxu0 0.0
  %668 = vmatprep.subr.mxu0 0.0
  %669 = vmatpush1.msra.mxu0 0.0
  %670 = vmatprep.subr.mxu0 0.0
  %671 = vmatpush1.msra.mxu0 0.0
  %672 = vmatprep.subr.mxu0 %v507
  %673 = vmatpush1.msra.mxu0 %v506
  %674 = vmatprep.subr.mxu0 %v505
  %675 = vmatpush1.msra.mxu0 %v504
  %676 = vmatprep.subr.mxu0 %v503
  %677 = vmatpush1.msra.mxu0 %v502
  %678 = vmatprep.subr.mxu0 %v501
  %679 = vmatpush1.msra.mxu0 %v500
  %680 = vmatprep.subr.mxu0 0.0
  %681 = vmatpush2.msra.mxu0 0.0
  %682 = vmatprep.subr.mxu0 0.0
  %683 = vmatpush2.msra.mxu0 0.0
  %684 = vmatprep.subr.mxu0 0.0
  %685 = vmatpush2.msra.mxu0 0.0
  %686 = vmatprep.subr.mxu0 0.0
  %687 = vmatpush2.msra.mxu0 0.0
  %688 = vmatprep.subr.mxu0 0.0
  %689 = vmatpush2.msra.mxu0 0.0
  %690 = vmatprep.subr.mxu0 0.0
  %691 = vmatpush2.msra.mxu0 0.0
  %692 = vmatprep.subr.mxu0 0.0
  %693 = vmatpush2.msra.mxu0 0.0
  %694 = vmatprep.subr.mxu0 0.0
  %695 = vmatpush2.msra.mxu0 0.0
  %696 = vmatprep.subr.mxu0 0.0
  %697 = vmatpush2.msra.mxu0 0.0
  %698 = vmatprep.subr.mxu0 0.0
  %699 = vmatpush2.msra.mxu0 0.0
  %700 = vmatprep.subr.mxu0 0.0
  %701 = vmatpush2.msra.mxu0 0.0
  %702 = vmatprep.subr.mxu0 0.0
  %703 = vmatpush2.msra.mxu0 0.0
  %704 = vmatprep.subr.mxu0 0.0
  %705 = vmatpush2.msra.mxu0 0.0
  %706 = vmatprep.subr.mxu0 0.0
  %707 = vmatpush2.msra.mxu0 0.0
  %708 = vmatprep.subr.mxu0 0.0
  %709 = vmatpush2.msra.mxu0 0.0
  %710 = vmatprep.subr.mxu0 0.0
  %711 = vmatpush2.msra.mxu0 0.0
  %712 = vmatprep.mubr.f32.mxu0 0.0
  %713 = vmatmul.mubr.f32.gmra.mxu0 %v644
  %v714 = vpop.f32.mrf.mxu0
  %v715 = vadd.f32 0.0, %v714
  %v716 = vpop.f32.mrf.mxu0
  %717 = vmatprep.mubr.f32.mxu0 0.0
  %718 = vmatmul.mubr.f32.gmra.mxu0 %v646
  %v719 = vpop.f32.mrf.mxu0
  %v720 = vpop.f32.mrf.mxu0
  %v721 = vadd.f32 0.0, %v720
  %722 = vdwg.mxu0
  %v723 = vld [vmem:[#allocation2 + $0x10] sm:$0xff]
  %v724 = vadd.f32 %v723, %v715
  %v725 = vld [vmem:[#allocation2 + $0x68] sm:$0xff]
  %v726 = vadd.f32 %v725, %v721
  %v727 = vxor.u32 %v724, 2147483648
  %v728 = vxor.u32 %v726, 2147483648
  %v729 = vmul.f32 %v727, 1.442695
  %v730 = vpow.pop %v729
  %v731 = vmul.f32 %v728, 1.442695
  %v732 = vpow.pop %v731
  %v733 = vadd.f32 %v730, 1.0
  %v734 = vadd.f32 %v732, 1.0
  %v735 = vrcp.pop %v733
  %v736 = vmul.f32 1.0, %v735
  %v737 = vrcp.pop %v734
  %v738 = vmul.f32 1.0, %v737
  %v739 = vtanh.pop %v724
  %v740 = vtanh.pop %v726
  %v741 = vmul.f32 %v736, %v624
  %v742 = vmul.f32 %v738, %v625
  %745 = vrot.lane.b32.xlu0 %v739, 32
  %v746 = vpop.permute.xlu0 %745
  %747 = vrot.lane.b32.xlu0 %v740, 32
  %v748 = vpop.permute.xlu0 %747
  %v751 = vmul.f32 %v736, %v746
  %v752 = vmul.f32 %v738, %v748
  %755 = vrot.lane.b32.xlu0 %v751, 32
  %v756 = vpop.permute.xlu0 %755
  %757 = vrot.lane.b32.xlu0 %v752, 32
  %v758 = vpop.permute.xlu0 %757
  %v761 = vadd.f32 %v741, %v756
  %v762 = vadd.f32 %v742, %v758
  %v763 = vtanh.pop %v761
  %v764 = vtanh.pop %v762
  %767 = vrot.lane.b32.xlu0 %v763, 32
  %v768 = vpop.permute.xlu0 %767
  %769 = vrot.lane.b32.xlu0 %v764, 32
  %v770 = vpop.permute.xlu0 %769
  %v773 = vmul.f32 %v736, %v768
  %v774 = vmul.f32 %v738, %v770
  %777 = vrot.lane.b32.xlu0 %v773, 64
  %v778 = vpop.permute.xlu0 %777
  %779 = vrot.lane.b32.xlu0 %v774, 64
  %v780 = vpop.permute.xlu0 %779
  %v781 = vsel %vm346, %v778, 0
  %v783 = vsel %vm346, %v780, 0
  %785 = vmatprep.subr.mxu0 0.0
  %786 = vmatpush1.msra.mxu0 0.0
  %787 = vmatprep.subr.mxu0 0.0
  %788 = vmatpush1.msra.mxu0 0.0
  %789 = vmatprep.subr.mxu0 0.0
  %790 = vmatpush1.msra.mxu0 0.0
  %791 = vmatprep.subr.mxu0 0.0
  %792 = vmatpush1.msra.mxu0 0.0
  %793 = vmatprep.subr.mxu0 0.0
  %794 = vmatpush1.msra.mxu0 0.0
  %795 = vmatprep.subr.mxu0 0.0
  %796 = vmatpush1.msra.mxu0 0.0
  %797 = vmatprep.subr.mxu0 0.0
  %798 = vmatpush1.msra.mxu0 0.0
  %799 = vmatprep.subr.mxu0 0.0
  %800 = vmatpush1.msra.mxu0 0.0
  %801 = vmatprep.subr.mxu0 0.0
  %802 = vmatpush1.msra.mxu0 0.0
  %803 = vmatprep.subr.mxu0 0.0
  %804 = vmatpush1.msra.mxu0 0.0
  %805 = vmatprep.subr.mxu0 0.0
  %806 = vmatpush1.msra.mxu0 0.0
  %807 = vmatprep.subr.mxu0 0.0
  %808 = vmatpush1.msra.mxu0 0.0
  %809 = vmatprep.subr.mxu0 %v507
  %810 = vmatpush1.msra.mxu0 %v506
  %811 = vmatprep.subr.mxu0 %v505
  %812 = vmatpush1.msra.mxu0 %v504
  %813 = vmatprep.subr.mxu0 %v503
  %814 = vmatpush1.msra.mxu0 %v502
  %815 = vmatprep.subr.mxu0 %v501
  %816 = vmatpush1.msra.mxu0 %v500
  %817 = vmatprep.subr.mxu0 0.0
  %818 = vmatpush2.msra.mxu0 0.0
  %819 = vmatprep.subr.mxu0 0.0
  %820 = vmatpush2.msra.mxu0 0.0
  %821 = vmatprep.subr.mxu0 0.0
  %822 = vmatpush2.msra.mxu0 0.0
  %823 = vmatprep.subr.mxu0 0.0
  %824 = vmatpush2.msra.mxu0 0.0
  %825 = vmatprep.subr.mxu0 0.0
  %826 = vmatpush2.msra.mxu0 0.0
  %827 = vmatprep.subr.mxu0 0.0
  %828 = vmatpush2.msra.mxu0 0.0
  %829 = vmatprep.subr.mxu0 0.0
  %830 = vmatpush2.msra.mxu0 0.0
  %831 = vmatprep.subr.mxu0 0.0
  %832 = vmatpush2.msra.mxu0 0.0
  %833 = vmatprep.subr.mxu0 0.0
  %834 = vmatpush2.msra.mxu0 0.0
  %835 = vmatprep.subr.mxu0 0.0
  %836 = vmatpush2.msra.mxu0 0.0
  %837 = vmatprep.subr.mxu0 0.0
  %838 = vmatpush2.msra.mxu0 0.0
  %839 = vmatprep.subr.mxu0 0.0
  %840 = vmatpush2.msra.mxu0 0.0
  %841 = vmatprep.subr.mxu0 0.0
  %842 = vmatpush2.msra.mxu0 0.0
  %843 = vmatprep.subr.mxu0 0.0
  %844 = vmatpush2.msra.mxu0 0.0
  %845 = vmatprep.subr.mxu0 0.0
  %846 = vmatpush2.msra.mxu0 0.0
  %847 = vmatprep.subr.mxu0 0.0
  %848 = vmatpush2.msra.mxu0 0.0
  %849 = vmatprep.mubr.f32.mxu0 0.0
  %850 = vmatmul.mubr.f32.gmra.mxu0 %v781
  %v851 = vpop.f32.mrf.mxu0
  %v852 = vadd.f32 0.0, %v851
  %v853 = vpop.f32.mrf.mxu0
  %854 = vmatprep.mubr.f32.mxu0 0.0
  %855 = vmatmul.mubr.f32.gmra.mxu0 %v783
  %v856 = vpop.f32.mrf.mxu0
  %v857 = vpop.f32.mrf.mxu0
  %v858 = vadd.f32 0.0, %v857
  %859 = vdwg.mxu0
  %v860 = vld [vmem:[#allocation2 + $0x20] sm:$0xff]
  %v861 = vadd.f32 %v860, %v852
  %v862 = vld [vmem:[#allocation2 + $0x58] sm:$0xff]
  %v863 = vadd.f32 %v862, %v858
  %v864 = vxor.u32 %v861, 2147483648
  %v865 = vxor.u32 %v863, 2147483648
  %v866 = vmul.f32 %v864, 1.442695
  %v867 = vpow.pop %v866
  %v868 = vmul.f32 %v865, 1.442695
  %v869 = vpow.pop %v868
  %v870 = vadd.f32 %v867, 1.0
  %v871 = vadd.f32 %v869, 1.0
  %v872 = vrcp.pop %v870
  %v873 = vmul.f32 1.0, %v872
  %v874 = vrcp.pop %v871
  %v875 = vmul.f32 1.0, %v874
  %v876 = vtanh.pop %v861
  %v877 = vtanh.pop %v863
  %v878 = vmul.f32 %v873, %v761
  %v879 = vmul.f32 %v875, %v762
  %882 = vrot.lane.b32.xlu0 %v876, 32
  %v883 = vpop.permute.xlu0 %882
  %884 = vrot.lane.b32.xlu0 %v877, 32
  %v885 = vpop.permute.xlu0 %884
  %v888 = vmul.f32 %v873, %v883
  %v889 = vmul.f32 %v875, %v885
  %892 = vrot.lane.b32.xlu0 %v888, 32
  %v893 = vpop.permute.xlu0 %892
  %894 = vrot.lane.b32.xlu0 %v889, 32
  %v895 = vpop.permute.xlu0 %894
  %v898 = vadd.f32 %v878, %v893
  %v899 = vadd.f32 %v879, %v895
  %v900 = vtanh.pop %v898
  %v901 = vtanh.pop %v899
  %904 = vrot.lane.b32.xlu0 %v900, 32
  %v905 = vpop.permute.xlu0 %904
  %906 = vrot.lane.b32.xlu0 %v901, 32
  %v907 = vpop.permute.xlu0 %906
  %v910 = vmul.f32 %v873, %v905
  %v911 = vmul.f32 %v875, %v907
  %914 = vrot.lane.b32.xlu0 %v910, 64
  %v915 = vpop.permute.xlu0 %914
  %916 = vrot.lane.b32.xlu0 %v911, 64
  %v917 = vpop.permute.xlu0 %916
  %v918 = vsel %vm346, %v915, 0
  %v920 = vsel %vm346, %v917, 0
  %922 = vmatprep.subr.mxu0 0.0
  %923 = vmatpush1.msra.mxu0 0.0
  %924 = vmatprep.subr.mxu0 0.0
  %925 = vmatpush1.msra.mxu0 0.0
  %926 = vmatprep.subr.mxu0 0.0
  %927 = vmatpush1.msra.mxu0 0.0
  %928 = vmatprep.subr.mxu0 0.0
  %929 = vmatpush1.msra.mxu0 0.0
  %930 = vmatprep.subr.mxu0 0.0
  %931 = vmatpush1.msra.mxu0 0.0
  %932 = vmatprep.subr.mxu0 0.0
  %933 = vmatpush1.msra.mxu0 0.0
  %934 = vmatprep.subr.mxu0 0.0
  %935 = vmatpush1.msra.mxu0 0.0
  %936 = vmatprep.subr.mxu0 0.0
  %937 = vmatpush1.msra.mxu0 0.0
  %938 = vmatprep.subr.mxu0 0.0
  %939 = vmatpush1.msra.mxu0 0.0
  %940 = vmatprep.subr.mxu0 0.0
  %941 = vmatpush1.msra.mxu0 0.0
  %942 = vmatprep.subr.mxu0 0.0
  %943 = vmatpush1.msra.mxu0 0.0
  %944 = vmatprep.subr.mxu0 0.0
  %945 = vmatpush1.msra.mxu0 0.0
  %946 = vmatprep.subr.mxu0 %v507
  %947 = vmatpush1.msra.mxu0 %v506
  %948 = vmatprep.subr.mxu0 %v505
  %949 = vmatpush1.msra.mxu0 %v504
  %950 = vmatprep.subr.mxu0 %v503
  %951 = vmatpush1.msra.mxu0 %v502
  %952 = vmatprep.subr.mxu0 %v501
  %953 = vmatpush1.msra.mxu0 %v500
  %954 = vmatprep.subr.mxu0 0.0
  %955 = vmatpush2.msra.mxu0 0.0
  %956 = vmatprep.subr.mxu0 0.0
  %957 = vmatpush2.msra.mxu0 0.0
  %958 = vmatprep.subr.mxu0 0.0
  %959 = vmatpush2.msra.mxu0 0.0
  %960 = vmatprep.subr.mxu0 0.0
  %961 = vmatpush2.msra.mxu0 0.0
  %962 = vmatprep.subr.mxu0 0.0
  %963 = vmatpush2.msra.mxu0 0.0
  %964 = vmatprep.subr.mxu0 0.0
  %965 = vmatpush2.msra.mxu0 0.0
  %966 = vmatprep.subr.mxu0 0.0
  %967 = vmatpush2.msra.mxu0 0.0
  %968 = vmatprep.subr.mxu0 0.0
  %969 = vmatpush2.msra.mxu0 0.0
  %970 = vmatprep.subr.mxu0 0.0
  %971 = vmatpush2.msra.mxu0 0.0
  %972 = vmatprep.subr.mxu0 0.0
  %973 = vmatpush2.msra.mxu0 0.0
  %974 = vmatprep.subr.mxu0 0.0
  %975 = vmatpush2.msra.mxu0 0.0
  %976 = vmatprep.subr.mxu0 0.0
  %977 = vmatpush2.msra.mxu0 0.0
  %978 = vmatprep.subr.mxu0 0.0
  %979 = vmatpush2.msra.mxu0 0.0
  %980 = vmatprep.subr.mxu0 0.0
  %981 = vmatpush2.msra.mxu0 0.0
  %982 = vmatprep.subr.mxu0 0.0
  %983 = vmatpush2.msra.mxu0 0.0
  %984 = vmatprep.subr.mxu0 0.0
  %985 = vmatpush2.msra.mxu0 0.0
  %986 = vmatprep.mubr.f32.mxu0 0.0
  %987 = vmatmul.mubr.f32.gmra.mxu0 %v918
  %v988 = vpop.f32.mrf.mxu0
  %v989 = vadd.f32 0.0, %v988
  %v990 = vpop.f32.mrf.mxu0
  %991 = vmatprep.mubr.f32.mxu0 0.0
  %992 = vmatmul.mubr.f32.gmra.mxu0 %v920
  %v993 = vpop.f32.mrf.mxu0
  %v994 = vpop.f32.mrf.mxu0
  %v995 = vadd.f32 0.0, %v994
  %996 = vdwg.mxu0
  %v997 = vld [vmem:[#allocation2 + $0x30] sm:$0xff]
  %v998 = vadd.f32 %v997, %v989
  %v999 = vld [vmem:[#allocation2 + $0x48] sm:$0xff]
  %v1000 = vadd.f32 %v999, %v995
  %v1001 = vxor.u32 %v998, 2147483648
  %v1002 = vxor.u32 %v1000, 2147483648
  %v1003 = vmul.f32 %v1001, 1.442695
  %v1004 = vpow.pop %v1003
  %v1005 = vmul.f32 %v1002, 1.442695
  %v1006 = vpow.pop %v1005
  %v1007 = vadd.f32 %v1004, 1.0
  %v1008 = vadd.f32 %v1006, 1.0
  %v1009 = vrcp.pop %v1007
  %v1010 = vmul.f32 1.0, %v1009
  %v1011 = vrcp.pop %v1008
  %v1012 = vmul.f32 1.0, %v1011
  %v1013 = vtanh.pop %v998
  %v1014 = vtanh.pop %v1000
  %v1015 = vmul.f32 %v1010, %v898
  %v1016 = vmul.f32 %v1012, %v899
  %1019 = vrot.lane.b32.xlu0 %v1013, 32
  %v1020 = vpop.permute.xlu0 %1019
  %1021 = vrot.lane.b32.xlu0 %v1014, 32
  %v1022 = vpop.permute.xlu0 %1021
  %v1025 = vmul.f32 %v1010, %v1020
  %v1026 = vmul.f32 %v1012, %v1022
  %1029 = vrot.lane.b32.xlu0 %v1025, 32
  %v1030 = vpop.permute.xlu0 %1029
  %1031 = vrot.lane.b32.xlu0 %v1026, 32
  %v1032 = vpop.permute.xlu0 %1031
  %v1035 = vadd.f32 %v1015, %v1030
  %v1036 = vadd.f32 %v1016, %v1032
  %v1037 = vtanh.pop %v1035
  %v1038 = vtanh.pop %v1036
  %1041 = vrot.lane.b32.xlu0 %v1037, 32
  %v1042 = vpop.permute.xlu0 %1041
  %1043 = vrot.lane.b32.xlu0 %v1038, 32
  %v1044 = vpop.permute.xlu0 %1043
  %v1047 = vmul.f32 %v1010, %v1042
  %v1048 = vmul.f32 %v1012, %v1044
  %1051 = vrot.lane.b32.xlu0 %v1047, 64
  %v1052 = vpop.permute.xlu0 %1051
  %1053 = vrot.lane.b32.xlu0 %v1048, 64
  %v1054 = vpop.permute.xlu0 %1053
  %v1055 = vsel %vm346, %v1052, 0
  %v1057 = vsel %vm346, %v1054, 0
  %1059 = vmatprep.subr.mxu0 0.0
  %1060 = vmatpush1.msra.mxu0 0.0
  %1061 = vmatprep.subr.mxu0 0.0
  %1062 = vmatpush1.msra.mxu0 0.0
  %1063 = vmatprep.subr.mxu0 0.0
  %1064 = vmatpush1.msra.mxu0 0.0
  %1065 = vmatprep.subr.mxu0 0.0
  %1066 = vmatpush1.msra.mxu0 0.0
  %1067 = vmatprep.subr.mxu0 0.0
  %1068 = vmatpush1.msra.mxu0 0.0
  %1069 = vmatprep.subr.mxu0 0.0
  %1070 = vmatpush1.msra.mxu0 0.0
  %1071 = vmatprep.subr.mxu0 0.0
  %1072 = vmatpush1.msra.mxu0 0.0
  %1073 = vmatprep.subr.mxu0 0.0
  %1074 = vmatpush1.msra.mxu0 0.0
  %1075 = vmatprep.subr.mxu0 0.0
  %1076 = vmatpush1.msra.mxu0 0.0
  %1077 = vmatprep.subr.mxu0 0.0
  %1078 = vmatpush1.msra.mxu0 0.0
  %1079 = vmatprep.subr.mxu0 0.0
  %1080 = vmatpush1.msra.mxu0 0.0
  %1081 = vmatprep.subr.mxu0 0.0
  %1082 = vmatpush1.msra.mxu0 0.0
  %1083 = vmatprep.subr.mxu0 %v507
  %1084 = vmatpush1.msra.mxu0 %v506
  %1085 = vmatprep.subr.mxu0 %v505
  %1086 = vmatpush1.msra.mxu0 %v504
  %1087 = vmatprep.subr.mxu0 %v503
  %1088 = vmatpush1.msra.mxu0 %v502
  %1089 = vmatprep.subr.mxu0 %v501
  %1090 = vmatpush1.msra.mxu0 %v500
  %1091 = vmatprep.subr.mxu0 0.0
  %1092 = vmatpush2.msra.mxu0 0.0
  %1093 = vmatprep.subr.mxu0 0.0
  %1094 = vmatpush2.msra.mxu0 0.0
  %1095 = vmatprep.subr.mxu0 0.0
  %1096 = vmatpush2.msra.mxu0 0.0
  %1097 = vmatprep.subr.mxu0 0.0
  %1098 = vmatpush2.msra.mxu0 0.0
  %1099 = vmatprep.subr.mxu0 0.0
  %1100 = vmatpush2.msra.mxu0 0.0
  %1101 = vmatprep.subr.mxu0 0.0
  %1102 = vmatpush2.msra.mxu0 0.0
  %1103 = vmatprep.subr.mxu0 0.0
  %1104 = vmatpush2.msra.mxu0 0.0
  %1105 = vmatprep.subr.mxu0 0.0
  %1106 = vmatpush2.msra.mxu0 0.0
  %1107 = vmatprep.subr.mxu0 0.0
  %1108 = vmatpush2.msra.mxu0 0.0
  %1109 = vmatprep.subr.mxu0 0.0
  %1110 = vmatpush2.msra.mxu0 0.0
  %1111 = vmatprep.subr.mxu0 0.0
  %1112 = vmatpush2.msra.mxu0 0.0
  %1113 = vmatprep.subr.mxu0 0.0
  %1114 = vmatpush2.msra.mxu0 0.0
  %1115 = vmatprep.subr.mxu0 0.0
  %1116 = vmatpush2.msra.mxu0 0.0
  %1117 = vmatprep.subr.mxu0 0.0
  %1118 = vmatpush2.msra.mxu0 0.0
  %1119 = vmatprep.subr.mxu0 0.0
  %1120 = vmatpush2.msra.mxu0 0.0
  %1121 = vmatprep.subr.mxu0 0.0
  %1122 = vmatpush2.msra.mxu0 0.0
  %1123 = vmatprep.mubr.f32.mxu0 0.0
  %1124 = vmatmul.mubr.f32.gmra.mxu0 %v1055
  %v1125 = vpop.f32.mrf.mxu0
  %v1126 = vadd.f32 0.0, %v1125
  %v1127 = vpop.f32.mrf.mxu0
  %1128 = vmatprep.mubr.f32.mxu0 0.0
  %1129 = vmatmul.mubr.f32.gmra.mxu0 %v1057
  %v1130 = vpop.f32.mrf.mxu0
  %v1131 = vpop.f32.mrf.mxu0
  %v1132 = vadd.f32 0.0, %v1131
  %1133 = vdwg.mxu0
  %v1134 = vld [vmem:[#allocation2 + $0x40] sm:$0xff]
  %v1135 = vadd.f32 %v1134, %v1126
  %v1136 = vld [vmem:[#allocation2 + $0x38] sm:$0xff]
  %v1137 = vadd.f32 %v1136, %v1132
  %v1138 = vxor.u32 %v1135, 2147483648
  %v1139 = vxor.u32 %v1137, 2147483648
  %v1140 = vmul.f32 %v1138, 1.442695
  %v1141 = vpow.pop %v1140
  %v1142 = vmul.f32 %v1139, 1.442695
  %v1143 = vpow.pop %v1142
  %v1144 = vadd.f32 %v1141, 1.0
  %v1145 = vadd.f32 %v1143, 1.0
  %v1146 = vrcp.pop %v1144
  %v1147 = vmul.f32 1.0, %v1146
  %v1148 = vrcp.pop %v1145
  %v1149 = vmul.f32 1.0, %v1148
  %v1150 = vtanh.pop %v1135
  %v1151 = vtanh.pop %v1137
  %v1152 = vmul.f32 %v1147, %v1035
  %v1153 = vmul.f32 %v1149, %v1036
  %1156 = vrot.lane.b32.xlu0 %v1150, 32
  %v1157 = vpop.permute.xlu0 %1156
  %1158 = vrot.lane.b32.xlu0 %v1151, 32
  %v1159 = vpop.permute.xlu0 %1158
  %v1162 = vmul.f32 %v1147, %v1157
  %v1163 = vmul.f32 %v1149, %v1159
  %1166 = vrot.lane.b32.xlu0 %v1162, 32
  %v1167 = vpop.permute.xlu0 %1166
  %1168 = vrot.lane.b32.xlu0 %v1163, 32
  %v1169 = vpop.permute.xlu0 %1168
  %v1172 = vadd.f32 %v1152, %v1167
  %v1173 = vadd.f32 %v1153, %v1169
  %v1174 = vtanh.pop %v1172
  %v1175 = vtanh.pop %v1173
  %1178 = vrot.lane.b32.xlu0 %v1174, 32
  %v1179 = vpop.permute.xlu0 %1178
  %1180 = vrot.lane.b32.xlu0 %v1175, 32
  %v1181 = vpop.permute.xlu0 %1180
  %v1184 = vmul.f32 %v1147, %v1179
  %v1185 = vmul.f32 %v1149, %v1181
  %1188 = vrot.lane.b32.xlu0 %v1184, 64
  %v1189 = vpop.permute.xlu0 %1188
  %1190 = vrot.lane.b32.xlu0 %v1185, 64
  %v1191 = vpop.permute.xlu0 %1190
  %v1192 = vsel %vm346, %v1189, 0
  %v1194 = vsel %vm346, %v1191, 0
  %1196 = vmatprep.subr.mxu0 0.0
  %1197 = vmatpush1.msra.mxu0 0.0
  %1198 = vmatprep.subr.mxu0 0.0
  %1199 = vmatpush1.msra.mxu0 0.0
  %1200 = vmatprep.subr.mxu0 0.0
  %1201 = vmatpush1.msra.mxu0 0.0
  %1202 = vmatprep.subr.mxu0 0.0
  %1203 = vmatpush1.msra.mxu0 0.0
  %1204 = vmatprep.subr.mxu0 0.0
  %1205 = vmatpush1.msra.mxu0 0.0
  %1206 = vmatprep.subr.mxu0 0.0
  %1207 = vmatpush1.msra.mxu0 0.0
  %1208 = vmatprep.subr.mxu0 0.0
  %1209 = vmatpush1.msra.mxu0 0.0
  %1210 = vmatprep.subr.mxu0 0.0
  %1211 = vmatpush1.msra.mxu0 0.0
  %1212 = vmatprep.subr.mxu0 0.0
  %1213 = vmatpush1.msra.mxu0 0.0
  %1214 = vmatprep.subr.mxu0 0.0
  %1215 = vmatpush1.msra.mxu0 0.0
  %1216 = vmatprep.subr.mxu0 0.0
  %1217 = vmatpush1.msra.mxu0 0.0
  %1218 = vmatprep.subr.mxu0 0.0
  %1219 = vmatpush1.msra.mxu0 0.0
  %1220 = vmatprep.subr.mxu0 %v507
  %1221 = vmatpush1.msra.mxu0 %v506
  %1222 = vmatprep.subr.mxu0 %v505
  %1223 = vmatpush1.msra.mxu0 %v504
  %1224 = vmatprep.subr.mxu0 %v503
  %1225 = vmatpush1.msra.mxu0 %v502
  %1226 = vmatprep.subr.mxu0 %v501
  %1227 = vmatpush1.msra.mxu0 %v500
  %1228 = vmatprep.subr.mxu0 0.0
  %1229 = vmatpush2.msra.mxu0 0.0
  %1230 = vmatprep.subr.mxu0 0.0
  %1231 = vmatpush2.msra.mxu0 0.0
  %1232 = vmatprep.subr.mxu0 0.0
  %1233 = vmatpush2.msra.mxu0 0.0
  %1234 = vmatprep.subr.mxu0 0.0
  %1235 = vmatpush2.msra.mxu0 0.0
  %1236 = vmatprep.subr.mxu0 0.0
  %1237 = vmatpush2.msra.mxu0 0.0
  %1238 = vmatprep.subr.mxu0 0.0
  %1239 = vmatpush2.msra.mxu0 0.0
  %1240 = vmatprep.subr.mxu0 0.0
  %1241 = vmatpush2.msra.mxu0 0.0
  %1242 = vmatprep.subr.mxu0 0.0
  %1243 = vmatpush2.msra.mxu0 0.0
  %1244 = vmatprep.subr.mxu0 0.0
  %1245 = vmatpush2.msra.mxu0 0.0
  %1246 = vmatprep.subr.mxu0 0.0
  %1247 = vmatpush2.msra.mxu0 0.0
  %1248 = vmatprep.subr.mxu0 0.0
  %1249 = vmatpush2.msra.mxu0 0.0
  %1250 = vmatprep.subr.mxu0 0.0
  %1251 = vmatpush2.msra.mxu0 0.0
  %1252 = vmatprep.subr.mxu0 0.0
  %1253 = vmatpush2.msra.mxu0 0.0
  %1254 = vmatprep.subr.mxu0 0.0
  %1255 = vmatpush2.msra.mxu0 0.0
  %1256 = vmatprep.subr.mxu0 0.0
  %1257 = vmatpush2.msra.mxu0 0.0
  %1258 = vmatprep.subr.mxu0 0.0
  %1259 = vmatpush2.msra.mxu0 0.0
  %1260 = vmatprep.mubr.f32.mxu0 0.0
  %1261 = vmatmul.mubr.f32.gmra.mxu0 %v1192
  %v1262 = vpop.f32.mrf.mxu0
  %v1263 = vadd.f32 0.0, %v1262
  %v1264 = vpop.f32.mrf.mxu0
  %1265 = vmatprep.mubr.f32.mxu0 0.0
  %1266 = vmatmul.mubr.f32.gmra.mxu0 %v1194
  %v1267 = vpop.f32.mrf.mxu0
  %v1268 = vpop.f32.mrf.mxu0
  %v1269 = vadd.f32 0.0, %v1268
  %1270 = vdwg.mxu0
  %v1271 = vld [vmem:[#allocation2 + $0x50] sm:$0xff]
  %v1272 = vadd.f32 %v1271, %v1263
  %v1273 = vld [vmem:[#allocation2 + $0x28] sm:$0xff]
  %v1274 = vadd.f32 %v1273, %v1269
  %v1275 = vxor.u32 %v1272, 2147483648
  %v1276 = vxor.u32 %v1274, 2147483648
  %v1277 = vmul.f32 %v1275, 1.442695
  %v1278 = vpow.pop %v1277
  %v1279 = vmul.f32 %v1276, 1.442695
  %v1280 = vpow.pop %v1279
  %v1281 = vadd.f32 %v1278, 1.0
  %v1282 = vadd.f32 %v1280, 1.0
  %v1283 = vrcp.pop %v1281
  %v1284 = vmul.f32 1.0, %v1283
  %v1285 = vrcp.pop %v1282
  %v1286 = vmul.f32 1.0, %v1285
  %v1287 = vtanh.pop %v1272
  %v1288 = vtanh.pop %v1274
  %v1289 = vmul.f32 %v1284, %v1172
  %v1290 = vmul.f32 %v1286, %v1173
  %1293 = vrot.lane.b32.xlu0 %v1287, 32
  %v1294 = vpop.permute.xlu0 %1293
  %1295 = vrot.lane.b32.xlu0 %v1288, 32
  %v1296 = vpop.permute.xlu0 %1295
  %v1299 = vmul.f32 %v1284, %v1294
  %v1300 = vmul.f32 %v1286, %v1296
  %1303 = vrot.lane.b32.xlu0 %v1299, 32
  %v1304 = vpop.permute.xlu0 %1303
  %1305 = vrot.lane.b32.xlu0 %v1300, 32
  %v1306 = vpop.permute.xlu0 %1305
  %v1309 = vadd.f32 %v1289, %v1304
  %v1310 = vadd.f32 %v1290, %v1306
  %v1311 = vtanh.pop %v1309
  %v1312 = vtanh.pop %v1310
  %1315 = vrot.lane.b32.xlu0 %v1311, 32
  %v1316 = vpop.permute.xlu0 %1315
  %1317 = vrot.lane.b32.xlu0 %v1312, 32
  %v1318 = vpop.permute.xlu0 %1317
  %v1321 = vmul.f32 %v1284, %v1316
  %v1322 = vmul.f32 %v1286, %v1318
  %1325 = vrot.lane.b32.xlu0 %v1321, 64
  %v1326 = vpop.permute.xlu0 %1325
  %1327 = vrot.lane.b32.xlu0 %v1322, 64
  %v1328 = vpop.permute.xlu0 %1327
  %v1329 = vsel %vm346, %v1326, 0
  %v1331 = vsel %vm346, %v1328, 0
  %1333 = vmatprep.subr.mxu0 0.0
  %1334 = vmatpush1.msra.mxu0 0.0
  %1335 = vmatprep.subr.mxu0 0.0
  %1336 = vmatpush1.msra.mxu0 0.0
  %1337 = vmatprep.subr.mxu0 0.0
  %1338 = vmatpush1.msra.mxu0 0.0
  %1339 = vmatprep.subr.mxu0 0.0
  %1340 = vmatpush1.msra.mxu0 0.0
  %1341 = vmatprep.subr.mxu0 0.0
  %1342 = vmatpush1.msra.mxu0 0.0
  %1343 = vmatprep.subr.mxu0 0.0
  %1344 = vmatpush1.msra.mxu0 0.0
  %1345 = vmatprep.subr.mxu0 0.0
  %1346 = vmatpush1.msra.mxu0 0.0
  %1347 = vmatprep.subr.mxu0 0.0
  %1348 = vmatpush1.msra.mxu0 0.0
  %1349 = vmatprep.subr.mxu0 0.0
  %1350 = vmatpush1.msra.mxu0 0.0
  %1351 = vmatprep.subr.mxu0 0.0
  %1352 = vmatpush1.msra.mxu0 0.0
  %1353 = vmatprep.subr.mxu0 0.0
  %1354 = vmatpush1.msra.mxu0 0.0
  %1355 = vmatprep.subr.mxu0 0.0
  %1356 = vmatpush1.msra.mxu0 0.0
  %1357 = vmatprep.subr.mxu0 %v507
  %1358 = vmatpush1.msra.mxu0 %v506
  %1359 = vmatprep.subr.mxu0 %v505
  %1360 = vmatpush1.msra.mxu0 %v504
  %1361 = vmatprep.subr.mxu0 %v503
  %1362 = vmatpush1.msra.mxu0 %v502
  %1363 = vmatprep.subr.mxu0 %v501
  %1364 = vmatpush1.msra.mxu0 %v500
  %1365 = vmatprep.subr.mxu0 0.0
  %1366 = vmatpush2.msra.mxu0 0.0
  %1367 = vmatprep.subr.mxu0 0.0
  %1368 = vmatpush2.msra.mxu0 0.0
  %1369 = vmatprep.subr.mxu0 0.0
  %1370 = vmatpush2.msra.mxu0 0.0
  %1371 = vmatprep.subr.mxu0 0.0
  %1372 = vmatpush2.msra.mxu0 0.0
  %1373 = vmatprep.subr.mxu0 0.0
  %1374 = vmatpush2.msra.mxu0 0.0
  %1375 = vmatprep.subr.mxu0 0.0
  %1376 = vmatpush2.msra.mxu0 0.0
  %1377 = vmatprep.subr.mxu0 0.0
  %1378 = vmatpush2.msra.mxu0 0.0
  %1379 = vmatprep.subr.mxu0 0.0
  %1380 = vmatpush2.msra.mxu0 0.0
  %1381 = vmatprep.subr.mxu0 0.0
  %1382 = vmatpush2.msra.mxu0 0.0
  %1383 = vmatprep.subr.mxu0 0.0
  %1384 = vmatpush2.msra.mxu0 0.0
  %1385 = vmatprep.subr.mxu0 0.0
  %1386 = vmatpush2.msra.mxu0 0.0
  %1387 = vmatprep.subr.mxu0 0.0
  %1388 = vmatpush2.msra.mxu0 0.0
  %1389 = vmatprep.subr.mxu0 0.0
  %1390 = vmatpush2.msra.mxu0 0.0
  %1391 = vmatprep.subr.mxu0 0.0
  %1392 = vmatpush2.msra.mxu0 0.0
  %1393 = vmatprep.subr.mxu0 0.0
  %1394 = vmatpush2.msra.mxu0 0.0
  %1395 = vmatprep.subr.mxu0 0.0
  %1396 = vmatpush2.msra.mxu0 0.0
  %1397 = vmatprep.mubr.f32.mxu0 0.0
  %1398 = vmatmul.mubr.f32.gmra.mxu0 %v1329
  %v1399 = vpop.f32.mrf.mxu0
  %v1400 = vadd.f32 0.0, %v1399
  %v1401 = vpop.f32.mrf.mxu0
  %1402 = vmatprep.mubr.f32.mxu0 0.0
  %1403 = vmatmul.mubr.f32.gmra.mxu0 %v1331
  %v1404 = vpop.f32.mrf.mxu0
  %v1405 = vpop.f32.mrf.mxu0
  %v1406 = vadd.f32 0.0, %v1405
  %1407 = vdwg.mxu0
  %v1408 = vld [vmem:[#allocation2 + $0x60] sm:$0xff]
  %v1409 = vadd.f32 %v1408, %v1400
  %v1410 = vld [vmem:[#allocation2 + $0x18] sm:$0xff]
  %v1411 = vadd.f32 %v1410, %v1406
  %v1412 = vxor.u32 %v1409, 2147483648
  %v1413 = vxor.u32 %v1411, 2147483648
  %v1414 = vmul.f32 %v1412, 1.442695
  %v1415 = vpow.pop %v1414
  %v1416 = vmul.f32 %v1413, 1.442695
  %v1417 = vpow.pop %v1416
  %v1418 = vadd.f32 %v1415, 1.0
  %v1419 = vadd.f32 %v1417, 1.0
  %v1420 = vrcp.pop %v1418
  %v1421 = vmul.f32 1.0, %v1420
  %v1422 = vrcp.pop %v1419
  %v1423 = vmul.f32 1.0, %v1422
  %v1424 = vtanh.pop %v1409
  %v1425 = vtanh.pop %v1411
  %v1426 = vmul.f32 %v1421, %v1309
  %v1427 = vmul.f32 %v1423, %v1310
  %1430 = vrot.lane.b32.xlu0 %v1424, 32
  %v1431 = vpop.permute.xlu0 %1430
  %1432 = vrot.lane.b32.xlu0 %v1425, 32
  %v1433 = vpop.permute.xlu0 %1432
  %v1436 = vmul.f32 %v1421, %v1431
  %v1437 = vmul.f32 %v1423, %v1433
  %1440 = vrot.lane.b32.xlu0 %v1436, 32
  %v1441 = vpop.permute.xlu0 %1440
  %1442 = vrot.lane.b32.xlu0 %v1437, 32
  %v1443 = vpop.permute.xlu0 %1442
  %v1446 = vadd.f32 %v1426, %v1441
  %v1447 = vadd.f32 %v1427, %v1443
  %v1448 = vtanh.pop %v1446
  %v1449 = vtanh.pop %v1447
  %1452 = vrot.lane.b32.xlu0 %v1448, 32
  %v1453 = vpop.permute.xlu0 %1452
  %1454 = vrot.lane.b32.xlu0 %v1449, 32
  %v1455 = vpop.permute.xlu0 %1454
  %v1458 = vmul.f32 %v1421, %v1453
  %v1459 = vmul.f32 %v1423, %v1455
  %1462 = vrot.lane.b32.xlu0 %v1458, 64
  %v1463 = vpop.permute.xlu0 %1462
  %1464 = vrot.lane.b32.xlu0 %v1459, 64
  %v1465 = vpop.permute.xlu0 %1464
  %v1466 = vsel %vm346, %v1463, 0
  %v1468 = vsel %vm346, %v1465, 0
  %1470 = vmatprep.subr.mxu0 0.0
  %1471 = vmatpush1.msra.mxu0 0.0
  %1472 = vmatprep.subr.mxu0 0.0
  %1473 = vmatpush1.msra.mxu0 0.0
  %1474 = vmatprep.subr.mxu0 0.0
  %1475 = vmatpush1.msra.mxu0 0.0
  %1476 = vmatprep.subr.mxu0 0.0
  %1477 = vmatpush1.msra.mxu0 0.0
  %1478 = vmatprep.subr.mxu0 0.0
  %1479 = vmatpush1.msra.mxu0 0.0
  %1480 = vmatprep.subr.mxu0 0.0
  %1481 = vmatpush1.msra.mxu0 0.0
  %1482 = vmatprep.subr.mxu0 0.0
  %1483 = vmatpush1.msra.mxu0 0.0
  %1484 = vmatprep.subr.mxu0 0.0
  %1485 = vmatpush1.msra.mxu0 0.0
  %1486 = vmatprep.subr.mxu0 0.0
  %1487 = vmatpush1.msra.mxu0 0.0
  %1488 = vmatprep.subr.mxu0 0.0
  %1489 = vmatpush1.msra.mxu0 0.0
  %1490 = vmatprep.subr.mxu0 0.0
  %1491 = vmatpush1.msra.mxu0 0.0
  %1492 = vmatprep.subr.mxu0 0.0
  %1493 = vmatpush1.msra.mxu0 0.0
  %1494 = vmatprep.subr.mxu0 %v507
  %1495 = vmatpush1.msra.mxu0 %v506
  %1496 = vmatprep.subr.mxu0 %v505
  %1497 = vmatpush1.msra.mxu0 %v504
  %1498 = vmatprep.subr.mxu0 %v503
  %1499 = vmatpush1.msra.mxu0 %v502
  %1500 = vmatprep.subr.mxu0 %v501
  %1501 = vmatpush1.msra.mxu0 %v500
  %1502 = vmatprep.subr.mxu0 0.0
  %1503 = vmatpush2.msra.mxu0 0.0
  %1504 = vmatprep.subr.mxu0 0.0
  %1505 = vmatpush2.msra.mxu0 0.0
  %1506 = vmatprep.subr.mxu0 0.0
  %1507 = vmatpush2.msra.mxu0 0.0
  %1508 = vmatprep.subr.mxu0 0.0
  %1509 = vmatpush2.msra.mxu0 0.0
  %1510 = vmatprep.subr.mxu0 0.0
  %1511 = vmatpush2.msra.mxu0 0.0
  %1512 = vmatprep.subr.mxu0 0.0
  %1513 = vmatpush2.msra.mxu0 0.0
  %1514 = vmatprep.subr.mxu0 0.0
  %1515 = vmatpush2.msra.mxu0 0.0
  %1516 = vmatprep.subr.mxu0 0.0
  %1517 = vmatpush2.msra.mxu0 0.0
  %1518 = vmatprep.subr.mxu0 0.0
  %1519 = vmatpush2.msra.mxu0 0.0
  %1520 = vmatprep.subr.mxu0 0.0
  %1521 = vmatpush2.msra.mxu0 0.0
  %1522 = vmatprep.subr.mxu0 0.0
  %1523 = vmatpush2.msra.mxu0 0.0
  %1524 = vmatprep.subr.mxu0 0.0
  %1525 = vmatpush2.msra.mxu0 0.0
  %1526 = vmatprep.subr.mxu0 0.0
  %1527 = vmatpush2.msra.mxu0 0.0
  %1528 = vmatprep.subr.mxu0 0.0
  %1529 = vmatpush2.msra.mxu0 0.0
  %1530 = vmatprep.subr.mxu0 0.0
  %1531 = vmatpush2.msra.mxu0 0.0
  %1532 = vmatprep.subr.mxu0 0.0
  %1533 = vmatpush2.msra.mxu0 0.0
  %1534 = vmatprep.mubr.f32.mxu0 0.0
  %1535 = vmatmul.mubr.f32.gmra.mxu0 %v1466
  %v1536 = vpop.f32.mrf.mxu0
  %v1537 = vadd.f32 0.0, %v1536
  %v1538 = vpop.f32.mrf.mxu0
  %1539 = vmatprep.mubr.f32.mxu0 0.0
  %1540 = vmatmul.mubr.f32.gmra.mxu0 %v1468
  %v1541 = vpop.f32.mrf.mxu0
  %v1542 = vpop.f32.mrf.mxu0
  %v1543 = vadd.f32 0.0, %v1542
  %1544 = vdwg.mxu0
  %v1545 = vld [vmem:[#allocation2 + $0x70] sm:$0xff]
  %v1546 = vadd.f32 %v1545, %v1537
  %v1547 = vld [vmem:[#allocation2 + $0x8] sm:$0xff]
  %v1548 = vadd.f32 %v1547, %v1543
  %v1549 = vxor.u32 %v1546, 2147483648
  %v1550 = vxor.u32 %v1548, 2147483648
  %v1551 = vmul.f32 %v1549, 1.442695
  %v1552 = vpow.pop %v1551
  %v1553 = vmul.f32 %v1550, 1.442695
  %v1554 = vpow.pop %v1553
  %v1555 = vadd.f32 %v1552, 1.0
  %v1556 = vadd.f32 %v1554, 1.0
  %v1557 = vrcp.pop %v1555
  %v1558 = vmul.f32 1.0, %v1557
  %v1559 = vrcp.pop %v1556
  %v1560 = vmul.f32 1.0, %v1559
  %v1561 = vtanh.pop %v1546
  %v1562 = vtanh.pop %v1548
  %v1563 = vmul.f32 %v1558, %v1446
  %v1564 = vmul.f32 %v1560, %v1447
  %1567 = vrot.lane.b32.xlu0 %v1561, 32
  %v1568 = vpop.permute.xlu0 %1567
  %1569 = vrot.lane.b32.xlu0 %v1562, 32
  %v1570 = vpop.permute.xlu0 %1569
  %v1573 = vmul.f32 %v1558, %v1568
  %v1574 = vmul.f32 %v1560, %v1570
  %1577 = vrot.lane.b32.xlu0 %v1573, 32
  %v1578 = vpop.permute.xlu0 %1577
  %1579 = vrot.lane.b32.xlu0 %v1574, 32
  %v1580 = vpop.permute.xlu0 %1579
  %v1583 = vadd.f32 %v1563, %v1578
  %v1584 = vadd.f32 %v1564, %v1580
  %v1585 = vtanh.pop %v1583
  %v1586 = vtanh.pop %v1584
  %1589 = vrot.lane.b32.xlu0 %v1585, 32
  %v1590 = vpop.permute.xlu0 %1589
  %1591 = vrot.lane.b32.xlu0 %v1586, 32
  %v1592 = vpop.permute.xlu0 %1591
  %v1595 = vmul.f32 %v1558, %v1590
  %v1596 = vmul.f32 %v1560, %v1592
  %v1597 = vld [vmem:[%s2 + $0x140] sm:$0xff]
  %v1598 = vld [vmem:[%s2 + $0x150] sm:$0xff]
  %v1599 = vld [vmem:[%s2 + $0x160] sm:$0xff]
  %v1600 = vld [vmem:[%s2 + $0x170] sm:$0xff]
  %v1601 = vld [vmem:[%s2 + $0x180] sm:$0xff]
  %v1602 = vld [vmem:[%s2 + $0x190] sm:$0xff]
  %v1603 = vld [vmem:[%s2 + $0x1a0] sm:$0xff]
  %v1604 = vld [vmem:[%s2 + $0x1b0] sm:$0xff]
  %v1605 = vld [vmem:[%s2 + $0x1c0] sm:$0xff]
  %v1606 = vld [vmem:[%s2 + $0x1d0] sm:$0xff]
  %v1607 = vld [vmem:[%s2 + $0x1e0] sm:$0xff]
  %v1608 = vld [vmem:[%s2 + $0x1f0] sm:$0xff]
  %1610 = vrot.lane.b32.xlu0 %v1595, 64
  %v1611 = vpop.permute.xlu0 %1610
  %v1612 = vsel %vm346, %v1611, 0
  %1614 = vmatprep.subr.mxu0 0.0
  %1615 = vmatpush1.msra.mxu0 0.0
  %1616 = vmatprep.subr.mxu0 0.0
  %1617 = vmatpush1.msra.mxu0 0.0
  %1618 = vmatprep.subr.mxu0 0.0
  %1619 = vmatpush1.msra.mxu0 0.0
  %1620 = vmatprep.subr.mxu0 0.0
  %1621 = vmatpush1.msra.mxu0 0.0
  %1622 = vmatprep.subr.mxu0 0.0
  %1623 = vmatpush1.msra.mxu0 0.0
  %1624 = vmatprep.subr.mxu0 0.0
  %1625 = vmatpush1.msra.mxu0 0.0
  %1626 = vmatprep.subr.mxu0 0.0
  %1627 = vmatpush1.msra.mxu0 0.0
  %1628 = vmatprep.subr.mxu0 0.0
  %1629 = vmatpush1.msra.mxu0 0.0
  %1630 = vmatprep.subr.mxu0 0.0
  %1631 = vmatpush1.msra.mxu0 0.0
  %1632 = vmatprep.subr.mxu0 0.0
  %1633 = vmatpush1.msra.mxu0 0.0
  %1634 = vmatprep.subr.mxu0 0.0
  %1635 = vmatpush1.msra.mxu0 0.0
  %1636 = vmatprep.subr.mxu0 0.0
  %1637 = vmatpush1.msra.mxu0 0.0
  %1638 = vmatprep.subr.mxu0 0.0
  %1639 = vmatpush1.msra.mxu0 %v1604
  %1640 = vmatprep.subr.mxu0 0.0
  %1641 = vmatpush1.msra.mxu0 %v1603
  %1642 = vmatprep.subr.mxu0 0.0
  %1643 = vmatpush1.msra.mxu0 %v1602
  %1644 = vmatprep.subr.mxu0 0.0
  %1645 = vmatpush1.msra.mxu0 %v1601
  %1646 = vmatprep.subr.mxu0 0.0
  %1647 = vmatpush2.msra.mxu0 0.0
  %1648 = vmatprep.subr.mxu0 0.0
  %1649 = vmatpush2.msra.mxu0 0.0
  %1650 = vmatprep.subr.mxu0 0.0
  %1651 = vmatpush2.msra.mxu0 0.0
  %1652 = vmatprep.subr.mxu0 0.0
  %1653 = vmatpush2.msra.mxu0 0.0
  %1654 = vmatprep.subr.mxu0 0.0
  %1655 = vmatpush2.msra.mxu0 0.0
  %1656 = vmatprep.subr.mxu0 0.0
  %1657 = vmatpush2.msra.mxu0 0.0
  %1658 = vmatprep.subr.mxu0 0.0
  %1659 = vmatpush2.msra.mxu0 0.0
  %1660 = vmatprep.subr.mxu0 0.0
  %1661 = vmatpush2.msra.mxu0 0.0
  %1662 = vmatprep.subr.mxu0 0.0
  %1663 = vmatpush2.msra.mxu0 0.0
  %1664 = vmatprep.subr.mxu0 0.0
  %1665 = vmatpush2.msra.mxu0 0.0
  %1666 = vmatprep.subr.mxu0 0.0
  %1667 = vmatpush2.msra.mxu0 0.0
  %1668 = vmatprep.subr.mxu0 0.0
  %1669 = vmatpush2.msra.mxu0 0.0
  %1670 = vmatprep.subr.mxu0 0.0
  %1671 = vmatpush2.msra.mxu0 0.0
  %1672 = vmatprep.subr.mxu0 0.0
  %1673 = vmatpush2.msra.mxu0 0.0
  %1674 = vmatprep.subr.mxu0 0.0
  %1675 = vmatpush2.msra.mxu0 0.0
  %1676 = vmatprep.subr.mxu0 0.0
  %1677 = vmatpush2.msra.mxu0 0.0
  %1678 = vmatprep.mubr.f32.mxu0 0.0
  %1679 = vmatmul.mubr.f32.gmra.mxu0 %v1612
  %v1680 = vpop.f32.mrf.mxu0
  %v1681 = vadd.f32 0.0, %v1680
  %v1682 = vpop.f32.mrf.mxu0
  %1683 = vdwg.mxu0
  %v1685 = vsel %vm346, %v316, 0
  %1687 = vmatprep.subr.mxu0 0.0
  %1688 = vmatpush1.msra.mxu0 0.0
  %1689 = vmatprep.subr.mxu0 0.0
  %1690 = vmatpush1.msra.mxu0 0.0
  %1691 = vmatprep.subr.mxu0 0.0
  %1692 = vmatpush1.msra.mxu0 0.0
  %1693 = vmatprep.subr.mxu0 0.0
  %1694 = vmatpush1.msra.mxu0 0.0
  %1695 = vmatprep.subr.mxu0 0.0
  %1696 = vmatpush1.msra.mxu0 0.0
  %1697 = vmatprep.subr.mxu0 0.0
  %1698 = vmatpush1.msra.mxu0 0.0
  %1699 = vmatprep.subr.mxu0 0.0
  %1700 = vmatpush1.msra.mxu0 0.0
  %1701 = vmatprep.subr.mxu0 0.0
  %1702 = vmatpush1.msra.mxu0 0.0
  %1703 = vmatprep.subr.mxu0 0.0
  %1704 = vmatpush1.msra.mxu0 0.0
  %1705 = vmatprep.subr.mxu0 0.0
  %1706 = vmatpush1.msra.mxu0 0.0
  %1707 = vmatprep.subr.mxu0 0.0
  %1708 = vmatpush1.msra.mxu0 0.0
  %1709 = vmatprep.subr.mxu0 0.0
  %1710 = vmatpush1.msra.mxu0 0.0
  %1711 = vmatprep.subr.mxu0 0.0
  %1712 = vmatpush1.msra.mxu0 %v1600
  %1713 = vmatprep.subr.mxu0 0.0
  %1714 = vmatpush1.msra.mxu0 %v1599
  %1715 = vmatprep.subr.mxu0 0.0
  %1716 = vmatpush1.msra.mxu0 %v1598
  %1717 = vmatprep.subr.mxu0 0.0
  %1718 = vmatpush1.msra.mxu0 %v1597
  %1719 = vmatprep.subr.mxu0 0.0
  %1720 = vmatpush2.msra.mxu0 0.0
  %1721 = vmatprep.subr.mxu0 0.0
  %1722 = vmatpush2.msra.mxu0 0.0
  %1723 = vmatprep.subr.mxu0 0.0
  %1724 = vmatpush2.msra.mxu0 0.0
  %1725 = vmatprep.subr.mxu0 0.0
  %1726 = vmatpush2.msra.mxu0 0.0
  %1727 = vmatprep.subr.mxu0 0.0
  %1728 = vmatpush2.msra.mxu0 0.0
  %1729 = vmatprep.subr.mxu0 0.0
  %1730 = vmatpush2.msra.mxu0 0.0
  %1731 = vmatprep.subr.mxu0 0.0
  %1732 = vmatpush2.msra.mxu0 0.0
  %1733 = vmatprep.subr.mxu0 0.0
  %1734 = vmatpush2.msra.mxu0 0.0
  %1735 = vmatprep.subr.mxu0 0.0
  %1736 = vmatpush2.msra.mxu0 0.0
  %1737 = vmatprep.subr.mxu0 0.0
  %1738 = vmatpush2.msra.mxu0 0.0
  %1739 = vmatprep.subr.mxu0 0.0
  %1740 = vmatpush2.msra.mxu0 0.0
  %1741 = vmatprep.subr.mxu0 0.0
  %1742 = vmatpush2.msra.mxu0 0.0
  %1743 = vmatprep.subr.mxu0 0.0
  %1744 = vmatpush2.msra.mxu0 0.0
  %1745 = vmatprep.subr.mxu0 0.0
  %1746 = vmatpush2.msra.mxu0 0.0
  %1747 = vmatprep.subr.mxu0 0.0
  %1748 = vmatpush2.msra.mxu0 0.0
  %1749 = vmatprep.subr.mxu0 0.0
  %1750 = vmatpush2.msra.mxu0 0.0
  %1751 = vmatprep.mubr.f32.mxu0 0.0
  %1752 = vmatmul.mubr.f32.gmra.mxu0 %v1685
  %v1753 = vpop.f32.mrf.mxu0
  %v1754 = vadd.f32 %v1681, %v1753
  %v1755 = vpop.f32.mrf.mxu0
  %1756 = vdwg.mxu0
  %1758 = vrot.lane.b32.xlu0 %v1596, 64
  %v1759 = vpop.permute.xlu0 %1758
  %v1760 = vsel %vm346, %v1759, 0
  %1762 = vmatprep.subr.mxu0 0.0
  %1763 = vmatpush1.msra.mxu0 0.0
  %1764 = vmatprep.subr.mxu0 0.0
  %1765 = vmatpush1.msra.mxu0 0.0
  %1766 = vmatprep.subr.mxu0 0.0
  %1767 = vmatpush1.msra.mxu0 0.0
  %1768 = vmatprep.subr.mxu0 0.0
  %1769 = vmatpush1.msra.mxu0 0.0
  %1770 = vmatprep.subr.mxu0 0.0
  %1771 = vmatpush1.msra.mxu0 0.0
  %1772 = vmatprep.subr.mxu0 0.0
  %1773 = vmatpush1.msra.mxu0 0.0
  %1774 = vmatprep.subr.mxu0 0.0
  %1775 = vmatpush1.msra.mxu0 0.0
  %1776 = vmatprep.subr.mxu0 0.0
  %1777 = vmatpush1.msra.mxu0 0.0
  %1778 = vmatprep.subr.mxu0 0.0
  %1779 = vmatpush1.msra.mxu0 0.0
  %1780 = vmatprep.subr.mxu0 0.0
  %1781 = vmatpush1.msra.mxu0 0.0
  %1782 = vmatprep.subr.mxu0 0.0
  %1783 = vmatpush1.msra.mxu0 0.0
  %1784 = vmatprep.subr.mxu0 0.0
  %1785 = vmatpush1.msra.mxu0 0.0
  %1786 = vmatprep.subr.mxu0 0.0
  %1787 = vmatpush1.msra.mxu0 %v1608
  %1788 = vmatprep.subr.mxu0 0.0
  %1789 = vmatpush1.msra.mxu0 %v1607
  %1790 = vmatprep.subr.mxu0 0.0
  %1791 = vmatpush1.msra.mxu0 %v1606
  %1792 = vmatprep.subr.mxu0 0.0
  %1793 = vmatpush1.msra.mxu0 %v1605
  %1794 = vmatprep.subr.mxu0 0.0
  %1795 = vmatpush2.msra.mxu0 0.0
  %1796 = vmatprep.subr.mxu0 0.0
  %1797 = vmatpush2.msra.mxu0 0.0
  %1798 = vmatprep.subr.mxu0 0.0
  %1799 = vmatpush2.msra.mxu0 0.0
  %1800 = vmatprep.subr.mxu0 0.0
  %1801 = vmatpush2.msra.mxu0 0.0
  %1802 = vmatprep.subr.mxu0 0.0
  %1803 = vmatpush2.msra.mxu0 0.0
  %1804 = vmatprep.subr.mxu0 0.0
  %1805 = vmatpush2.msra.mxu0 0.0
  %1806 = vmatprep.subr.mxu0 0.0
  %1807 = vmatpush2.msra.mxu0 0.0
  %1808 = vmatprep.subr.mxu0 0.0
  %1809 = vmatpush2.msra.mxu0 0.0
  %1810 = vmatprep.subr.mxu0 0.0
  %1811 = vmatpush2.msra.mxu0 0.0
  %1812 = vmatprep.subr.mxu0 0.0
  %1813 = vmatpush2.msra.mxu0 0.0
  %1814 = vmatprep.subr.mxu0 0.0
  %1815 = vmatpush2.msra.mxu0 0.0
  %1816 = vmatprep.subr.mxu0 0.0
  %1817 = vmatpush2.msra.mxu0 0.0
  %1818 = vmatprep.subr.mxu0 0.0
  %1819 = vmatpush2.msra.mxu0 0.0
  %1820 = vmatprep.subr.mxu0 0.0
  %1821 = vmatpush2.msra.mxu0 0.0
  %1822 = vmatprep.subr.mxu0 0.0
  %1823 = vmatpush2.msra.mxu0 0.0
  %1824 = vmatprep.subr.mxu0 0.0
  %1825 = vmatpush2.msra.mxu0 0.0
  %1826 = vmatprep.mubr.f32.mxu0 0.0
  %1827 = vmatmul.mubr.f32.gmra.mxu0 %v1760
  %v1828 = vpop.f32.mrf.mxu0
  %v1829 = vadd.f32 0.0, %v1828
  %v1830 = vpop.f32.mrf.mxu0
  %1831 = vdwg.mxu0
  %v1832 = vadd.f32 %v1754, %v1829
  %v1833 = vld [vmem:[%s2 + $0x200] ss:$0 sm:$0xff]
  %v1834 = vadd.f32 %v1832, %v1833
  %v1835 = vmax.f32 %v1834, 0.0
  %v1836 = vld [vmem:[%s2 + $0x210] sm:$0xff]
  %v1837 = vld [vmem:[%s2 + $0x220] sm:$0xff]
  %v1838 = vld [vmem:[%s2 + $0x230] sm:$0xff]
  %v1839 = vld [vmem:[%s2 + $0x240] sm:$0xff]
  %v1840 = vld [vmem:[%s2 + $0x250] ss:$0 sm:$0xff]
  %v1842 = vsel %vm346, %v1835, 0
  %1844 = vmatprep.subr.mxu0 0.0
  %1845 = vmatpush1.msra.mxu0 0.0
  %1846 = vmatprep.subr.mxu0 0.0
  %1847 = vmatpush1.msra.mxu0 0.0
  %1848 = vmatprep.subr.mxu0 0.0
  %1849 = vmatpush1.msra.mxu0 0.0
  %1850 = vmatprep.subr.mxu0 0.0
  %1851 = vmatpush1.msra.mxu0 0.0
  %1852 = vmatprep.subr.mxu0 0.0
  %1853 = vmatpush1.msra.mxu0 0.0
  %1854 = vmatprep.subr.mxu0 0.0
  %1855 = vmatpush1.msra.mxu0 0.0
  %1856 = vmatprep.subr.mxu0 0.0
  %1857 = vmatpush1.msra.mxu0 0.0
  %1858 = vmatprep.subr.mxu0 0.0
  %1859 = vmatpush1.msra.mxu0 0.0
  %1860 = vmatprep.subr.mxu0 0.0
  %1861 = vmatpush1.msra.mxu0 0.0
  %1862 = vmatprep.subr.mxu0 0.0
  %1863 = vmatpush1.msra.mxu0 0.0
  %1864 = vmatprep.subr.mxu0 0.0
  %1865 = vmatpush1.msra.mxu0 0.0
  %1866 = vmatprep.subr.mxu0 0.0
  %1867 = vmatpush1.msra.mxu0 0.0
  %1868 = vmatprep.subr.mxu0 0.0
  %1869 = vmatpush1.msra.mxu0 %v1839
  %1870 = vmatprep.subr.mxu0 0.0
  %1871 = vmatpush1.msra.mxu0 %v1838
  %1872 = vmatprep.subr.mxu0 0.0
  %1873 = vmatpush1.msra.mxu0 %v1837
  %1874 = vmatprep.subr.mxu0 0.0
  %1875 = vmatpush1.msra.mxu0 %v1836
  %1876 = vmatprep.subr.mxu0 0.0
  %1877 = vmatpush2.msra.mxu0 0.0
  %1878 = vmatprep.subr.mxu0 0.0
  %1879 = vmatpush2.msra.mxu0 0.0
  %1880 = vmatprep.subr.mxu0 0.0
  %1881 = vmatpush2.msra.mxu0 0.0
  %1882 = vmatprep.subr.mxu0 0.0
  %1883 = vmatpush2.msra.mxu0 0.0
  %1884 = vmatprep.subr.mxu0 0.0
  %1885 = vmatpush2.msra.mxu0 0.0
  %1886 = vmatprep.subr.mxu0 0.0
  %1887 = vmatpush2.msra.mxu0 0.0
  %1888 = vmatprep.subr.mxu0 0.0
  %1889 = vmatpush2.msra.mxu0 0.0
  %1890 = vmatprep.subr.mxu0 0.0
  %1891 = vmatpush2.msra.mxu0 0.0
  %1892 = vmatprep.subr.mxu0 0.0
  %1893 = vmatpush2.msra.mxu0 0.0
  %1894 = vmatprep.subr.mxu0 0.0
  %1895 = vmatpush2.msra.mxu0 0.0
  %1896 = vmatprep.subr.mxu0 0.0
  %1897 = vmatpush2.msra.mxu0 0.0
  %1898 = vmatprep.subr.mxu0 0.0
  %1899 = vmatpush2.msra.mxu0 0.0
  %1900 = vmatprep.subr.mxu0 0.0
  %1901 = vmatpush2.msra.mxu0 0.0
  %1902 = vmatprep.subr.mxu0 0.0
  %1903 = vmatpush2.msra.mxu0 0.0
  %1904 = vmatprep.subr.mxu0 0.0
  %1905 = vmatpush2.msra.mxu0 0.0
  %1906 = vmatprep.subr.mxu0 0.0
  %1907 = vmatpush2.msra.mxu0 0.0
  %1908 = vmatprep.mubr.f32.mxu0 0.0
  %1909 = vmatmul.mubr.f32.gmra.mxu0 %v1842
  %v1910 = vpop.f32.mrf.mxu0
  %v1911 = vadd.f32 %v1840, %v1910
  %v1912 = vpop.f32.mrf.mxu0
  %1913 = vdwg.mxu0
  %v1914 = vmax.f32 %v1911, 0.0
  %v1915 = vld [vmem:[%s2 + $0x260] sm:$0xff]
  %v1916 = vld [vmem:[%s2 + $0x270] sm:$0xff]
  %v1917 = vld [vmem:[%s2 + $0x280] ss:$0 sm:$0xff]
  %vm1918 = vcmask 130048
  %v1920 = vsel %vm1918, %v1914, 0
  %1922 = vmatprep.subr.mxu0 0.0
  %1923 = vmatpush1.msra.mxu0 0.0
  %1924 = vmatprep.subr.mxu0 0.0
  %1925 = vmatpush1.msra.mxu0 0.0
  %1926 = vmatprep.subr.mxu0 0.0
  %1927 = vmatpush1.msra.mxu0 0.0
  %1928 = vmatprep.subr.mxu0 0.0
  %1929 = vmatpush1.msra.mxu0 0.0
  %1930 = vmatprep.subr.mxu0 0.0
  %1931 = vmatpush1.msra.mxu0 0.0
  %1932 = vmatprep.subr.mxu0 0.0
  %1933 = vmatpush1.msra.mxu0 0.0
  %1934 = vmatprep.subr.mxu0 0.0
  %1935 = vmatpush1.msra.mxu0 0.0
  %1936 = vmatprep.subr.mxu0 0.0
  %1937 = vmatpush1.msra.mxu0 0.0
  %1938 = vmatprep.subr.mxu0 0.0
  %1939 = vmatpush1.msra.mxu0 0.0
  %1940 = vmatprep.subr.mxu0 0.0
  %1941 = vmatpush1.msra.mxu0 0.0
  %1942 = vmatprep.subr.mxu0 0.0
  %1943 = vmatpush1.msra.mxu0 0.0
  %1944 = vmatprep.subr.mxu0 0.0
  %1945 = vmatpush1.msra.mxu0 0.0
  %1946 = vmatprep.subr.mxu0 0.0
  %1947 = vmatpush1.msra.mxu0 0.0
  %1948 = vmatprep.subr.mxu0 0.0
  %1949 = vmatpush1.msra.mxu0 0.0
  %1950 = vmatprep.subr.mxu0 0.0
  %1951 = vmatpush1.msra.mxu0 %v1916
  %1952 = vmatprep.subr.mxu0 0.0
  %1953 = vmatpush1.msra.mxu0 %v1915
  %1954 = vmatprep.subr.mxu0 0.0
  %1955 = vmatpush2.msra.mxu0 0.0
  %1956 = vmatprep.subr.mxu0 0.0
  %1957 = vmatpush2.msra.mxu0 0.0
  %1958 = vmatprep.subr.mxu0 0.0
  %1959 = vmatpush2.msra.mxu0 0.0
  %1960 = vmatprep.subr.mxu0 0.0
  %1961 = vmatpush2.msra.mxu0 0.0
  %1962 = vmatprep.subr.mxu0 0.0
  %1963 = vmatpush2.msra.mxu0 0.0
  %1964 = vmatprep.subr.mxu0 0.0
  %1965 = vmatpush2.msra.mxu0 0.0
  %1966 = vmatprep.subr.mxu0 0.0
  %1967 = vmatpush2.msra.mxu0 0.0
  %1968 = vmatprep.subr.mxu0 0.0
  %1969 = vmatpush2.msra.mxu0 0.0
  %1970 = vmatprep.subr.mxu0 0.0
  %1971 = vmatpush2.msra.mxu0 0.0
  %1972 = vmatprep.subr.mxu0 0.0
  %1973 = vmatpush2.msra.mxu0 0.0
  %1974 = vmatprep.subr.mxu0 0.0
  %1975 = vmatpush2.msra.mxu0 0.0
  %1976 = vmatprep.subr.mxu0 0.0
  %1977 = vmatpush2.msra.mxu0 0.0
  %1978 = vmatprep.subr.mxu0 0.0
  %1979 = vmatpush2.msra.mxu0 0.0
  %1980 = vmatprep.subr.mxu0 0.0
  %1981 = vmatpush2.msra.mxu0 0.0
  %1982 = vmatprep.subr.mxu0 0.0
  %1983 = vmatpush2.msra.mxu0 0.0
  %1984 = vmatprep.subr.mxu0 0.0
  %1985 = vmatpush2.msra.mxu0 0.0
  %1986 = vmatprep.mubr.f32.mxu0 0.0
  %1987 = vmatmul.mubr.f32.gmra.mxu0 %v1920
  %v1988 = vpop.f32.mrf.mxu0
  %v1989 = vadd.f32 %v1917, %v1988
  %v1990 = vpop.f32.mrf.mxu0
  %1991 = vdwg.mxu0
  %1992 = vst [vmem:[%s3] sm:$0xff] %v1989
  %1993 = vmax.xlane.f32.xlu0 %v1989
  %v1994 = vpop.xlane.xlu0 %1993
  %v1995 = vsub.f32 %v1989, %v1994
  %v1996 = vmul.f32 %v1995, 1.442695
  %v1997 = vpow.pop %v1996
  %1998 = vadd.xlane.f32.xlu0 %v1997
  %v1999 = vpop.xlane.xlu0 %1998
  %v2000 = vrcp.pop %v1999
  %v2001 = vmul.f32 %v1997, %v2000
  %v2002 = vld [vmem:[%s2 + $0x3d0] sm:$0xff]
  %v2003 = vld [vmem:[%s2 + $0x3e0] sm:$0xff]
  %v2004 = vld [vmem:[%s2 + $0x3f0] sm:$0xff]
  %v2005 = vld [vmem:[%s2 + $0x400] sm:$0xff]
  %v2006 = vld [vmem:[%s2 + $0x410] sm:$0xff]
  %v2007 = vld [vmem:[%s2 + $0x420] sm:$0xff]
  %v2008 = vld [vmem:[%s2 + $0x430] sm:$0xff]
  %v2009 = vld [vmem:[%s2 + $0x440] sm:$0xff]
  %v2010 = vld [vmem:[%s2 + $0x450] sm:$0xff]
  %v2011 = vld [vmem:[%s2 + $0x460] sm:$0xff]
  %v2012 = vld [vmem:[%s2 + $0x470] sm:$0xff]
  %v2013 = vld [vmem:[%s2 + $0x480] sm:$0xff]
  %v2014 = vld [vmem:[%s2 + $0x490] sm:$0xff]
  %v2015 = vld [vmem:[%s2 + $0x4a0] sm:$0xff]
  %v2016 = vld [vmem:[%s2 + $0x4b0] sm:$0xff]
  %v2017 = vld [vmem:[%s2 + $0x4c0] sm:$0xff]
  %v2018 = vld [vmem:[%s2 + $0x4d0] sm:$0xff]
  %v2019 = vld [vmem:[%s2 + $0x4e0] sm:$0xff]
  %v2020 = vld [vmem:[%s2 + $0x4f0] sm:$0xff]
  %v2021 = vld [vmem:[%s2 + $0x500] sm:$0xff]
  %2022 = vmatprep.subr.mxu0 0.0
  %2023 = vmatpush1.msra.mxu0 0.0
  %2024 = vmatprep.subr.mxu0 0.0
  %2025 = vmatpush1.msra.mxu0 0.0
  %2026 = vmatprep.subr.mxu0 0.0
  %2027 = vmatpush1.msra.mxu0 0.0
  %2028 = vmatprep.subr.mxu0 0.0
  %2029 = vmatpush1.msra.mxu0 0.0
  %2030 = vmatprep.subr.mxu0 0.0
  %2031 = vmatpush1.msra.mxu0 0.0
  %2032 = vmatprep.subr.mxu0 0.0
  %2033 = vmatpush1.msra.mxu0 0.0
  %2034 = vmatprep.subr.mxu0 0.0
  %2035 = vmatpush1.msra.mxu0 0.0
  %2036 = vmatprep.subr.mxu0 0.0
  %2037 = vmatpush1.msra.mxu0 0.0
  %2038 = vmatprep.subr.mxu0 0.0
  %2039 = vmatpush1.msra.mxu0 0.0
  %2040 = vmatprep.subr.mxu0 0.0
  %2041 = vmatpush1.msra.mxu0 0.0
  %2042 = vmatprep.subr.mxu0 0.0
  %2043 = vmatpush1.msra.mxu0 0.0
  %2044 = vmatprep.subr.mxu0 0.0
  %2045 = vmatpush1.msra.mxu0 0.0
  %2046 = vmatprep.subr.mxu0 0.0
  %2047 = vmatpush1.msra.mxu0 %v2021
  %2048 = vmatprep.subr.mxu0 0.0
  %2049 = vmatpush1.msra.mxu0 %v2020
  %2050 = vmatprep.subr.mxu0 0.0
  %2051 = vmatpush1.msra.mxu0 %v2019
  %2052 = vmatprep.subr.mxu0 0.0
  %2053 = vmatpush1.msra.mxu0 %v2018
  %2054 = vmatprep.subr.mxu0 0.0
  %2055 = vmatpush2.msra.mxu0 0.0
  %2056 = vmatprep.subr.mxu0 0.0
  %2057 = vmatpush2.msra.mxu0 0.0
  %2058 = vmatprep.subr.mxu0 0.0
  %2059 = vmatpush2.msra.mxu0 0.0
  %2060 = vmatprep.subr.mxu0 0.0
  %2061 = vmatpush2.msra.mxu0 0.0
  %2062 = vmatprep.subr.mxu0 0.0
  %2063 = vmatpush2.msra.mxu0 0.0
  %2064 = vmatprep.subr.mxu0 0.0
  %2065 = vmatpush2.msra.mxu0 0.0
  %2066 = vmatprep.subr.mxu0 0.0
  %2067 = vmatpush2.msra.mxu0 0.0
  %2068 = vmatprep.subr.mxu0 0.0
  %2069 = vmatpush2.msra.mxu0 0.0
  %2070 = vmatprep.subr.mxu0 0.0
  %2071 = vmatpush2.msra.mxu0 0.0
  %2072 = vmatprep.subr.mxu0 0.0
  %2073 = vmatpush2.msra.mxu0 0.0
  %2074 = vmatprep.subr.mxu0 0.0
  %2075 = vmatpush2.msra.mxu0 0.0
  %2076 = vmatprep.subr.mxu0 0.0
  %2077 = vmatpush2.msra.mxu0 0.0
  %2078 = vmatprep.subr.mxu0 0.0
  %2079 = vmatpush2.msra.mxu0 0.0
  %2080 = vmatprep.subr.mxu0 0.0
  %2081 = vmatpush2.msra.mxu0 0.0
  %2082 = vmatprep.subr.mxu0 0.0
  %2083 = vmatpush2.msra.mxu0 0.0
  %2084 = vmatprep.subr.mxu0 0.0
  %2085 = vmatpush2.msra.mxu0 0.0
  %2086 = vmatprep.mubr.f32.mxu0 0.0
  %2087 = vmatmul.mubr.f32.gmra.mxu0 %v1842
  %v2088 = vpop.f32.mrf.mxu0
  %v2089 = vadd.f32 0.0, %v2088
  %v2090 = vpop.f32.mrf.mxu0
  %2091 = vdwg.mxu0
  %2092 = vmatprep.subr.mxu0 0.0
  %2093 = vmatpush1.msra.mxu0 %v2017
  %2094 = vmatprep.subr.mxu0 0.0
  %2095 = vmatpush1.msra.mxu0 %v2016
  %2096 = vmatprep.subr.mxu0 0.0
  %2097 = vmatpush1.msra.mxu0 %v2015
  %2098 = vmatprep.subr.mxu0 0.0
  %2099 = vmatpush1.msra.mxu0 %v2014
  %2100 = vmatprep.subr.mxu0 0.0
  %2101 = vmatpush1.msra.mxu0 %v2013
  %2102 = vmatprep.subr.mxu0 0.0
  %2103 = vmatpush1.msra.mxu0 %v2012
  %2104 = vmatprep.subr.mxu0 0.0
  %2105 = vmatpush1.msra.mxu0 %v2011
  %2106 = vmatprep.subr.mxu0 0.0
  %2107 = vmatpush1.msra.mxu0 %v2010
  %2108 = vmatprep.subr.mxu0 0.0
  %2109 = vmatpush1.msra.mxu0 %v2009
  %2110 = vmatprep.subr.mxu0 0.0
  %2111 = vmatpush1.msra.mxu0 %v2008
  %2112 = vmatprep.subr.mxu0 0.0
  %2113 = vmatpush1.msra.mxu0 %v2007
  %2114 = vmatprep.subr.mxu0 0.0
  %2115 = vmatpush1.msra.mxu0 %v2006
  %2116 = vmatprep.subr.mxu0 0.0
  %2117 = vmatpush1.msra.mxu0 %v2005
  %2118 = vmatprep.subr.mxu0 0.0
  %2119 = vmatpush1.msra.mxu0 %v2004
  %2120 = vmatprep.subr.mxu0 0.0
  %2121 = vmatpush1.msra.mxu0 %v2003
  %2122 = vmatprep.subr.mxu0 0.0
  %2123 = vmatpush1.msra.mxu0 %v2002
  %2124 = vmatprep.subr.mxu0 0.0
  %2125 = vmatpush2.msra.mxu0 0.0
  %2126 = vmatprep.subr.mxu0 0.0
  %2127 = vmatpush2.msra.mxu0 0.0
  %2128 = vmatprep.subr.mxu0 0.0
  %2129 = vmatpush2.msra.mxu0 0.0
  %2130 = vmatprep.subr.mxu0 0.0
  %2131 = vmatpush2.msra.mxu0 0.0
  %2132 = vmatprep.subr.mxu0 0.0
  %2133 = vmatpush2.msra.mxu0 0.0
  %2134 = vmatprep.subr.mxu0 0.0
  %2135 = vmatpush2.msra.mxu0 0.0
  %2136 = vmatprep.subr.mxu0 0.0
  %2137 = vmatpush2.msra.mxu0 0.0
  %2138 = vmatprep.subr.mxu0 0.0
  %2139 = vmatpush2.msra.mxu0 0.0
  %2140 = vmatprep.subr.mxu0 0.0
  %2141 = vmatpush2.msra.mxu0 0.0
  %2142 = vmatprep.subr.mxu0 0.0
  %2143 = vmatpush2.msra.mxu0 0.0
  %2144 = vmatprep.subr.mxu0 0.0
  %2145 = vmatpush2.msra.mxu0 0.0
  %2146 = vmatprep.subr.mxu0 0.0
  %2147 = vmatpush2.msra.mxu0 0.0
  %2148 = vmatprep.subr.mxu0 0.0
  %2149 = vmatpush2.msra.mxu0 0.0
  %2150 = vmatprep.subr.mxu0 0.0
  %2151 = vmatpush2.msra.mxu0 0.0
  %2152 = vmatprep.subr.mxu0 0.0
  %2153 = vmatpush2.msra.mxu0 0.0
  %2154 = vmatprep.subr.mxu0 0.0
  %2155 = vmatpush2.msra.mxu0 0.0
  %2156 = vmatprep.mubr.f32.mxu0 0.0
  %2157 = vmatmul.mubr.f32.gmra.mxu0 %v2001
  %v2158 = vpop.f32.mrf.mxu0
  %v2159 = vadd.f32 %v2089, %v2158
  %v2160 = vpop.f32.mrf.mxu0
  %2161 = vdwg.mxu0
  %v2162 = vld [vmem:[%s2 + $0x510] ss:$0 sm:$0xff]
  %v2163 = vadd.f32 %v2159, %v2162
  %v2164 = vld [vmem:[%s2 + $0x290] sm:$0xff]
  %v2165 = vld [vmem:[%s2 + $0x2a0] sm:$0xff]
  %v2166 = vld [vmem:[%s2 + $0x2b0] sm:$0xff]
  %v2167 = vld [vmem:[%s2 + $0x2c0] sm:$0xff]
  %v2168 = vld [vmem:[%s2 + $0x2d0] sm:$0xff]
  %v2169 = vld [vmem:[%s2 + $0x2e0] sm:$0xff]
  %v2170 = vld [vmem:[%s2 + $0x2f0] sm:$0xff]
  %v2171 = vld [vmem:[%s2 + $0x300] sm:$0xff]
  %v2172 = vld [vmem:[%s2 + $0x310] sm:$0xff]
  %v2173 = vld [vmem:[%s2 + $0x320] sm:$0xff]
  %v2174 = vld [vmem:[%s2 + $0x330] sm:$0xff]
  %v2175 = vld [vmem:[%s2 + $0x340] sm:$0xff]
  %v2176 = vld [vmem:[%s2 + $0x350] sm:$0xff]
  %v2177 = vld [vmem:[%s2 + $0x360] sm:$0xff]
  %v2178 = vld [vmem:[%s2 + $0x370] sm:$0xff]
  %v2179 = vld [vmem:[%s2 + $0x380] sm:$0xff]
  %v2180 = vld [vmem:[%s2 + $0x390] sm:$0xff]
  %v2181 = vld [vmem:[%s2 + $0x3a0] sm:$0xff]
  %v2182 = vld [vmem:[%s2 + $0x3b0] sm:$0xff]
  %v2183 = vld [vmem:[%s2 + $0x3c0] sm:$0xff]
  %v2184 = vld [vmem:[%s2 + $0x520] sm:$0xff]
  %v2185 = vld [vmem:[%s2 + $0x530] sm:$0xff]
  %v2186 = vld [vmem:[%s2 + $0x540] sm:$0xff]
  %v2187 = vld [vmem:[%s2 + $0x550] sm:$0xff]
  %v2188 = vld [vmem:[%s2 + $0x560] ss:$0 sm:$0xff]
  %vm2189 = vcmp.eq.s32.totalorder %v109, 1
  %v2190 = vsel %vm2189, 1, 0
  %v2191 = vcvt.s32.f32 %v2190
  %2192 = vmatprep.subr.mxu0 0.0
  %2193 = vmatpush1.msra.mxu0 %v2179
  %2194 = vmatprep.subr.mxu0 0.0
  %2195 = vmatpush1.msra.mxu0 %v2178
  %2196 = vmatprep.subr.mxu0 0.0
  %2197 = vmatpush1.msra.mxu0 %v2177
  %2198 = vmatprep.subr.mxu0 0.0
  %2199 = vmatpush1.msra.mxu0 %v2176
  %2200 = vmatprep.subr.mxu0 0.0
  %2201 = vmatpush1.msra.mxu0 %v2175
  %2202 = vmatprep.subr.mxu0 0.0
  %2203 = vmatpush1.msra.mxu0 %v2174
  %2204 = vmatprep.subr.mxu0 0.0
  %2205 = vmatpush1.msra.mxu0 %v2173
  %2206 = vmatprep.subr.mxu0 0.0
  %2207 = vmatpush1.msra.mxu0 %v2172
  %2208 = vmatprep.subr.mxu0 0.0
  %2209 = vmatpush1.msra.mxu0 %v2171
  %2210 = vmatprep.subr.mxu0 0.0
  %2211 = vmatpush1.msra.mxu0 %v2170
  %2212 = vmatprep.subr.mxu0 0.0
  %2213 = vmatpush1.msra.mxu0 %v2169
  %2214 = vmatprep.subr.mxu0 0.0
  %2215 = vmatpush1.msra.mxu0 %v2168
  %2216 = vmatprep.subr.mxu0 0.0
  %2217 = vmatpush1.msra.mxu0 %v2167
  %2218 = vmatprep.subr.mxu0 0.0
  %2219 = vmatpush1.msra.mxu0 %v2166
  %2220 = vmatprep.subr.mxu0 0.0
  %2221 = vmatpush1.msra.mxu0 %v2165
  %2222 = vmatprep.subr.mxu0 0.0
  %2223 = vmatpush1.msra.mxu0 %v2164
  %2224 = vmatprep.subr.mxu0 0.0
  %2225 = vmatpush2.msra.mxu0 0.0
  %2226 = vmatprep.subr.mxu0 0.0
  %2227 = vmatpush2.msra.mxu0 0.0
  %2228 = vmatprep.subr.mxu0 0.0
  %2229 = vmatpush2.msra.mxu0 0.0
  %2230 = vmatprep.subr.mxu0 0.0
  %2231 = vmatpush2.msra.mxu0 0.0
  %2232 = vmatprep.subr.mxu0 0.0
  %2233 = vmatpush2.msra.mxu0 0.0
  %2234 = vmatprep.subr.mxu0 0.0
  %2235 = vmatpush2.msra.mxu0 0.0
  %2236 = vmatprep.subr.mxu0 0.0
  %2237 = vmatpush2.msra.mxu0 0.0
  %2238 = vmatprep.subr.mxu0 0.0
  %2239 = vmatpush2.msra.mxu0 0.0
  %2240 = vmatprep.subr.mxu0 0.0
  %2241 = vmatpush2.msra.mxu0 0.0
  %2242 = vmatprep.subr.mxu0 0.0
  %2243 = vmatpush2.msra.mxu0 0.0
  %2244 = vmatprep.subr.mxu0 0.0
  %2245 = vmatpush2.msra.mxu0 0.0
  %2246 = vmatprep.subr.mxu0 0.0
  %2247 = vmatpush2.msra.mxu0 0.0
  %2248 = vmatprep.subr.mxu0 0.0
  %2249 = vmatpush2.msra.mxu0 %v2183
  %2250 = vmatprep.subr.mxu0 0.0
  %2251 = vmatpush2.msra.mxu0 %v2182
  %2252 = vmatprep.subr.mxu0 0.0
  %2253 = vmatpush2.msra.mxu0 %v2181
  %2254 = vmatprep.subr.mxu0 0.0
  %2255 = vmatpush2.msra.mxu0 %v2180
  %2256 = vmatprep.mubr.f32.mxu0 %v509
  %2257 = vmatmul.mubr.f32.gmra.mxu0 %v2191
  %v2258 = vpop.f32.mrf.mxu0
  %v2259 = vadd.f32 %v2163, %v2258
  %v2260 = vpop.f32.mrf.mxu0
  %2261 = vdwg.mxu0
  %v2262 = vxor.u32 %v2259, 2147483648
  %v2263 = vmul.f32 %v2262, 1.442695
  %v2264 = vpow.pop %v2263
  %v2265 = vadd.f32 %v2264, 1.0
  %v2266 = vrcp.pop %v2265
  %v2267 = vmul.f32 1.0, %v2266
  %v2268 = vtanh.pop %v2259
  %v2269 = vmul.f32 %v2267, 0.0
  %2271 = vrot.lane.b32.xlu0 %v2268, 32
  %v2272 = vpop.permute.xlu0 %2271
  %v2274 = vmul.f32 %v2267, %v2272
  %2276 = vrot.lane.b32.xlu0 %v2274, 32
  %v2277 = vpop.permute.xlu0 %2276
  %v2279 = vadd.f32 %v2269, %v2277
  %v2280 = vtanh.pop %v2279
  %2282 = vrot.lane.b32.xlu0 %v2280, 32
  %v2283 = vpop.permute.xlu0 %2282
  %v2285 = vmul.f32 %v2267, %v2283
  %2287 = vrot.lane.b32.xlu0 %v2285, 64
  %v2288 = vpop.permute.xlu0 %2287
  %v2289 = vsel %vm346, %v2288, 0
  %2291 = vmatprep.subr.mxu0 0.0
  %2292 = vmatpush1.msra.mxu0 0.0
  %2293 = vmatprep.subr.mxu0 0.0
  %2294 = vmatpush1.msra.mxu0 0.0
  %2295 = vmatprep.subr.mxu0 0.0
  %2296 = vmatpush1.msra.mxu0 0.0
  %2297 = vmatprep.subr.mxu0 0.0
  %2298 = vmatpush1.msra.mxu0 0.0
  %2299 = vmatprep.subr.mxu0 0.0
  %2300 = vmatpush1.msra.mxu0 0.0
  %2301 = vmatprep.subr.mxu0 0.0
  %2302 = vmatpush1.msra.mxu0 0.0
  %2303 = vmatprep.subr.mxu0 0.0
  %2304 = vmatpush1.msra.mxu0 0.0
  %2305 = vmatprep.subr.mxu0 0.0
  %2306 = vmatpush1.msra.mxu0 0.0
  %2307 = vmatprep.subr.mxu0 0.0
  %2308 = vmatpush1.msra.mxu0 0.0
  %2309 = vmatprep.subr.mxu0 0.0
  %2310 = vmatpush1.msra.mxu0 0.0
  %2311 = vmatprep.subr.mxu0 0.0
  %2312 = vmatpush1.msra.mxu0 0.0
  %2313 = vmatprep.subr.mxu0 0.0
  %2314 = vmatpush1.msra.mxu0 0.0
  %2315 = vmatprep.subr.mxu0 0.0
  %2316 = vmatpush1.msra.mxu0 %v2187
  %2317 = vmatprep.subr.mxu0 0.0
  %2318 = vmatpush1.msra.mxu0 %v2186
  %2319 = vmatprep.subr.mxu0 0.0
  %2320 = vmatpush1.msra.mxu0 %v2185
  %2321 = vmatprep.subr.mxu0 0.0
  %2322 = vmatpush1.msra.mxu0 %v2184
  %2323 = vmatprep.subr.mxu0 0.0
  %2324 = vmatpush2.msra.mxu0 0.0
  %2325 = vmatprep.subr.mxu0 0.0
  %2326 = vmatpush2.msra.mxu0 0.0
  %2327 = vmatprep.subr.mxu0 0.0
  %2328 = vmatpush2.msra.mxu0 0.0
  %2329 = vmatprep.subr.mxu0 0.0
  %2330 = vmatpush2.msra.mxu0 0.0
  %2331 = vmatprep.subr.mxu0 0.0
  %2332 = vmatpush2.msra.mxu0 0.0
  %2333 = vmatprep.subr.mxu0 0.0
  %2334 = vmatpush2.msra.mxu0 0.0
  %2335 = vmatprep.subr.mxu0 0.0
  %2336 = vmatpush2.msra.mxu0 0.0
  %2337 = vmatprep.subr.mxu0 0.0
  %2338 = vmatpush2.msra.mxu0 0.0
  %2339 = vmatprep.subr.mxu0 0.0
  %2340 = vmatpush2.msra.mxu0 0.0
  %2341 = vmatprep.subr.mxu0 0.0
  %2342 = vmatpush2.msra.mxu0 0.0
  %2343 = vmatprep.subr.mxu0 0.0
  %2344 = vmatpush2.msra.mxu0 0.0
  %2345 = vmatprep.subr.mxu0 0.0
  %2346 = vmatpush2.msra.mxu0 0.0
  %2347 = vmatprep.subr.mxu0 0.0
  %2348 = vmatpush2.msra.mxu0 0.0
  %2349 = vmatprep.subr.mxu0 0.0
  %2350 = vmatpush2.msra.mxu0 0.0
  %2351 = vmatprep.subr.mxu0 0.0
  %2352 = vmatpush2.msra.mxu0 0.0
  %2353 = vmatprep.subr.mxu0 0.0
  %2354 = vmatpush2.msra.mxu0 0.0
  %2355 = vmatprep.mubr.f32.mxu0 0.0
  %2356 = vmatmul.mubr.f32.gmra.mxu0 %v2289
  %v2357 = vpop.f32.mrf.mxu0
  %v2358 = vadd.f32 %v2188, %v2357
  %v2359 = vpop.f32.mrf.mxu0
  %2360 = vdwg.mxu0
  %2361 = vst [vmem:[%s4] sm:$0xff] %v2358
  %2362 = vmax.xlane.f32.xlu0 %v2358
  %v2363 = vpop.xlane.xlu0 %2362
  %vm2364 = vcmp.eq.f32.partialorder %v2358, %v2363
  %v2365 = vsel %vm2364, %v109, 128
  %v2366 = vand.u32 %v2365, 65535
  %v2367 = vshra.s32 %v2365, 16
  %v2368 = vcvt.s32.f32 %v2366
  %v2369 = vcvt.s32.f32 %v2367
  %2370 = vmin.xlane.f32.xlu0 %v2369
  %v2371 = vpop.xlane.xlu0 %2370
  %vm2372 = vcmp.eq.f32.partialorder %v2369, %v2371
  %v2373 = vsel %vm2372, %v2368, inf
  %2374 = vmin.xlane.f32.xlu0 %v2373
  %v2375 = vpop.xlane.xlu0 %2374
  %v2376 = vcvt.f32.s32 %v2375
  %v2377 = vcvt.f32.s32 %v2371
  %v2378 = vshll.u32 %v2377, 16
  %v2379 = vadd.s32 %v2378, %v2376
  %vm2380 = vcmp.eq.s32.totalorder %v109, %v2379
  %v2381 = vsel %vm2380, 1, 0
  %v2382 = vcvt.s32.f32 %v2381
  %2383 = vmatprep.subr.mxu0 0.0
  %2384 = vmatpush1.msra.mxu0 %v2179
  %2385 = vmatprep.subr.mxu0 0.0
  %2386 = vmatpush1.msra.mxu0 %v2178
  %2387 = vmatprep.subr.mxu0 0.0
  %2388 = vmatpush1.msra.mxu0 %v2177
  %2389 = vmatprep.subr.mxu0 0.0
  %2390 = vmatpush1.msra.mxu0 %v2176
  %2391 = vmatprep.subr.mxu0 0.0
  %2392 = vmatpush1.msra.mxu0 %v2175
  %2393 = vmatprep.subr.mxu0 0.0
  %2394 = vmatpush1.msra.mxu0 %v2174
  %2395 = vmatprep.subr.mxu0 0.0
  %2396 = vmatpush1.msra.mxu0 %v2173
  %2397 = vmatprep.subr.mxu0 0.0
  %2398 = vmatpush1.msra.mxu0 %v2172
  %2399 = vmatprep.subr.mxu0 0.0
  %2400 = vmatpush1.msra.mxu0 %v2171
  %2401 = vmatprep.subr.mxu0 0.0
  %2402 = vmatpush1.msra.mxu0 %v2170
  %2403 = vmatprep.subr.mxu0 0.0
  %2404 = vmatpush1.msra.mxu0 %v2169
  %2405 = vmatprep.subr.mxu0 0.0
  %2406 = vmatpush1.msra.mxu0 %v2168
  %2407 = vmatprep.subr.mxu0 0.0
  %2408 = vmatpush1.msra.mxu0 %v2167
  %2409 = vmatprep.subr.mxu0 0.0
  %2410 = vmatpush1.msra.mxu0 %v2166
  %2411 = vmatprep.subr.mxu0 0.0
  %2412 = vmatpush1.msra.mxu0 %v2165
  %2413 = vmatprep.subr.mxu0 0.0
  %2414 = vmatpush1.msra.mxu0 %v2164
  %2415 = vmatprep.subr.mxu0 0.0
  %2416 = vmatpush2.msra.mxu0 0.0
  %2417 = vmatprep.subr.mxu0 0.0
  %2418 = vmatpush2.msra.mxu0 0.0
  %2419 = vmatprep.subr.mxu0 0.0
  %2420 = vmatpush2.msra.mxu0 0.0
  %2421 = vmatprep.subr.mxu0 0.0
  %2422 = vmatpush2.msra.mxu0 0.0
  %2423 = vmatprep.subr.mxu0 0.0
  %2424 = vmatpush2.msra.mxu0 0.0
  %2425 = vmatprep.subr.mxu0 0.0
  %2426 = vmatpush2.msra.mxu0 0.0
  %2427 = vmatprep.subr.mxu0 0.0
  %2428 = vmatpush2.msra.mxu0 0.0
  %2429 = vmatprep.subr.mxu0 0.0
  %2430 = vmatpush2.msra.mxu0 0.0
  %2431 = vmatprep.subr.mxu0 0.0
  %2432 = vmatpush2.msra.mxu0 0.0
  %2433 = vmatprep.subr.mxu0 0.0
  %2434 = vmatpush2.msra.mxu0 0.0
  %2435 = vmatprep.subr.mxu0 0.0
  %2436 = vmatpush2.msra.mxu0 0.0
  %2437 = vmatprep.subr.mxu0 0.0
  %2438 = vmatpush2.msra.mxu0 0.0
  %2439 = vmatprep.subr.mxu0 0.0
  %2440 = vmatpush2.msra.mxu0 %v2183
  %2441 = vmatprep.subr.mxu0 0.0
  %2442 = vmatpush2.msra.mxu0 %v2182
  %2443 = vmatprep.subr.mxu0 0.0
  %2444 = vmatpush2.msra.mxu0 %v2181
  %2445 = vmatprep.subr.mxu0 0.0
  %2446 = vmatpush2.msra.mxu0 %v2180
  %2447 = vmatprep.mubr.f32.mxu0 %v2289
  %2448 = vmatmul.mubr.f32.gmra.mxu0 %v2382
  %v2449 = vpop.f32.mrf.mxu0
  %v2450 = vadd.f32 %v2163, %v2449
  %v2451 = vpop.f32.mrf.mxu0
  %2452 = vdwg.mxu0
  %v2453 = vxor.u32 %v2450, 2147483648
  %v2454 = vmul.f32 %v2453, 1.442695
  %v2455 = vpow.pop %v2454
  %v2456 = vadd.f32 %v2455, 1.0
  %v2457 = vrcp.pop %v2456
  %v2458 = vmul.f32 1.0, %v2457
  %v2459 = vtanh.pop %v2450
  %v2460 = vmul.f32 %v2458, %v2279
  %2462 = vrot.lane.b32.xlu0 %v2459, 32
  %v2463 = vpop.permute.xlu0 %2462
  %v2465 = vmul.f32 %v2458, %v2463
  %2467 = vrot.lane.b32.xlu0 %v2465, 32
  %v2468 = vpop.permute.xlu0 %2467
  %v2470 = vadd.f32 %v2460, %v2468
  %v2471 = vtanh.pop %v2470
  %2473 = vrot.lane.b32.xlu0 %v2471, 32
  %v2474 = vpop.permute.xlu0 %2473
  %v2476 = vmul.f32 %v2458, %v2474
  %2478 = vrot.lane.b32.xlu0 %v2476, 64
  %v2479 = vpop.permute.xlu0 %2478
  %v2480 = vsel %vm346, %v2479, 0
  %2482 = vmatprep.subr.mxu0 0.0
  %2483 = vmatpush1.msra.mxu0 0.0
  %2484 = vmatprep.subr.mxu0 0.0
  %2485 = vmatpush1.msra.mxu0 0.0
  %2486 = vmatprep.subr.mxu0 0.0
  %2487 = vmatpush1.msra.mxu0 0.0
  %2488 = vmatprep.subr.mxu0 0.0
  %2489 = vmatpush1.msra.mxu0 0.0
  %2490 = vmatprep.subr.mxu0 0.0
  %2491 = vmatpush1.msra.mxu0 0.0
  %2492 = vmatprep.subr.mxu0 0.0
  %2493 = vmatpush1.msra.mxu0 0.0
  %2494 = vmatprep.subr.mxu0 0.0
  %2495 = vmatpush1.msra.mxu0 0.0
  %2496 = vmatprep.subr.mxu0 0.0
  %2497 = vmatpush1.msra.mxu0 0.0
  %2498 = vmatprep.subr.mxu0 0.0
  %2499 = vmatpush1.msra.mxu0 0.0
  %2500 = vmatprep.subr.mxu0 0.0
  %2501 = vmatpush1.msra.mxu0 0.0
  %2502 = vmatprep.subr.mxu0 0.0
  %2503 = vmatpush1.msra.mxu0 0.0
  %2504 = vmatprep.subr.mxu0 0.0
  %2505 = vmatpush1.msra.mxu0 0.0
  %2506 = vmatprep.subr.mxu0 0.0
  %2507 = vmatpush1.msra.mxu0 %v2187
  %2508 = vmatprep.subr.mxu0 0.0
  %2509 = vmatpush1.msra.mxu0 %v2186
  %2510 = vmatprep.subr.mxu0 0.0
  %2511 = vmatpush1.msra.mxu0 %v2185
  %2512 = vmatprep.subr.mxu0 0.0
  %2513 = vmatpush1.msra.mxu0 %v2184
  %2514 = vmatprep.subr.mxu0 0.0
  %2515 = vmatpush2.msra.mxu0 0.0
  %2516 = vmatprep.subr.mxu0 0.0
  %2517 = vmatpush2.msra.mxu0 0.0
  %2518 = vmatprep.subr.mxu0 0.0
  %2519 = vmatpush2.msra.mxu0 0.0
  %2520 = vmatprep.subr.mxu0 0.0
  %2521 = vmatpush2.msra.mxu0 0.0
  %2522 = vmatprep.subr.mxu0 0.0
  %2523 = vmatpush2.msra.mxu0 0.0
  %2524 = vmatprep.subr.mxu0 0.0
  %2525 = vmatpush2.msra.mxu0 0.0
  %2526 = vmatprep.subr.mxu0 0.0
  %2527 = vmatpush2.msra.mxu0 0.0
  %2528 = vmatprep.subr.mxu0 0.0
  %2529 = vmatpush2.msra.mxu0 0.0
  %2530 = vmatprep.subr.mxu0 0.0
  %2531 = vmatpush2.msra.mxu0 0.0
  %2532 = vmatprep.subr.mxu0 0.0
  %2533 = vmatpush2.msra.mxu0 0.0
  %2534 = vmatprep.subr.mxu0 0.0
  %2535 = vmatpush2.msra.mxu0 0.0
  %2536 = vmatprep.subr.mxu0 0.0
  %2537 = vmatpush2.msra.mxu0 0.0
  %2538 = vmatprep.subr.mxu0 0.0
  %2539 = vmatpush2.msra.mxu0 0.0
  %2540 = vmatprep.subr.mxu0 0.0
  %2541 = vmatpush2.msra.mxu0 0.0
  %2542 = vmatprep.subr.mxu0 0.0
  %2543 = vmatpush2.msra.mxu0 0.0
  %2544 = vmatprep.subr.mxu0 0.0
  %2545 = vmatpush2.msra.mxu0 0.0
  %2546 = vmatprep.mubr.f32.mxu0 0.0
  %2547 = vmatmul.mubr.f32.gmra.mxu0 %v2480
  %v2548 = vpop.f32.mrf.mxu0
  %v2549 = vadd.f32 %v2188, %v2548
  %v2550 = vpop.f32.mrf.mxu0
  %2551 = vdwg.mxu0
  %s2552 = scalar_lea.vmem %s4, 8
  %2553 = vst [vmem:[%s2552] sm:$0xff] %v2549
  %2554 = vmax.xlane.f32.xlu0 %v2549
  %v2555 = vpop.xlane.xlu0 %2554
  %vm2556 = vcmp.eq.f32.partialorder %v2549, %v2555
  %v2557 = vsel %vm2556, %v109, 128
  %v2558 = vand.u32 %v2557, 65535
  %v2559 = vshra.s32 %v2557, 16
  %v2560 = vcvt.s32.f32 %v2558
  %v2561 = vcvt.s32.f32 %v2559
  %2562 = vmin.xlane.f32.xlu0 %v2561
  %v2563 = vpop.xlane.xlu0 %2562
  %vm2564 = vcmp.eq.f32.partialorder %v2561, %v2563
  %v2565 = vsel %vm2564, %v2560, inf
  %2566 = vmin.xlane.f32.xlu0 %v2565
  %v2567 = vpop.xlane.xlu0 %2566
  %v2568 = vcvt.f32.s32 %v2567
  %v2569 = vcvt.f32.s32 %v2563
  %v2570 = vshll.u32 %v2569, 16
  %v2571 = vadd.s32 %v2570, %v2568
  %vm2572 = vcmp.eq.s32.totalorder %v109, %v2571
  %v2573 = vsel %vm2572, 1, 0
  %v2574 = vcvt.s32.f32 %v2573
  %2575 = vmatprep.subr.mxu0 0.0
  %2576 = vmatpush1.msra.mxu0 %v2179
  %2577 = vmatprep.subr.mxu0 0.0
  %2578 = vmatpush1.msra.mxu0 %v2178
  %2579 = vmatprep.subr.mxu0 0.0
  %2580 = vmatpush1.msra.mxu0 %v2177
  %2581 = vmatprep.subr.mxu0 0.0
  %2582 = vmatpush1.msra.mxu0 %v2176
  %2583 = vmatprep.subr.mxu0 0.0
  %2584 = vmatpush1.msra.mxu0 %v2175
  %2585 = vmatprep.subr.mxu0 0.0
  %2586 = vmatpush1.msra.mxu0 %v2174
  %2587 = vmatprep.subr.mxu0 0.0
  %2588 = vmatpush1.msra.mxu0 %v2173
  %2589 = vmatprep.subr.mxu0 0.0
  %2590 = vmatpush1.msra.mxu0 %v2172
  %2591 = vmatprep.subr.mxu0 0.0
  %2592 = vmatpush1.msra.mxu0 %v2171
  %2593 = vmatprep.subr.mxu0 0.0
  %2594 = vmatpush1.msra.mxu0 %v2170
  %2595 = vmatprep.subr.mxu0 0.0
  %2596 = vmatpush1.msra.mxu0 %v2169
  %2597 = vmatprep.subr.mxu0 0.0
  %2598 = vmatpush1.msra.mxu0 %v2168
  %2599 = vmatprep.subr.mxu0 0.0
  %2600 = vmatpush1.msra.mxu0 %v2167
  %2601 = vmatprep.subr.mxu0 0.0
  %2602 = vmatpush1.msra.mxu0 %v2166
  %2603 = vmatprep.subr.mxu0 0.0
  %2604 = vmatpush1.msra.mxu0 %v2165
  %2605 = vmatprep.subr.mxu0 0.0
  %2606 = vmatpush1.msra.mxu0 %v2164
  %2607 = vmatprep.subr.mxu0 0.0
  %2608 = vmatpush2.msra.mxu0 0.0
  %2609 = vmatprep.subr.mxu0 0.0
  %2610 = vmatpush2.msra.mxu0 0.0
  %2611 = vmatprep.subr.mxu0 0.0
  %2612 = vmatpush2.msra.mxu0 0.0
  %2613 = vmatprep.subr.mxu0 0.0
  %2614 = vmatpush2.msra.mxu0 0.0
  %2615 = vmatprep.subr.mxu0 0.0
  %2616 = vmatpush2.msra.mxu0 0.0
  %2617 = vmatprep.subr.mxu0 0.0
  %2618 = vmatpush2.msra.mxu0 0.0
  %2619 = vmatprep.subr.mxu0 0.0
  %2620 = vmatpush2.msra.mxu0 0.0
  %2621 = vmatprep.subr.mxu0 0.0
  %2622 = vmatpush2.msra.mxu0 0.0
  %2623 = vmatprep.subr.mxu0 0.0
  %2624 = vmatpush2.msra.mxu0 0.0
  %2625 = vmatprep.subr.mxu0 0.0
  %2626 = vmatpush2.msra.mxu0 0.0
  %2627 = vmatprep.subr.mxu0 0.0
  %2628 = vmatpush2.msra.mxu0 0.0
  %2629 = vmatprep.subr.mxu0 0.0
  %2630 = vmatpush2.msra.mxu0 0.0
  %2631 = vmatprep.subr.mxu0 0.0
  %2632 = vmatpush2.msra.mxu0 %v2183
  %2633 = vmatprep.subr.mxu0 0.0
  %2634 = vmatpush2.msra.mxu0 %v2182
  %2635 = vmatprep.subr.mxu0 0.0
  %2636 = vmatpush2.msra.mxu0 %v2181
  %2637 = vmatprep.subr.mxu0 0.0
  %2638 = vmatpush2.msra.mxu0 %v2180
  %2639 = vmatprep.mubr.f32.mxu0 %v2480
  %2640 = vmatmul.mubr.f32.gmra.mxu0 %v2574
  %v2641 = vpop.f32.mrf.mxu0
  %v2642 = vadd.f32 %v2163, %v2641
  %v2643 = vpop.f32.mrf.mxu0
  %2644 = vdwg.mxu0
  %v2645 = vxor.u32 %v2642, 2147483648
  %v2646 = vmul.f32 %v2645, 1.442695
  %v2647 = vpow.pop %v2646
  %v2648 = vadd.f32 %v2647, 1.0
  %v2649 = vrcp.pop %v2648
  %v2650 = vmul.f32 1.0, %v2649
  %v2651 = vtanh.pop %v2642
  %v2652 = vmul.f32 %v2650, %v2470
  %2654 = vrot.lane.b32.xlu0 %v2651, 32
  %v2655 = vpop.permute.xlu0 %2654
  %v2657 = vmul.f32 %v2650, %v2655
  %2659 = vrot.lane.b32.xlu0 %v2657, 32
  %v2660 = vpop.permute.xlu0 %2659
  %v2662 = vadd.f32 %v2652, %v2660
  %v2663 = vtanh.pop %v2662
  %2665 = vrot.lane.b32.xlu0 %v2663, 32
  %v2666 = vpop.permute.xlu0 %2665
  %v2668 = vmul.f32 %v2650, %v2666
  %2670 = vrot.lane.b32.xlu0 %v2668, 64
  %v2671 = vpop.permute.xlu0 %2670
  %v2672 = vsel %vm346, %v2671, 0
  %2674 = vmatprep.subr.mxu0 0.0
  %2675 = vmatpush1.msra.mxu0 0.0
  %2676 = vmatprep.subr.mxu0 0.0
  %2677 = vmatpush1.msra.mxu0 0.0
  %2678 = vmatprep.subr.mxu0 0.0
  %2679 = vmatpush1.msra.mxu0 0.0
  %2680 = vmatprep.subr.mxu0 0.0
  %2681 = vmatpush1.msra.mxu0 0.0
  %2682 = vmatprep.subr.mxu0 0.0
  %2683 = vmatpush1.msra.mxu0 0.0
  %2684 = vmatprep.subr.mxu0 0.0
  %2685 = vmatpush1.msra.mxu0 0.0
  %2686 = vmatprep.subr.mxu0 0.0
  %2687 = vmatpush1.msra.mxu0 0.0
  %2688 = vmatprep.subr.mxu0 0.0
  %2689 = vmatpush1.msra.mxu0 0.0
  %2690 = vmatprep.subr.mxu0 0.0
  %2691 = vmatpush1.msra.mxu0 0.0
  %2692 = vmatprep.subr.mxu0 0.0
  %2693 = vmatpush1.msra.mxu0 0.0
  %2694 = vmatprep.subr.mxu0 0.0
  %2695 = vmatpush1.msra.mxu0 0.0
  %2696 = vmatprep.subr.mxu0 0.0
  %2697 = vmatpush1.msra.mxu0 0.0
  %2698 = vmatprep.subr.mxu0 0.0
  %2699 = vmatpush1.msra.mxu0 %v2187
  %2700 = vmatprep.subr.mxu0 0.0
  %2701 = vmatpush1.msra.mxu0 %v2186
  %2702 = vmatprep.subr.mxu0 0.0
  %2703 = vmatpush1.msra.mxu0 %v2185
  %2704 = vmatprep.subr.mxu0 0.0
  %2705 = vmatpush1.msra.mxu0 %v2184
  %2706 = vmatprep.subr.mxu0 0.0
  %2707 = vmatpush2.msra.mxu0 0.0
  %2708 = vmatprep.subr.mxu0 0.0
  %2709 = vmatpush2.msra.mxu0 0.0
  %2710 = vmatprep.subr.mxu0 0.0
  %2711 = vmatpush2.msra.mxu0 0.0
  %2712 = vmatprep.subr.mxu0 0.0
  %2713 = vmatpush2.msra.mxu0 0.0
  %2714 = vmatprep.subr.mxu0 0.0
  %2715 = vmatpush2.msra.mxu0 0.0
  %2716 = vmatprep.subr.mxu0 0.0
  %2717 = vmatpush2.msra.mxu0 0.0
  %2718 = vmatprep.subr.mxu0 0.0
  %2719 = vmatpush2.msra.mxu0 0.0
  %2720 = vmatprep.subr.mxu0 0.0
  %2721 = vmatpush2.msra.mxu0 0.0
  %2722 = vmatprep.subr.mxu0 0.0
  %2723 = vmatpush2.msra.mxu0 0.0
  %2724 = vmatprep.subr.mxu0 0.0
  %2725 = vmatpush2.msra.mxu0 0.0
  %2726 = vmatprep.subr.mxu0 0.0
  %2727 = vmatpush2.msra.mxu0 0.0
  %2728 = vmatprep.subr.mxu0 0.0
  %2729 = vmatpush2.msra.mxu0 0.0
  %2730 = vmatprep.subr.mxu0 0.0
  %2731 = vmatpush2.msra.mxu0 0.0
  %2732 = vmatprep.subr.mxu0 0.0
  %2733 = vmatpush2.msra.mxu0 0.0
  %2734 = vmatprep.subr.mxu0 0.0
  %2735 = vmatpush2.msra.mxu0 0.0
  %2736 = vmatprep.subr.mxu0 0.0
  %2737 = vmatpush2.msra.mxu0 0.0
  %2738 = vmatprep.mubr.f32.mxu0 0.0
  %2739 = vmatmul.mubr.f32.gmra.mxu0 %v2672
  %v2740 = vpop.f32.mrf.mxu0
  %v2741 = vadd.f32 %v2188, %v2740
  %v2742 = vpop.f32.mrf.mxu0
  %2743 = vdwg.mxu0
  %s2744 = scalar_lea.vmem %s4, 16
  %2745 = vst [vmem:[%s2744] sm:$0xff] %v2741
  %2746 = vmax.xlane.f32.xlu0 %v2741
  %v2747 = vpop.xlane.xlu0 %2746
  %vm2748 = vcmp.eq.f32.partialorder %v2741, %v2747
  %v2749 = vsel %vm2748, %v109, 128
  %v2750 = vand.u32 %v2749, 65535
  %v2751 = vshra.s32 %v2749, 16
  %v2752 = vcvt.s32.f32 %v2750
  %v2753 = vcvt.s32.f32 %v2751
  %2754 = vmin.xlane.f32.xlu0 %v2753
  %v2755 = vpop.xlane.xlu0 %2754
  %vm2756 = vcmp.eq.f32.partialorder %v2753, %v2755
  %v2757 = vsel %vm2756, %v2752, inf
  %2758 = vmin.xlane.f32.xlu0 %v2757
  %v2759 = vpop.xlane.xlu0 %2758
  %v2760 = vcvt.f32.s32 %v2759
  %v2761 = vcvt.f32.s32 %v2755
  %v2762 = vshll.u32 %v2761, 16
  %v2763 = vadd.s32 %v2762, %v2760
  %vm2764 = vcmp.eq.s32.totalorder %v109, %v2763
  %v2765 = vsel %vm2764, 1, 0
  %v2766 = vcvt.s32.f32 %v2765
  %2767 = vmatprep.subr.mxu0 0.0
  %2768 = vmatpush1.msra.mxu0 %v2179
  %2769 = vmatprep.subr.mxu0 0.0
  %2770 = vmatpush1.msra.mxu0 %v2178
  %2771 = vmatprep.subr.mxu0 0.0
  %2772 = vmatpush1.msra.mxu0 %v2177
  %2773 = vmatprep.subr.mxu0 0.0
  %2774 = vmatpush1.msra.mxu0 %v2176
  %2775 = vmatprep.subr.mxu0 0.0
  %2776 = vmatpush1.msra.mxu0 %v2175
  %2777 = vmatprep.subr.mxu0 0.0
  %2778 = vmatpush1.msra.mxu0 %v2174
  %2779 = vmatprep.subr.mxu0 0.0
  %2780 = vmatpush1.msra.mxu0 %v2173
  %2781 = vmatprep.subr.mxu0 0.0
  %2782 = vmatpush1.msra.mxu0 %v2172
  %2783 = vmatprep.subr.mxu0 0.0
  %2784 = vmatpush1.msra.mxu0 %v2171
  %2785 = vmatprep.subr.mxu0 0.0
  %2786 = vmatpush1.msra.mxu0 %v2170
  %2787 = vmatprep.subr.mxu0 0.0
  %2788 = vmatpush1.msra.mxu0 %v2169
  %2789 = vmatprep.subr.mxu0 0.0
  %2790 = vmatpush1.msra.mxu0 %v2168
  %2791 = vmatprep.subr.mxu0 0.0
  %2792 = vmatpush1.msra.mxu0 %v2167
  %2793 = vmatprep.subr.mxu0 0.0
  %2794 = vmatpush1.msra.mxu0 %v2166
  %2795 = vmatprep.subr.mxu0 0.0
  %2796 = vmatpush1.msra.mxu0 %v2165
  %2797 = vmatprep.subr.mxu0 0.0
  %2798 = vmatpush1.msra.mxu0 %v2164
  %2799 = vmatprep.subr.mxu0 0.0
  %2800 = vmatpush2.msra.mxu0 0.0
  %2801 = vmatprep.subr.mxu0 0.0
  %2802 = vmatpush2.msra.mxu0 0.0
  %2803 = vmatprep.subr.mxu0 0.0
  %2804 = vmatpush2.msra.mxu0 0.0
  %2805 = vmatprep.subr.mxu0 0.0
  %2806 = vmatpush2.msra.mxu0 0.0
  %2807 = vmatprep.subr.mxu0 0.0
  %2808 = vmatpush2.msra.mxu0 0.0
  %2809 = vmatprep.subr.mxu0 0.0
  %2810 = vmatpush2.msra.mxu0 0.0
  %2811 = vmatprep.subr.mxu0 0.0
  %2812 = vmatpush2.msra.mxu0 0.0
  %2813 = vmatprep.subr.mxu0 0.0
  %2814 = vmatpush2.msra.mxu0 0.0
  %2815 = vmatprep.subr.mxu0 0.0
  %2816 = vmatpush2.msra.mxu0 0.0
  %2817 = vmatprep.subr.mxu0 0.0
  %2818 = vmatpush2.msra.mxu0 0.0
  %2819 = vmatprep.subr.mxu0 0.0
  %2820 = vmatpush2.msra.mxu0 0.0
  %2821 = vmatprep.subr.mxu0 0.0
  %2822 = vmatpush2.msra.mxu0 0.0
  %2823 = vmatprep.subr.mxu0 0.0
  %2824 = vmatpush2.msra.mxu0 %v2183
  %2825 = vmatprep.subr.mxu0 0.0
  %2826 = vmatpush2.msra.mxu0 %v2182
  %2827 = vmatprep.subr.mxu0 0.0
  %2828 = vmatpush2.msra.mxu0 %v2181
  %2829 = vmatprep.subr.mxu0 0.0
  %2830 = vmatpush2.msra.mxu0 %v2180
  %2831 = vmatprep.mubr.f32.mxu0 %v2672
  %2832 = vmatmul.mubr.f32.gmra.mxu0 %v2766
  %v2833 = vpop.f32.mrf.mxu0
  %v2834 = vadd.f32 %v2163, %v2833
  %v2835 = vpop.f32.mrf.mxu0
  %2836 = vdwg.mxu0
  %v2837 = vxor.u32 %v2834, 2147483648
  %v2838 = vmul.f32 %v2837, 1.442695
  %v2839 = vpow.pop %v2838
  %v2840 = vadd.f32 %v2839, 1.0
  %v2841 = vrcp.pop %v2840
  %v2842 = vmul.f32 1.0, %v2841
  %v2843 = vtanh.pop %v2834
  %v2844 = vmul.f32 %v2842, %v2662
  %2846 = vrot.lane.b32.xlu0 %v2843, 32
  %v2847 = vpop.permute.xlu0 %2846
  %v2849 = vmul.f32 %v2842, %v2847
  %2851 = vrot.lane.b32.xlu0 %v2849, 32
  %v2852 = vpop.permute.xlu0 %2851
  %v2854 = vadd.f32 %v2844, %v2852
  %v2855 = vtanh.pop %v2854
  %2857 = vrot.lane.b32.xlu0 %v2855, 32
  %v2858 = vpop.permute.xlu0 %2857
  %v2860 = vmul.f32 %v2842, %v2858
  %2862 = vrot.lane.b32.xlu0 %v2860, 64
  %v2863 = vpop.permute.xlu0 %2862
  %v2864 = vsel %vm346, %v2863, 0
  %2866 = vmatprep.subr.mxu0 0.0
  %2867 = vmatpush1.msra.mxu0 0.0
  %2868 = vmatprep.subr.mxu0 0.0
  %2869 = vmatpush1.msra.mxu0 0.0
  %2870 = vmatprep.subr.mxu0 0.0
  %2871 = vmatpush1.msra.mxu0 0.0
  %2872 = vmatprep.subr.mxu0 0.0
  %2873 = vmatpush1.msra.mxu0 0.0
  %2874 = vmatprep.subr.mxu0 0.0
  %2875 = vmatpush1.msra.mxu0 0.0
  %2876 = vmatprep.subr.mxu0 0.0
  %2877 = vmatpush1.msra.mxu0 0.0
  %2878 = vmatprep.subr.mxu0 0.0
  %2879 = vmatpush1.msra.mxu0 0.0
  %2880 = vmatprep.subr.mxu0 0.0
  %2881 = vmatpush1.msra.mxu0 0.0
  %2882 = vmatprep.subr.mxu0 0.0
  %2883 = vmatpush1.msra.mxu0 0.0
  %2884 = vmatprep.subr.mxu0 0.0
  %2885 = vmatpush1.msra.mxu0 0.0
  %2886 = vmatprep.subr.mxu0 0.0
  %2887 = vmatpush1.msra.mxu0 0.0
  %2888 = vmatprep.subr.mxu0 0.0
  %2889 = vmatpush1.msra.mxu0 0.0
  %2890 = vmatprep.subr.mxu0 0.0
  %2891 = vmatpush1.msra.mxu0 %v2187
  %2892 = vmatprep.subr.mxu0 0.0
  %2893 = vmatpush1.msra.mxu0 %v2186
  %2894 = vmatprep.subr.mxu0 0.0
  %2895 = vmatpush1.msra.mxu0 %v2185
  %2896 = vmatprep.subr.mxu0 0.0
  %2897 = vmatpush1.msra.mxu0 %v2184
  %2898 = vmatprep.subr.mxu0 0.0
  %2899 = vmatpush2.msra.mxu0 0.0
  %2900 = vmatprep.subr.mxu0 0.0
  %2901 = vmatpush2.msra.mxu0 0.0
  %2902 = vmatprep.subr.mxu0 0.0
  %2903 = vmatpush2.msra.mxu0 0.0
  %2904 = vmatprep.subr.mxu0 0.0
  %2905 = vmatpush2.msra.mxu0 0.0
  %2906 = vmatprep.subr.mxu0 0.0
  %2907 = vmatpush2.msra.mxu0 0.0
  %2908 = vmatprep.subr.mxu0 0.0
  %2909 = vmatpush2.msra.mxu0 0.0
  %2910 = vmatprep.subr.mxu0 0.0
  %2911 = vmatpush2.msra.mxu0 0.0
  %2912 = vmatprep.subr.mxu0 0.0
  %2913 = vmatpush2.msra.mxu0 0.0
  %2914 = vmatprep.subr.mxu0 0.0
  %2915 = vmatpush2.msra.mxu0 0.0
  %2916 = vmatprep.subr.mxu0 0.0
  %2917 = vmatpush2.msra.mxu0 0.0
  %2918 = vmatprep.subr.mxu0 0.0
  %2919 = vmatpush2.msra.mxu0 0.0
  %2920 = vmatprep.subr.mxu0 0.0
  %2921 = vmatpush2.msra.mxu0 0.0
  %2922 = vmatprep.subr.mxu0 0.0
  %2923 = vmatpush2.msra.mxu0 0.0
  %2924 = vmatprep.subr.mxu0 0.0
  %2925 = vmatpush2.msra.mxu0 0.0
  %2926 = vmatprep.subr.mxu0 0.0
  %2927 = vmatpush2.msra.mxu0 0.0
  %2928 = vmatprep.subr.mxu0 0.0
  %2929 = vmatpush2.msra.mxu0 0.0
  %2930 = vmatprep.mubr.f32.mxu0 0.0
  %2931 = vmatmul.mubr.f32.gmra.mxu0 %v2864
  %v2932 = vpop.f32.mrf.mxu0
  %v2933 = vadd.f32 %v2188, %v2932
  %v2934 = vpop.f32.mrf.mxu0
  %2935 = vdwg.mxu0
  %s2936 = scalar_lea.vmem %s4, 24
  %2937 = vst [vmem:[%s2936] sm:$0xff] %v2933
  %2938 = vmax.xlane.f32.xlu0 %v2933
  %v2939 = vpop.xlane.xlu0 %2938
  %vm2940 = vcmp.eq.f32.partialorder %v2933, %v2939
  %v2941 = vsel %vm2940, %v109, 128
  %v2942 = vand.u32 %v2941, 65535
  %v2943 = vshra.s32 %v2941, 16
  %v2944 = vcvt.s32.f32 %v2942
  %v2945 = vcvt.s32.f32 %v2943
  %2946 = vmin.xlane.f32.xlu0 %v2945
  %v2947 = vpop.xlane.xlu0 %2946
  %vm2948 = vcmp.eq.f32.partialorder %v2945, %v2947
  %v2949 = vsel %vm2948, %v2944, inf
  %2950 = vmin.xlane.f32.xlu0 %v2949
  %v2951 = vpop.xlane.xlu0 %2950
  %v2952 = vcvt.f32.s32 %v2951
  %v2953 = vcvt.f32.s32 %v2947
  %v2954 = vshll.u32 %v2953, 16
  %v2955 = vadd.s32 %v2954, %v2952
  %vm2956 = vcmp.eq.s32.totalorder %v109, %v2955
  %v2957 = vsel %vm2956, 1, 0
  %v2958 = vcvt.s32.f32 %v2957
  %2959 = vmatprep.subr.mxu0 0.0
  %2960 = vmatpush1.msra.mxu0 %v2179
  %2961 = vmatprep.subr.mxu0 0.0
  %2962 = vmatpush1.msra.mxu0 %v2178
  %2963 = vmatprep.subr.mxu0 0.0
  %2964 = vmatpush1.msra.mxu0 %v2177
  %2965 = vmatprep.subr.mxu0 0.0
  %2966 = vmatpush1.msra.mxu0 %v2176
  %2967 = vmatprep.subr.mxu0 0.0
  %2968 = vmatpush1.msra.mxu0 %v2175
  %2969 = vmatprep.subr.mxu0 0.0
  %2970 = vmatpush1.msra.mxu0 %v2174
  %2971 = vmatprep.subr.mxu0 0.0
  %2972 = vmatpush1.msra.mxu0 %v2173
  %2973 = vmatprep.subr.mxu0 0.0
  %2974 = vmatpush1.msra.mxu0 %v2172
  %2975 = vmatprep.subr.mxu0 0.0
  %2976 = vmatpush1.msra.mxu0 %v2171
  %2977 = vmatprep.subr.mxu0 0.0
  %2978 = vmatpush1.msra.mxu0 %v2170
  %2979 = vmatprep.subr.mxu0 0.0
  %2980 = vmatpush1.msra.mxu0 %v2169
  %2981 = vmatprep.subr.mxu0 0.0
  %2982 = vmatpush1.msra.mxu0 %v2168
  %2983 = vmatprep.subr.mxu0 0.0
  %2984 = vmatpush1.msra.mxu0 %v2167
  %2985 = vmatprep.subr.mxu0 0.0
  %2986 = vmatpush1.msra.mxu0 %v2166
  %2987 = vmatprep.subr.mxu0 0.0
  %2988 = vmatpush1.msra.mxu0 %v2165
  %2989 = vmatprep.subr.mxu0 0.0
  %2990 = vmatpush1.msra.mxu0 %v2164
  %2991 = vmatprep.subr.mxu0 0.0
  %2992 = vmatpush2.msra.mxu0 0.0
  %2993 = vmatprep.subr.mxu0 0.0
  %2994 = vmatpush2.msra.mxu0 0.0
  %2995 = vmatprep.subr.mxu0 0.0
  %2996 = vmatpush2.msra.mxu0 0.0
  %2997 = vmatprep.subr.mxu0 0.0
  %2998 = vmatpush2.msra.mxu0 0.0
  %2999 = vmatprep.subr.mxu0 0.0
  %3000 = vmatpush2.msra.mxu0 0.0
  %3001 = vmatprep.subr.mxu0 0.0
  %3002 = vmatpush2.msra.mxu0 0.0
  %3003 = vmatprep.subr.mxu0 0.0
  %3004 = vmatpush2.msra.mxu0 0.0
  %3005 = vmatprep.subr.mxu0 0.0
  %3006 = vmatpush2.msra.mxu0 0.0
  %3007 = vmatprep.subr.mxu0 0.0
  %3008 = vmatpush2.msra.mxu0 0.0
  %3009 = vmatprep.subr.mxu0 0.0
  %3010 = vmatpush2.msra.mxu0 0.0
  %3011 = vmatprep.subr.mxu0 0.0
  %3012 = vmatpush2.msra.mxu0 0.0
  %3013 = vmatprep.subr.mxu0 0.0
  %3014 = vmatpush2.msra.mxu0 0.0
  %3015 = vmatprep.subr.mxu0 0.0
  %3016 = vmatpush2.msra.mxu0 %v2183
  %3017 = vmatprep.subr.mxu0 0.0
  %3018 = vmatpush2.msra.mxu0 %v2182
  %3019 = vmatprep.subr.mxu0 0.0
  %3020 = vmatpush2.msra.mxu0 %v2181
  %3021 = vmatprep.subr.mxu0 0.0
  %3022 = vmatpush2.msra.mxu0 %v2180
  %3023 = vmatprep.mubr.f32.mxu0 %v2864
  %3024 = vmatmul.mubr.f32.gmra.mxu0 %v2958
  %v3025 = vpop.f32.mrf.mxu0
  %v3026 = vadd.f32 %v2163, %v3025
  %v3027 = vpop.f32.mrf.mxu0
  %3028 = vdwg.mxu0
  %v3029 = vxor.u32 %v3026, 2147483648
  %v3030 = vmul.f32 %v3029, 1.442695
  %v3031 = vpow.pop %v3030
  %v3032 = vadd.f32 %v3031, 1.0
  %v3033 = vrcp.pop %v3032
  %v3034 = vmul.f32 1.0, %v3033
  %v3035 = vtanh.pop %v3026
  %v3036 = vmul.f32 %v3034, %v2854
  %3038 = vrot.lane.b32.xlu0 %v3035, 32
  %v3039 = vpop.permute.xlu0 %3038
  %v3041 = vmul.f32 %v3034, %v3039
  %3043 = vrot.lane.b32.xlu0 %v3041, 32
  %v3044 = vpop.permute.xlu0 %3043
  %v3046 = vadd.f32 %v3036, %v3044
  %v3047 = vtanh.pop %v3046
  %3049 = vrot.lane.b32.xlu0 %v3047, 32
  %v3050 = vpop.permute.xlu0 %3049
  %v3052 = vmul.f32 %v3034, %v3050
  %3054 = vrot.lane.b32.xlu0 %v3052, 64
  %v3055 = vpop.permute.xlu0 %3054
  %v3056 = vsel %vm346, %v3055, 0
  %3058 = vmatprep.subr.mxu0 0.0
  %3059 = vmatpush1.msra.mxu0 0.0
  %3060 = vmatprep.subr.mxu0 0.0
  %3061 = vmatpush1.msra.mxu0 0.0
  %3062 = vmatprep.subr.mxu0 0.0
  %3063 = vmatpush1.msra.mxu0 0.0
  %3064 = vmatprep.subr.mxu0 0.0
  %3065 = vmatpush1.msra.mxu0 0.0
  %3066 = vmatprep.subr.mxu0 0.0
  %3067 = vmatpush1.msra.mxu0 0.0
  %3068 = vmatprep.subr.mxu0 0.0
  %3069 = vmatpush1.msra.mxu0 0.0
  %3070 = vmatprep.subr.mxu0 0.0
  %3071 = vmatpush1.msra.mxu0 0.0
  %3072 = vmatprep.subr.mxu0 0.0
  %3073 = vmatpush1.msra.mxu0 0.0
  %3074 = vmatprep.subr.mxu0 0.0
  %3075 = vmatpush1.msra.mxu0 0.0
  %3076 = vmatprep.subr.mxu0 0.0
  %3077 = vmatpush1.msra.mxu0 0.0
  %3078 = vmatprep.subr.mxu0 0.0
  %3079 = vmatpush1.msra.mxu0 0.0
  %3080 = vmatprep.subr.mxu0 0.0
  %3081 = vmatpush1.msra.mxu0 0.0
  %3082 = vmatprep.subr.mxu0 0.0
  %3083 = vmatpush1.msra.mxu0 %v2187
  %3084 = vmatprep.subr.mxu0 0.0
  %3085 = vmatpush1.msra.mxu0 %v2186
  %3086 = vmatprep.subr.mxu0 0.0
  %3087 = vmatpush1.msra.mxu0 %v2185
  %3088 = vmatprep.subr.mxu0 0.0
  %3089 = vmatpush1.msra.mxu0 %v2184
  %3090 = vmatprep.subr.mxu0 0.0
  %3091 = vmatpush2.msra.mxu0 0.0
  %3092 = vmatprep.subr.mxu0 0.0
  %3093 = vmatpush2.msra.mxu0 0.0
  %3094 = vmatprep.subr.mxu0 0.0
  %3095 = vmatpush2.msra.mxu0 0.0
  %3096 = vmatprep.subr.mxu0 0.0
  %3097 = vmatpush2.msra.mxu0 0.0
  %3098 = vmatprep.subr.mxu0 0.0
  %3099 = vmatpush2.msra.mxu0 0.0
  %3100 = vmatprep.subr.mxu0 0.0
  %3101 = vmatpush2.msra.mxu0 0.0
  %3102 = vmatprep.subr.mxu0 0.0
  %3103 = vmatpush2.msra.mxu0 0.0
  %3104 = vmatprep.subr.mxu0 0.0
  %3105 = vmatpush2.msra.mxu0 0.0
  %3106 = vmatprep.subr.mxu0 0.0
  %3107 = vmatpush2.msra.mxu0 0.0
  %3108 = vmatprep.subr.mxu0 0.0
  %3109 = vmatpush2.msra.mxu0 0.0
  %3110 = vmatprep.subr.mxu0 0.0
  %3111 = vmatpush2.msra.mxu0 0.0
  %3112 = vmatprep.subr.mxu0 0.0
  %3113 = vmatpush2.msra.mxu0 0.0
  %3114 = vmatprep.subr.mxu0 0.0
  %3115 = vmatpush2.msra.mxu0 0.0
  %3116 = vmatprep.subr.mxu0 0.0
  %3117 = vmatpush2.msra.mxu0 0.0
  %3118 = vmatprep.subr.mxu0 0.0
  %3119 = vmatpush2.msra.mxu0 0.0
  %3120 = vmatprep.subr.mxu0 0.0
  %3121 = vmatpush2.msra.mxu0 0.0
  %3122 = vmatprep.mubr.f32.mxu0 0.0
  %3123 = vmatmul.mubr.f32.gmra.mxu0 %v3056
  %v3124 = vpop.f32.mrf.mxu0
  %v3125 = vadd.f32 %v2188, %v3124
  %v3126 = vpop.f32.mrf.mxu0
  %3127 = vdwg.mxu0
  %s3128 = scalar_lea.vmem %s4, 32
  %3129 = vst [vmem:[%s3128] sm:$0xff] %v3125
  // Predicated region
  $region14: #{vivqax_forward.1} parent=0 // pred_check
    _
  $region15: #{vivqax_forward.1} parent=0 // pred_check_branch
    %3131 = sbr.rel (0) target = $region17
  $region16: #{vivqax_forward.1} parent=0 // pred_region
    _
  $region17: #{vivqax_forward.1} parent=0 // pred_fallthru
    _
  // Predicated region
  $region18: #{vivqax_forward.1} parent=0 // pred_check
    _
  $region19: #{vivqax_forward.1} parent=0 // pred_check_branch
    %3133 = sbr.rel (0) target = $region21
  $region20: #{vivqax_forward.1} parent=0 // pred_region
    _
  $region21: #{vivqax_forward.1} parent=0 // pred_fallthru
    _
  // Predicated region
  $region22: #{vivqax_forward.1} parent=0 // pred_check
    _
  $region23: #{vivqax_forward.1} parent=0 // pred_check_branch
    %3135 = sbr.rel (0) target = $region25
  $region24: #{vivqax_forward.1} parent=0 // pred_region
    _
  $region25: #{vivqax_forward.1} parent=0 // pred_fallthru
    _
  // Predicated region
  $region26: #{vivqax_forward.1} parent=0 // pred_check
    _
  $region27: #{vivqax_forward.1} parent=0 // pred_check_branch
    %3137 = sbr.rel (0) target = $region29
  $region28: #{vivqax_forward.1} parent=0 // pred_region
    _
  $region29: #{vivqax_forward.1} parent=0 // pred_fallthru
    _

</llo_original>
